<compile_context>
chip_gen: v7x
topology: tpu7x:2x2x1
jax: 0.10.0
libtpu: 0.0.40
codegen_flags: <defaults>
</compile_context>

<pallas_src>
import jax
import jax.numpy as jnp
import numpy as np
from jax.experimental import pallas as pl
from jax.experimental.pallas import tpu as pltpu

EPS = 1e-5
HIDDEN = 32


# ---------------------------------------------------------------------------
# fused kernel: grid = (batch_tiles,)  [parallel]; all L layers unrolled inside
# state layout is feature-major: features on sublanes, batch rows on lanes.
# ---------------------------------------------------------------------------
def _fused_realnvp_kernel(bn_ld_ref, z_ref, c_ref,
                          bn_scale_ref, bn_shift_ref,
                          w1z_ref, w1c_ref, b1_ref,
                          w2_ref, b2_ref,
                          w3_ref, b3_ref,
                          s_scale_ref, s_bias_ref,
                          z_out_ref, ld_out_ref):
    n_layers = w2_ref.shape[0]
    D = z_ref.shape[0]

    z = z_ref[...]                                      # (D, TB)  [even | odd] rows
    c = c_ref[...]                                      # (C, TB)
    ld = jnp.full(ld_out_ref.shape, bn_ld_ref[0, 0], dtype=jnp.float32)  # (1, TB)

    # Static unroll over layers: params are resident whole-array VMEM blocks,
    # the working state stays live across layers, outputs written once below.
    for l in range(n_layers):
        # BatchNorm folded into a single FMA (constants precomputed host-side)
        zh = z * bn_scale_ref[l] + bn_shift_ref[l]      # (D, TB)

        # conditioner MLP on [z1, c]; z1 selection baked into zero cols of w1z
        h = jnp.dot(w1z_ref[l], zh, preferred_element_type=jnp.float32)
        h = h + jnp.dot(w1c_ref[l], c, preferred_element_type=jnp.float32)
        h = jnp.maximum(h + b1_ref[l], 0.0)             # (H, TB)
        h = jnp.dot(w2_ref[l], h, preferred_element_type=jnp.float32) + b2_ref[l]
        h = jnp.maximum(h, 0.0)                         # (H, TB)

        # fused t/s head: (2D, H) @ (H, TB) -> (2D, TB); split on sublanes
        ts = jnp.dot(w3_ref[l], h, preferred_element_type=jnp.float32) + b3_ref[l]
        t = ts[:D]                                      # (D, TB), zero on z1 rows
        s = jnp.tanh(ts[D:]) * s_scale_ref[l] + s_bias_ref[l]   # masked -> 0 on z1

        # affine coupling + log-det accumulation (z1 rows: exp(0)=1, t=0)
        z = zh * jnp.exp(s) + t
        ld = ld + jnp.sum(s, axis=0, keepdims=True)     # (1, TB)

    z_out_ref[...] = z
    ld_out_ref[...] = ld


# ---------------------------------------------------------------------------
# host-side parameter packing (done once; would be cached at model-load time)
# all weights transposed for the feature-major (batch-in-lanes) layout.
# ---------------------------------------------------------------------------
def _pack_layers(layers, in_dim, c_dim):
    D = in_dim
    half = D // 2
    H = layers[0]['w1'].shape[1]

    bn_scale, bn_shift = [], []
    w1z, w1c, b1, w2, b2 = [], [], [], [], []
    w3, b3, s_scale, s_bias = [], [], [], []
    total_bn_ld = jnp.float32(0.0)

    for i, lp in enumerate(layers):
        odd = (i % 2 != 0)

        # BatchNorm stats permuted to the de-interleaved [even | odd] layout.
        mean_d = jnp.concatenate([lp['bn_mean'][0::2], lp['bn_mean'][1::2]])
        var_d = jnp.concatenate([lp['bn_var'][0::2], lp['bn_var'][1::2]])
        inv_std = jax.lax.rsqrt(var_d + EPS)
        bn_scale.append(inv_std[:, None])                       # (D,1)
        bn_shift.append((-mean_d * inv_std)[:, None])           # (D,1)
        total_bn_ld = total_bn_ld - 0.5 * jnp.sum(jnp.log(var_d + EPS))

        # rows of z0 (transformed) / z1 (conditioning) in de-interleaved layout
        if odd:
            z0_lo, z0_hi = half, D
            z1_rows = slice(0, half)
        else:
            z0_lo, z0_hi = 0, half
            z1_rows = slice(half, D)
        z0_rows = slice(z0_lo, z0_hi)

        w1 = lp['w1']                                           # (half + C, H)
        w1z.append(jnp.zeros((H, D), jnp.float32)
                   .at[:, z1_rows].set(w1[:half].T))            # (H, D)
        w1c.append(w1[half:].T)                                 # (H, C)
        b1.append(lp['b1'][:, None])                            # (H, 1)
        w2.append(lp['w2'].T)                                   # (H, H)
        b2.append(lp['b2'][:, None])                            # (H, 1)

        w3_l = lp['w3']                                         # (H, 2*half): [t | s]
        b3_l = lp['b3']
        w3_t = jnp.zeros((2 * D, H), jnp.float32)
        w3_t = w3_t.at[z0_rows, :].set(w3_l[:, :half].T)        # t head rows
        w3_t = w3_t.at[D + z0_lo:D + z0_hi, :].set(w3_l[:, half:].T)  # s head rows
        w3.append(w3_t)                                         # (2D, H)
        b3_v = jnp.zeros((2 * D, 1), jnp.float32)
        b3_v = b3_v.at[z0_rows, 0].set(b3_l[:half])
        b3_v = b3_v.at[D + z0_lo:D + z0_hi, 0].set(b3_l[half:])
        b3.append(b3_v)                                         # (2D, 1)

        mask = jnp.zeros((D, 1), jnp.float32).at[z0_rows, :].set(1.0)
        s_scale.append(lp['s_log_scale'][0, 0] * mask)          # (D,1)
        s_bias.append(lp['s_bias'][0, 0] * mask)                # (D,1)

    return dict(
        bn_scale=jnp.stack(bn_scale),                           # (L,D,1)
        bn_shift=jnp.stack(bn_shift),                           # (L,D,1)
        w1z=jnp.stack(w1z),                                     # (L,H,D)
        w1c=jnp.stack(w1c),                                     # (L,H,C)
        b1=jnp.stack(b1),                                       # (L,H,1)
        w2=jnp.stack(w2),                                       # (L,H,H)
        b2=jnp.stack(b2),                                       # (L,H,1)
        w3=jnp.stack(w3),                                       # (L,2D,H)
        b3=jnp.stack(b3),                                       # (L,2D,1)
        s_scale=jnp.stack(s_scale),                             # (L,D,1)
        s_bias=jnp.stack(s_bias),                               # (L,D,1)
        bn_ld_total=jnp.asarray(total_bn_ld, jnp.float32).reshape(1, 1),
    )


def _round_up(x, m):
    return (x + m - 1) // m * m


# ---------------------------------------------------------------------------
# forward wrapper
# ---------------------------------------------------------------------------
def conditional_realnvp_forward(z, c, layers, *, block_b=4096):
    """Pallas-backed forward: returns (z_out, log_df_dz)."""
    B, D = z.shape
    C = c.shape[1]
    L = len(layers)
    H = layers[0]['w1'].shape[1]
    assert D % 2 == 0, "use even in_dim so both squeeze halves match the MLP"
    half = D // 2

    # de-interleave + transpose ONCE: feature-major [even | odd], batch on lanes
    z_t = z.astype(jnp.float32).T                                # (D, B)
    z_d = jnp.concatenate([z_t[0::2], z_t[1::2]], axis=0)        # (D, B)
    c_t = c.astype(jnp.float32).T                                # (C, B)

    # batch (lane) tiling: multiple of 128, >= 2 tiles when possible (v7x megacore)
    block_b = max(128, (int(block_b) // 128) * 128)
    b128 = _round_up(B, 128)
    if b128 >= 256:
        tb = min(block_b, _round_up((b128 + 1) // 2, 128))
    else:
        tb = b128
    b_pad = _round_up(B, tb)
    if b_pad != B:
        z_d = jnp.pad(z_d, ((0, 0), (0, b_pad - B)))
        c_t = jnp.pad(c_t, ((0, 0), (0, b_pad - B)))

    p = _pack_layers(layers, D, C)
    grid = (b_pad // tb,)

    def col_spec(rows):
        return pl.BlockSpec((rows, tb), lambda b: (0, b))

    def param_spec(arr):
        shp = tuple(arr.shape)
        return pl.BlockSpec(shp, lambda b, _n=len(shp): (0,) * _n)

    n_params = int(sum(np.prod(v.shape) for v in p.values()))
    cost = pl.CostEstimate(
        flops=int(2 * L * b_pad * (H * D + H * C + H * H + 2 * D * H)),
        transcendentals=int(L * b_pad * 2 * D),
        bytes_accessed=int(4 * (b_pad * (2 * D + C + 1) + n_params)),
    )

    z_out_d, ld_out = pl.pallas_call(
        _fused_realnvp_kernel,
        out_shape=(jax.ShapeDtypeStruct((D, b_pad), jnp.float32),
                   jax.ShapeDtypeStruct((1, b_pad), jnp.float32)),
        grid=grid,
        in_specs=[
            pl.BlockSpec((1, 1), lambda b: (0, 0),
                         memory_space=pltpu.MemorySpace.SMEM),   # total BN log-det
            col_spec(D),                                         # z (de-interleaved, T)
            col_spec(C),                                         # c (T)
            param_spec(p['bn_scale']), param_spec(p['bn_shift']),
            param_spec(p['w1z']), param_spec(p['w1c']), param_spec(p['b1']),
            param_spec(p['w2']), param_spec(p['b2']),
            param_spec(p['w3']), param_spec(p['b3']),
            param_spec(p['s_scale']), param_spec(p['s_bias']),
        ],
        out_specs=(col_spec(D),
                   pl.BlockSpec((1, tb), lambda b: (0, b))),
        compiler_params=pltpu.CompilerParams(
            dimension_semantics=("parallel",),
            vmem_limit_bytes=32 * 1024 * 1024),
        cost_estimate=cost,
    )(p['bn_ld_total'], z_d, c_t,
      p['bn_scale'], p['bn_shift'],
      p['w1z'], p['w1c'], p['b1'],
      p['w2'], p['b2'],
      p['w3'], p['b3'],
      p['s_scale'], p['s_bias'])

    z_out_d = z_out_d[:, :B]                                     # (D, B)
    ld = ld_out[0, :B]                                           # (B,)
    # re-interleave rows once: [e0..e_{h-1}, o0..o_{h-1}] -> [e0,o0,e1,o1,...]
    z_out = jnp.stack([z_out_d[:half], z_out_d[half:]], axis=1).reshape(D, B).T
    return z_out, ld


# ---------------------------------------------------------------------------
# pure-jnp reference replicating the PyTorch module semantics
# ---------------------------------------------------------------------------
def reference_forward(z, c, layers):
    B, D = z.shape
    ld = jnp.zeros((B,), jnp.float32)
    for i, lp in enumerate(layers):
        odd = (i % 2 != 0)
        # BatchNorm (affine=False, running stats)
        z = (z - lp['bn_mean']) / jnp.sqrt(lp['bn_var'] + EPS)
        ld = ld - 0.5 * jnp.sum(jnp.log(lp['bn_var'] + EPS))
        # squeeze
        if odd:
            z0, z1 = z[:, 1::2], z[:, 0::2]
        else:
            z0, z1 = z[:, 0::2], z[:, 1::2]
        # MLP([z1, c])
        x = jnp.concatenate([z1, c], axis=1)
        h = jnp.maximum(x @ lp['w1'] + lp['b1'], 0.0)
        h = jnp.maximum(h @ lp['w2'] + lp['b2'], 0.0)
        p = h @ lp['w3'] + lp['b3']
        out_chs = z0.shape[1]
        t = p[:, :out_chs]
        s = jnp.tanh(p[:, out_chs:]) * lp['s_log_scale'][0, 0] + lp['s_bias'][0, 0]
        z0 = z0 * jnp.exp(s) + t
        ld = ld + jnp.sum(s, axis=1)
        # unsqueeze
        z_new = jnp.zeros_like(z)
        if odd:
            z_new = z_new.at[:, 1::2].set(z0).at[:, 0::2].set(z1)
        else:
            z_new = z_new.at[:, 0::2].set(z0).at[:, 1::2].set(z1)
        z = z_new
    return z, ld


def init_params(key, in_dim, c_dim, n_layers, hidden=HIDDEN):
    assert in_dim % 2 == 0
    in_chs = in_dim // 2
    out_chs = in_dim - in_chs
    layers = []
    for _ in range(n_layers):
        key, *ks = jax.random.split(key, 11)
        layers.append(dict(
            bn_mean=jax.random.normal(ks[8], (in_dim,), jnp.float32) * 0.1,
            bn_var=jnp.exp(jax.random.normal(ks[9], (in_dim,), jnp.float32) * 0.1),
            w1=jax.random.normal(ks[0], (in_chs + c_dim, hidden), jnp.float32) * 0.1,
            b1=jax.random.normal(ks[1], (hidden,), jnp.float32) * 0.01,
            w2=jax.random.normal(ks[2], (hidden, hidden), jnp.float32) * 0.1,
            b2=jax.random.normal(ks[3], (hidden,), jnp.float32) * 0.01,
            w3=jax.random.normal(ks[4], (hidden, out_chs * 2), jnp.float32) * 0.1,
            b3=jax.random.normal(ks[5], (out_chs * 2,), jnp.float32) * 0.01,
            s_log_scale=jax.random.normal(ks[6], (1, 1), jnp.float32) * 0.01,
            s_bias=jax.random.normal(ks[7], (1, 1), jnp.float32) * 0.01,
        ))
    return layers


if __name__ == "__main__":
    B, IN_DIM, C_DIM, N_LAYERS = 256, 8, 4, 4

    key = jax.random.PRNGKey(0)
    kz, kc, kp = jax.random.split(key, 3)
    z = jax.random.normal(kz, (B, IN_DIM), jnp.float32)
    c = jax.random.normal(kc, (B, C_DIM), jnp.float32)
    layers = init_params(kp, IN_DIM, C_DIM, N_LAYERS)

    # exercises the multi-tile (2 x 128) batch grid with all layers fused in-kernel
    z_out, log_df_dz = conditional_realnvp_forward(z, c, layers, block_b=128)
    jax.block_until_ready((z_out, log_df_dz))

    z_ref, ld_ref = reference_forward(z, c, layers)
    np.testing.assert_allclose(np.asarray(z_out), np.asarray(z_ref),
                               rtol=1e-4, atol=1e-4)
    np.testing.assert_allclose(np.asarray(log_df_dz), np.asarray(ld_ref),
                               rtol=1e-4, atol=1e-4)

    # exercise the batch-padding path (B=60 -> padded to 128 lanes, single tile)
    z_out2, ld2 = conditional_realnvp_forward(z[:60], c[:60], layers)
    jax.block_until_ready((z_out2, ld2))
    np.testing.assert_allclose(np.asarray(z_out2), np.asarray(z_ref[:60]),
                               rtol=1e-4, atol=1e-4)
    np.testing.assert_allclose(np.asarray(ld2), np.asarray(ld_ref[:60]),
                               rtol=1e-4, atol=1e-4)

    print("KERNEL_OK")
</pallas_src>

<mosaic_0001>
module attributes {stable_mosaic.version = 11 : i64} {
  func.func @_fused_realnvp_kernel(%arg0: i32, %arg1: memref<1x1xf32, #tpu.memory_space<smem>>, %arg2: memref<8x128xf32, #tpu.memory_space<vmem>>, %arg3: memref<4x128xf32, #tpu.memory_space<vmem>>, %arg4: memref<4x8x1xf32, #tpu.memory_space<vmem>>, %arg5: memref<4x8x1xf32, #tpu.memory_space<vmem>>, %arg6: memref<4x32x8xf32, #tpu.memory_space<vmem>>, %arg7: memref<4x32x4xf32, #tpu.memory_space<vmem>>, %arg8: memref<4x32x1xf32, #tpu.memory_space<vmem>>, %arg9: memref<4x32x32xf32, #tpu.memory_space<vmem>>, %arg10: memref<4x32x1xf32, #tpu.memory_space<vmem>>, %arg11: memref<4x16x32xf32, #tpu.memory_space<vmem>>, %arg12: memref<4x16x1xf32, #tpu.memory_space<vmem>>, %arg13: memref<4x8x1xf32, #tpu.memory_space<vmem>>, %arg14: memref<4x8x1xf32, #tpu.memory_space<vmem>>, %arg15: memref<8x128xf32, #tpu.memory_space<vmem>>, %arg16: memref<1x128xf32, #tpu.memory_space<vmem>>) attributes {dimension_semantics = [#tpu.dimension_semantics<parallel>], iteration_bounds = array<i64: 2>, scalar_prefetch = 0 : i64, scratch_operands = 0 : i64, tpu.core_type = #tpu.core_type<tc>, window_params = [{transform_indices = @transform_0, window_bounds = array<i64: 1, 1>}, {transform_indices = @transform_1, window_bounds = array<i64: 8, 128>}, {transform_indices = @transform_2, window_bounds = array<i64: 4, 128>}, {pipeline_mode = #tpu.pipeline_mode<synchronous>, transform_indices = @transform_3, window_bounds = array<i64: 4, 8, 1>}, {pipeline_mode = #tpu.pipeline_mode<synchronous>, transform_indices = @transform_4, window_bounds = array<i64: 4, 8, 1>}, {pipeline_mode = #tpu.pipeline_mode<synchronous>, transform_indices = @transform_5, window_bounds = array<i64: 4, 32, 8>}, {pipeline_mode = #tpu.pipeline_mode<synchronous>, transform_indices = @transform_6, window_bounds = array<i64: 4, 32, 4>}, {pipeline_mode = #tpu.pipeline_mode<synchronous>, transform_indices = @transform_7, window_bounds = array<i64: 4, 32, 1>}, {pipeline_mode = #tpu.pipeline_mode<synchronous>, transform_indices = @transform_8, window_bounds = array<i64: 4, 32, 32>}, {pipeline_mode = #tpu.pipeline_mode<synchronous>, transform_indices = @transform_9, window_bounds = array<i64: 4, 32, 1>}, {pipeline_mode = #tpu.pipeline_mode<synchronous>, transform_indices = @transform_10, window_bounds = array<i64: 4, 16, 32>}, {pipeline_mode = #tpu.pipeline_mode<synchronous>, transform_indices = @transform_11, window_bounds = array<i64: 4, 16, 1>}, {pipeline_mode = #tpu.pipeline_mode<synchronous>, transform_indices = @transform_12, window_bounds = array<i64: 4, 8, 1>}, {pipeline_mode = #tpu.pipeline_mode<synchronous>, transform_indices = @transform_13, window_bounds = array<i64: 4, 8, 1>}, {transform_indices = @transform_14, window_bounds = array<i64: 8, 128>}, {transform_indices = @transform_15, window_bounds = array<i64: 1, 128>}]} {
    %c0 = arith.constant 0 : index
    %c0_0 = arith.constant 0 : index
    %0 = vector.load %arg2[%c0, %c0_0] : memref<8x128xf32, #tpu.memory_space<vmem>>, vector<8x128xf32>
    %c0_1 = arith.constant 0 : index
    %c0_2 = arith.constant 0 : index
    %1 = vector.load %arg3[%c0_1, %c0_2] : memref<4x128xf32, #tpu.memory_space<vmem>>, vector<4x128xf32>
    %c0_3 = arith.constant 0 : index
    %c0_4 = arith.constant 0 : index
    %2 = memref.load %arg1[%c0_3, %c0_4] : memref<1x1xf32, #tpu.memory_space<smem>>
    %3 = vector.broadcast %2 : f32 to vector<1x128xf32>
    %c0_5 = arith.constant 0 : index
    %c0_6 = arith.constant 0 : index
    %c0_7 = arith.constant 0 : index
    %4 = vector.load %arg4[%c0_5, %c0_6, %c0_7] : memref<4x8x1xf32, #tpu.memory_space<vmem>>, vector<1x8x1xf32>
    %5 = vector.shape_cast %4 : vector<1x8x1xf32> to vector<8x1xf32>
    %6 = vector.broadcast %5 : vector<8x1xf32> to vector<8x128xf32>
    %7 = arith.mulf %0, %6 : vector<8x128xf32>
    %c0_8 = arith.constant 0 : index
    %c0_9 = arith.constant 0 : index
    %c0_10 = arith.constant 0 : index
    %8 = vector.load %arg5[%c0_8, %c0_9, %c0_10] : memref<4x8x1xf32, #tpu.memory_space<vmem>>, vector<1x8x1xf32>
    %9 = vector.shape_cast %8 : vector<1x8x1xf32> to vector<8x1xf32>
    %10 = vector.broadcast %9 : vector<8x1xf32> to vector<8x128xf32>
    %11 = arith.addf %7, %10 : vector<8x128xf32>
    %c0_11 = arith.constant 0 : index
    %c0_12 = arith.constant 0 : index
    %c0_13 = arith.constant 0 : index
    %12 = vector.load %arg6[%c0_11, %c0_12, %c0_13] : memref<4x32x8xf32, #tpu.memory_space<vmem>>, vector<1x32x8xf32>
    %13 = vector.shape_cast %12 : vector<1x32x8xf32> to vector<32x8xf32>
    %cst = arith.constant dense<0.000000e+00> : vector<32x128xf32>
    %14 = tpu.matmul %13, %11, %cst {dimension_numbers = #tpu.dot_dimension_numbers<[1], [0], [0], [1], [0, 0, 1, 1], [], []>} : vector<32x8xf32>, vector<8x128xf32>, vector<32x128xf32> -> vector<32x128xf32>
    %c0_14 = arith.constant 0 : index
    %c0_15 = arith.constant 0 : index
    %c0_16 = arith.constant 0 : index
    %15 = vector.load %arg7[%c0_14, %c0_15, %c0_16] : memref<4x32x4xf32, #tpu.memory_space<vmem>>, vector<1x32x4xf32>
    %16 = vector.shape_cast %15 : vector<1x32x4xf32> to vector<32x4xf32>
    %cst_17 = arith.constant dense<0.000000e+00> : vector<32x128xf32>
    %17 = tpu.matmul %16, %1, %cst_17 {dimension_numbers = #tpu.dot_dimension_numbers<[1], [0], [0], [1], [0, 0, 1, 1], [], []>} : vector<32x4xf32>, vector<4x128xf32>, vector<32x128xf32> -> vector<32x128xf32>
    %18 = arith.addf %14, %17 : vector<32x128xf32>
    %c0_18 = arith.constant 0 : index
    %c0_19 = arith.constant 0 : index
    %c0_20 = arith.constant 0 : index
    %19 = vector.load %arg8[%c0_18, %c0_19, %c0_20] : memref<4x32x1xf32, #tpu.memory_space<vmem>>, vector<1x32x1xf32>
    %20 = vector.shape_cast %19 : vector<1x32x1xf32> to vector<32x1xf32>
    %21 = vector.broadcast %20 : vector<32x1xf32> to vector<32x128xf32>
    %22 = arith.addf %18, %21 : vector<32x128xf32>
    %cst_21 = arith.constant 0.000000e+00 : f32
    %23 = vector.broadcast %cst_21 : f32 to vector<32x128xf32>
    %24 = arith.maximumf %22, %23 : vector<32x128xf32>
    %c0_22 = arith.constant 0 : index
    %c0_23 = arith.constant 0 : index
    %c0_24 = arith.constant 0 : index
    %25 = vector.load %arg9[%c0_22, %c0_23, %c0_24] : memref<4x32x32xf32, #tpu.memory_space<vmem>>, vector<1x32x32xf32>
    %26 = vector.shape_cast %25 : vector<1x32x32xf32> to vector<32x32xf32>
    %cst_25 = arith.constant dense<0.000000e+00> : vector<32x128xf32>
    %27 = tpu.matmul %26, %24, %cst_25 {dimension_numbers = #tpu.dot_dimension_numbers<[1], [0], [0], [1], [0, 0, 1, 1], [], []>} : vector<32x32xf32>, vector<32x128xf32>, vector<32x128xf32> -> vector<32x128xf32>
    %c0_26 = arith.constant 0 : index
    %c0_27 = arith.constant 0 : index
    %c0_28 = arith.constant 0 : index
    %28 = vector.load %arg10[%c0_26, %c0_27, %c0_28] : memref<4x32x1xf32, #tpu.memory_space<vmem>>, vector<1x32x1xf32>
    %29 = vector.shape_cast %28 : vector<1x32x1xf32> to vector<32x1xf32>
    %30 = vector.broadcast %29 : vector<32x1xf32> to vector<32x128xf32>
    %31 = arith.addf %27, %30 : vector<32x128xf32>
    %cst_29 = arith.constant 0.000000e+00 : f32
    %32 = vector.broadcast %cst_29 : f32 to vector<32x128xf32>
    %33 = arith.maximumf %31, %32 : vector<32x128xf32>
    %c0_30 = arith.constant 0 : index
    %c0_31 = arith.constant 0 : index
    %c0_32 = arith.constant 0 : index
    %34 = vector.load %arg11[%c0_30, %c0_31, %c0_32] : memref<4x16x32xf32, #tpu.memory_space<vmem>>, vector<1x16x32xf32>
    %35 = vector.shape_cast %34 : vector<1x16x32xf32> to vector<16x32xf32>
    %cst_33 = arith.constant dense<0.000000e+00> : vector<16x128xf32>
    %36 = tpu.matmul %35, %33, %cst_33 {dimension_numbers = #tpu.dot_dimension_numbers<[1], [0], [0], [1], [0, 0, 1, 1], [], []>} : vector<16x32xf32>, vector<32x128xf32>, vector<16x128xf32> -> vector<16x128xf32>
    %c0_34 = arith.constant 0 : index
    %c0_35 = arith.constant 0 : index
    %c0_36 = arith.constant 0 : index
    %37 = vector.load %arg12[%c0_34, %c0_35, %c0_36] : memref<4x16x1xf32, #tpu.memory_space<vmem>>, vector<1x16x1xf32>
    %38 = vector.shape_cast %37 : vector<1x16x1xf32> to vector<16x1xf32>
    %39 = vector.broadcast %38 : vector<16x1xf32> to vector<16x128xf32>
    %40 = arith.addf %36, %39 : vector<16x128xf32>
    %41 = vector.extract_strided_slice %40 {offsets = [0, 0], sizes = [8, 128], strides = [1, 1]} : vector<16x128xf32> to vector<8x128xf32>
    %42 = vector.extract_strided_slice %40 {offsets = [8, 0], sizes = [8, 128], strides = [1, 1]} : vector<16x128xf32> to vector<8x128xf32>
    %43 = math.tanh %42 : vector<8x128xf32>
    %c0_37 = arith.constant 0 : index
    %c0_38 = arith.constant 0 : index
    %c0_39 = arith.constant 0 : index
    %44 = vector.load %arg13[%c0_37, %c0_38, %c0_39] : memref<4x8x1xf32, #tpu.memory_space<vmem>>, vector<1x8x1xf32>
    %45 = vector.shape_cast %44 : vector<1x8x1xf32> to vector<8x1xf32>
    %46 = vector.broadcast %45 : vector<8x1xf32> to vector<8x128xf32>
    %47 = arith.mulf %43, %46 : vector<8x128xf32>
    %c0_40 = arith.constant 0 : index
    %c0_41 = arith.constant 0 : index
    %c0_42 = arith.constant 0 : index
    %48 = vector.load %arg14[%c0_40, %c0_41, %c0_42] : memref<4x8x1xf32, #tpu.memory_space<vmem>>, vector<1x8x1xf32>
    %49 = vector.shape_cast %48 : vector<1x8x1xf32> to vector<8x1xf32>
    %50 = vector.broadcast %49 : vector<8x1xf32> to vector<8x128xf32>
    %51 = arith.addf %47, %50 : vector<8x128xf32>
    %52 = math.exp %51 : vector<8x128xf32>
    %53 = arith.mulf %11, %52 : vector<8x128xf32>
    %54 = arith.addf %53, %41 : vector<8x128xf32>
    %cst_43 = arith.constant dense<0.000000e+00> : vector<128xf32>
    %55 = vector.multi_reduction <add>, %51, %cst_43 [0] : vector<8x128xf32> to vector<128xf32>
    %56 = vector.shape_cast %55 : vector<128xf32> to vector<1x128xf32>
    %57 = arith.addf %3, %56 : vector<1x128xf32>
    %c1 = arith.constant 1 : index
    %c0_44 = arith.constant 0 : index
    %c0_45 = arith.constant 0 : index
    %58 = vector.load %arg4[%c1, %c0_44, %c0_45] : memref<4x8x1xf32, #tpu.memory_space<vmem>>, vector<1x8x1xf32>
    %59 = vector.shape_cast %58 : vector<1x8x1xf32> to vector<8x1xf32>
    %60 = vector.broadcast %59 : vector<8x1xf32> to vector<8x128xf32>
    %61 = arith.mulf %54, %60 : vector<8x128xf32>
    %c1_46 = arith.constant 1 : index
    %c0_47 = arith.constant 0 : index
    %c0_48 = arith.constant 0 : index
    %62 = vector.load %arg5[%c1_46, %c0_47, %c0_48] : memref<4x8x1xf32, #tpu.memory_space<vmem>>, vector<1x8x1xf32>
    %63 = vector.shape_cast %62 : vector<1x8x1xf32> to vector<8x1xf32>
    %64 = vector.broadcast %63 : vector<8x1xf32> to vector<8x128xf32>
    %65 = arith.addf %61, %64 : vector<8x128xf32>
    %c1_49 = arith.constant 1 : index
    %c0_50 = arith.constant 0 : index
    %c0_51 = arith.constant 0 : index
    %66 = vector.load %arg6[%c1_49, %c0_50, %c0_51] : memref<4x32x8xf32, #tpu.memory_space<vmem>>, vector<1x32x8xf32>
    %67 = vector.shape_cast %66 : vector<1x32x8xf32> to vector<32x8xf32>
    %cst_52 = arith.constant dense<0.000000e+00> : vector<32x128xf32>
    %68 = tpu.matmul %67, %65, %cst_52 {dimension_numbers = #tpu.dot_dimension_numbers<[1], [0], [0], [1], [0, 0, 1, 1], [], []>} : vector<32x8xf32>, vector<8x128xf32>, vector<32x128xf32> -> vector<32x128xf32>
    %c1_53 = arith.constant 1 : index
    %c0_54 = arith.constant 0 : index
    %c0_55 = arith.constant 0 : index
    %69 = vector.load %arg7[%c1_53, %c0_54, %c0_55] : memref<4x32x4xf32, #tpu.memory_space<vmem>>, vector<1x32x4xf32>
    %70 = vector.shape_cast %69 : vector<1x32x4xf32> to vector<32x4xf32>
    %cst_56 = arith.constant dense<0.000000e+00> : vector<32x128xf32>
    %71 = tpu.matmul %70, %1, %cst_56 {dimension_numbers = #tpu.dot_dimension_numbers<[1], [0], [0], [1], [0, 0, 1, 1], [], []>} : vector<32x4xf32>, vector<4x128xf32>, vector<32x128xf32> -> vector<32x128xf32>
    %72 = arith.addf %68, %71 : vector<32x128xf32>
    %c1_57 = arith.constant 1 : index
    %c0_58 = arith.constant 0 : index
    %c0_59 = arith.constant 0 : index
    %73 = vector.load %arg8[%c1_57, %c0_58, %c0_59] : memref<4x32x1xf32, #tpu.memory_space<vmem>>, vector<1x32x1xf32>
    %74 = vector.shape_cast %73 : vector<1x32x1xf32> to vector<32x1xf32>
    %75 = vector.broadcast %74 : vector<32x1xf32> to vector<32x128xf32>
    %76 = arith.addf %72, %75 : vector<32x128xf32>
    %cst_60 = arith.constant 0.000000e+00 : f32
    %77 = vector.broadcast %cst_60 : f32 to vector<32x128xf32>
    %78 = arith.maximumf %76, %77 : vector<32x128xf32>
    %c1_61 = arith.constant 1 : index
    %c0_62 = arith.constant 0 : index
    %c0_63 = arith.constant 0 : index
    %79 = vector.load %arg9[%c1_61, %c0_62, %c0_63] : memref<4x32x32xf32, #tpu.memory_space<vmem>>, vector<1x32x32xf32>
    %80 = vector.shape_cast %79 : vector<1x32x32xf32> to vector<32x32xf32>
    %cst_64 = arith.constant dense<0.000000e+00> : vector<32x128xf32>
    %81 = tpu.matmul %80, %78, %cst_64 {dimension_numbers = #tpu.dot_dimension_numbers<[1], [0], [0], [1], [0, 0, 1, 1], [], []>} : vector<32x32xf32>, vector<32x128xf32>, vector<32x128xf32> -> vector<32x128xf32>
    %c1_65 = arith.constant 1 : index
    %c0_66 = arith.constant 0 : index
    %c0_67 = arith.constant 0 : index
    %82 = vector.load %arg10[%c1_65, %c0_66, %c0_67] : memref<4x32x1xf32, #tpu.memory_space<vmem>>, vector<1x32x1xf32>
    %83 = vector.shape_cast %82 : vector<1x32x1xf32> to vector<32x1xf32>
    %84 = vector.broadcast %83 : vector<32x1xf32> to vector<32x128xf32>
    %85 = arith.addf %81, %84 : vector<32x128xf32>
    %cst_68 = arith.constant 0.000000e+00 : f32
    %86 = vector.broadcast %cst_68 : f32 to vector<32x128xf32>
    %87 = arith.maximumf %85, %86 : vector<32x128xf32>
    %c1_69 = arith.constant 1 : index
    %c0_70 = arith.constant 0 : index
    %c0_71 = arith.constant 0 : index
    %88 = vector.load %arg11[%c1_69, %c0_70, %c0_71] : memref<4x16x32xf32, #tpu.memory_space<vmem>>, vector<1x16x32xf32>
    %89 = vector.shape_cast %88 : vector<1x16x32xf32> to vector<16x32xf32>
    %cst_72 = arith.constant dense<0.000000e+00> : vector<16x128xf32>
    %90 = tpu.matmul %89, %87, %cst_72 {dimension_numbers = #tpu.dot_dimension_numbers<[1], [0], [0], [1], [0, 0, 1, 1], [], []>} : vector<16x32xf32>, vector<32x128xf32>, vector<16x128xf32> -> vector<16x128xf32>
    %c1_73 = arith.constant 1 : index
    %c0_74 = arith.constant 0 : index
    %c0_75 = arith.constant 0 : index
    %91 = vector.load %arg12[%c1_73, %c0_74, %c0_75] : memref<4x16x1xf32, #tpu.memory_space<vmem>>, vector<1x16x1xf32>
    %92 = vector.shape_cast %91 : vector<1x16x1xf32> to vector<16x1xf32>
    %93 = vector.broadcast %92 : vector<16x1xf32> to vector<16x128xf32>
    %94 = arith.addf %90, %93 : vector<16x128xf32>
    %95 = vector.extract_strided_slice %94 {offsets = [0, 0], sizes = [8, 128], strides = [1, 1]} : vector<16x128xf32> to vector<8x128xf32>
    %96 = vector.extract_strided_slice %94 {offsets = [8, 0], sizes = [8, 128], strides = [1, 1]} : vector<16x128xf32> to vector<8x128xf32>
    %97 = math.tanh %96 : vector<8x128xf32>
    %c1_76 = arith.constant 1 : index
    %c0_77 = arith.constant 0 : index
    %c0_78 = arith.constant 0 : index
    %98 = vector.load %arg13[%c1_76, %c0_77, %c0_78] : memref<4x8x1xf32, #tpu.memory_space<vmem>>, vector<1x8x1xf32>
    %99 = vector.shape_cast %98 : vector<1x8x1xf32> to vector<8x1xf32>
    %100 = vector.broadcast %99 : vector<8x1xf32> to vector<8x128xf32>
    %101 = arith.mulf %97, %100 : vector<8x128xf32>
    %c1_79 = arith.constant 1 : index
    %c0_80 = arith.constant 0 : index
    %c0_81 = arith.constant 0 : index
    %102 = vector.load %arg14[%c1_79, %c0_80, %c0_81] : memref<4x8x1xf32, #tpu.memory_space<vmem>>, vector<1x8x1xf32>
    %103 = vector.shape_cast %102 : vector<1x8x1xf32> to vector<8x1xf32>
    %104 = vector.broadcast %103 : vector<8x1xf32> to vector<8x128xf32>
    %105 = arith.addf %101, %104 : vector<8x128xf32>
    %106 = math.exp %105 : vector<8x128xf32>
    %107 = arith.mulf %65, %106 : vector<8x128xf32>
    %108 = arith.addf %107, %95 : vector<8x128xf32>
    %cst_82 = arith.constant dense<0.000000e+00> : vector<128xf32>
    %109 = vector.multi_reduction <add>, %105, %cst_82 [0] : vector<8x128xf32> to vector<128xf32>
    %110 = vector.shape_cast %109 : vector<128xf32> to vector<1x128xf32>
    %111 = arith.addf %57, %110 : vector<1x128xf32>
    %c2 = arith.constant 2 : index
    %c0_83 = arith.constant 0 : index
    %c0_84 = arith.constant 0 : index
    %112 = vector.load %arg4[%c2, %c0_83, %c0_84] : memref<4x8x1xf32, #tpu.memory_space<vmem>>, vector<1x8x1xf32>
    %113 = vector.shape_cast %112 : vector<1x8x1xf32> to vector<8x1xf32>
    %114 = vector.broadcast %113 : vector<8x1xf32> to vector<8x128xf32>
    %115 = arith.mulf %108, %114 : vector<8x128xf32>
    %c2_85 = arith.constant 2 : index
    %c0_86 = arith.constant 0 : index
    %c0_87 = arith.constant 0 : index
    %116 = vector.load %arg5[%c2_85, %c0_86, %c0_87] : memref<4x8x1xf32, #tpu.memory_space<vmem>>, vector<1x8x1xf32>
    %117 = vector.shape_cast %116 : vector<1x8x1xf32> to vector<8x1xf32>
    %118 = vector.broadcast %117 : vector<8x1xf32> to vector<8x128xf32>
    %119 = arith.addf %115, %118 : vector<8x128xf32>
    %c2_88 = arith.constant 2 : index
    %c0_89 = arith.constant 0 : index
    %c0_90 = arith.constant 0 : index
    %120 = vector.load %arg6[%c2_88, %c0_89, %c0_90] : memref<4x32x8xf32, #tpu.memory_space<vmem>>, vector<1x32x8xf32>
    %121 = vector.shape_cast %120 : vector<1x32x8xf32> to vector<32x8xf32>
    %cst_91 = arith.constant dense<0.000000e+00> : vector<32x128xf32>
    %122 = tpu.matmul %121, %119, %cst_91 {dimension_numbers = #tpu.dot_dimension_numbers<[1], [0], [0], [1], [0, 0, 1, 1], [], []>} : vector<32x8xf32>, vector<8x128xf32>, vector<32x128xf32> -> vector<32x128xf32>
    %c2_92 = arith.constant 2 : index
    %c0_93 = arith.constant 0 : index
    %c0_94 = arith.constant 0 : index
    %123 = vector.load %arg7[%c2_92, %c0_93, %c0_94] : memref<4x32x4xf32, #tpu.memory_space<vmem>>, vector<1x32x4xf32>
    %124 = vector.shape_cast %123 : vector<1x32x4xf32> to vector<32x4xf32>
    %cst_95 = arith.constant dense<0.000000e+00> : vector<32x128xf32>
    %125 = tpu.matmul %124, %1, %cst_95 {dimension_numbers = #tpu.dot_dimension_numbers<[1], [0], [0], [1], [0, 0, 1, 1], [], []>} : vector<32x4xf32>, vector<4x128xf32>, vector<32x128xf32> -> vector<32x128xf32>
    %126 = arith.addf %122, %125 : vector<32x128xf32>
    %c2_96 = arith.constant 2 : index
    %c0_97 = arith.constant 0 : index
    %c0_98 = arith.constant 0 : index
    %127 = vector.load %arg8[%c2_96, %c0_97, %c0_98] : memref<4x32x1xf32, #tpu.memory_space<vmem>>, vector<1x32x1xf32>
    %128 = vector.shape_cast %127 : vector<1x32x1xf32> to vector<32x1xf32>
    %129 = vector.broadcast %128 : vector<32x1xf32> to vector<32x128xf32>
    %130 = arith.addf %126, %129 : vector<32x128xf32>
    %cst_99 = arith.constant 0.000000e+00 : f32
    %131 = vector.broadcast %cst_99 : f32 to vector<32x128xf32>
    %132 = arith.maximumf %130, %131 : vector<32x128xf32>
    %c2_100 = arith.constant 2 : index
    %c0_101 = arith.constant 0 : index
    %c0_102 = arith.constant 0 : index
    %133 = vector.load %arg9[%c2_100, %c0_101, %c0_102] : memref<4x32x32xf32, #tpu.memory_space<vmem>>, vector<1x32x32xf32>
    %134 = vector.shape_cast %133 : vector<1x32x32xf32> to vector<32x32xf32>
    %cst_103 = arith.constant dense<0.000000e+00> : vector<32x128xf32>
    %135 = tpu.matmul %134, %132, %cst_103 {dimension_numbers = #tpu.dot_dimension_numbers<[1], [0], [0], [1], [0, 0, 1, 1], [], []>} : vector<32x32xf32>, vector<32x128xf32>, vector<32x128xf32> -> vector<32x128xf32>
    %c2_104 = arith.constant 2 : index
    %c0_105 = arith.constant 0 : index
    %c0_106 = arith.constant 0 : index
    %136 = vector.load %arg10[%c2_104, %c0_105, %c0_106] : memref<4x32x1xf32, #tpu.memory_space<vmem>>, vector<1x32x1xf32>
    %137 = vector.shape_cast %136 : vector<1x32x1xf32> to vector<32x1xf32>
    %138 = vector.broadcast %137 : vector<32x1xf32> to vector<32x128xf32>
    %139 = arith.addf %135, %138 : vector<32x128xf32>
    %cst_107 = arith.constant 0.000000e+00 : f32
    %140 = vector.broadcast %cst_107 : f32 to vector<32x128xf32>
    %141 = arith.maximumf %139, %140 : vector<32x128xf32>
    %c2_108 = arith.constant 2 : index
    %c0_109 = arith.constant 0 : index
    %c0_110 = arith.constant 0 : index
    %142 = vector.load %arg11[%c2_108, %c0_109, %c0_110] : memref<4x16x32xf32, #tpu.memory_space<vmem>>, vector<1x16x32xf32>
    %143 = vector.shape_cast %142 : vector<1x16x32xf32> to vector<16x32xf32>
    %cst_111 = arith.constant dense<0.000000e+00> : vector<16x128xf32>
    %144 = tpu.matmul %143, %141, %cst_111 {dimension_numbers = #tpu.dot_dimension_numbers<[1], [0], [0], [1], [0, 0, 1, 1], [], []>} : vector<16x32xf32>, vector<32x128xf32>, vector<16x128xf32> -> vector<16x128xf32>
    %c2_112 = arith.constant 2 : index
    %c0_113 = arith.constant 0 : index
    %c0_114 = arith.constant 0 : index
    %145 = vector.load %arg12[%c2_112, %c0_113, %c0_114] : memref<4x16x1xf32, #tpu.memory_space<vmem>>, vector<1x16x1xf32>
    %146 = vector.shape_cast %145 : vector<1x16x1xf32> to vector<16x1xf32>
    %147 = vector.broadcast %146 : vector<16x1xf32> to vector<16x128xf32>
    %148 = arith.addf %144, %147 : vector<16x128xf32>
    %149 = vector.extract_strided_slice %148 {offsets = [0, 0], sizes = [8, 128], strides = [1, 1]} : vector<16x128xf32> to vector<8x128xf32>
    %150 = vector.extract_strided_slice %148 {offsets = [8, 0], sizes = [8, 128], strides = [1, 1]} : vector<16x128xf32> to vector<8x128xf32>
    %151 = math.tanh %150 : vector<8x128xf32>
    %c2_115 = arith.constant 2 : index
    %c0_116 = arith.constant 0 : index
    %c0_117 = arith.constant 0 : index
    %152 = vector.load %arg13[%c2_115, %c0_116, %c0_117] : memref<4x8x1xf32, #tpu.memory_space<vmem>>, vector<1x8x1xf32>
    %153 = vector.shape_cast %152 : vector<1x8x1xf32> to vector<8x1xf32>
    %154 = vector.broadcast %153 : vector<8x1xf32> to vector<8x128xf32>
    %155 = arith.mulf %151, %154 : vector<8x128xf32>
    %c2_118 = arith.constant 2 : index
    %c0_119 = arith.constant 0 : index
    %c0_120 = arith.constant 0 : index
    %156 = vector.load %arg14[%c2_118, %c0_119, %c0_120] : memref<4x8x1xf32, #tpu.memory_space<vmem>>, vector<1x8x1xf32>
    %157 = vector.shape_cast %156 : vector<1x8x1xf32> to vector<8x1xf32>
    %158 = vector.broadcast %157 : vector<8x1xf32> to vector<8x128xf32>
    %159 = arith.addf %155, %158 : vector<8x128xf32>
    %160 = math.exp %159 : vector<8x128xf32>
    %161 = arith.mulf %119, %160 : vector<8x128xf32>
    %162 = arith.addf %161, %149 : vector<8x128xf32>
    %cst_121 = arith.constant dense<0.000000e+00> : vector<128xf32>
    %163 = vector.multi_reduction <add>, %159, %cst_121 [0] : vector<8x128xf32> to vector<128xf32>
    %164 = vector.shape_cast %163 : vector<128xf32> to vector<1x128xf32>
    %165 = arith.addf %111, %164 : vector<1x128xf32>
    %c3 = arith.constant 3 : index
    %c0_122 = arith.constant 0 : index
    %c0_123 = arith.constant 0 : index
    %166 = vector.load %arg4[%c3, %c0_122, %c0_123] : memref<4x8x1xf32, #tpu.memory_space<vmem>>, vector<1x8x1xf32>
    %167 = vector.shape_cast %166 : vector<1x8x1xf32> to vector<8x1xf32>
    %168 = vector.broadcast %167 : vector<8x1xf32> to vector<8x128xf32>
    %169 = arith.mulf %162, %168 : vector<8x128xf32>
    %c3_124 = arith.constant 3 : index
    %c0_125 = arith.constant 0 : index
    %c0_126 = arith.constant 0 : index
    %170 = vector.load %arg5[%c3_124, %c0_125, %c0_126] : memref<4x8x1xf32, #tpu.memory_space<vmem>>, vector<1x8x1xf32>
    %171 = vector.shape_cast %170 : vector<1x8x1xf32> to vector<8x1xf32>
    %172 = vector.broadcast %171 : vector<8x1xf32> to vector<8x128xf32>
    %173 = arith.addf %169, %172 : vector<8x128xf32>
    %c3_127 = arith.constant 3 : index
    %c0_128 = arith.constant 0 : index
    %c0_129 = arith.constant 0 : index
    %174 = vector.load %arg6[%c3_127, %c0_128, %c0_129] : memref<4x32x8xf32, #tpu.memory_space<vmem>>, vector<1x32x8xf32>
    %175 = vector.shape_cast %174 : vector<1x32x8xf32> to vector<32x8xf32>
    %cst_130 = arith.constant dense<0.000000e+00> : vector<32x128xf32>
    %176 = tpu.matmul %175, %173, %cst_130 {dimension_numbers = #tpu.dot_dimension_numbers<[1], [0], [0], [1], [0, 0, 1, 1], [], []>} : vector<32x8xf32>, vector<8x128xf32>, vector<32x128xf32> -> vector<32x128xf32>
    %c3_131 = arith.constant 3 : index
    %c0_132 = arith.constant 0 : index
    %c0_133 = arith.constant 0 : index
    %177 = vector.load %arg7[%c3_131, %c0_132, %c0_133] : memref<4x32x4xf32, #tpu.memory_space<vmem>>, vector<1x32x4xf32>
    %178 = vector.shape_cast %177 : vector<1x32x4xf32> to vector<32x4xf32>
    %cst_134 = arith.constant dense<0.000000e+00> : vector<32x128xf32>
    %179 = tpu.matmul %178, %1, %cst_134 {dimension_numbers = #tpu.dot_dimension_numbers<[1], [0], [0], [1], [0, 0, 1, 1], [], []>} : vector<32x4xf32>, vector<4x128xf32>, vector<32x128xf32> -> vector<32x128xf32>
    %180 = arith.addf %176, %179 : vector<32x128xf32>
    %c3_135 = arith.constant 3 : index
    %c0_136 = arith.constant 0 : index
    %c0_137 = arith.constant 0 : index
    %181 = vector.load %arg8[%c3_135, %c0_136, %c0_137] : memref<4x32x1xf32, #tpu.memory_space<vmem>>, vector<1x32x1xf32>
    %182 = vector.shape_cast %181 : vector<1x32x1xf32> to vector<32x1xf32>
    %183 = vector.broadcast %182 : vector<32x1xf32> to vector<32x128xf32>
    %184 = arith.addf %180, %183 : vector<32x128xf32>
    %cst_138 = arith.constant 0.000000e+00 : f32
    %185 = vector.broadcast %cst_138 : f32 to vector<32x128xf32>
    %186 = arith.maximumf %184, %185 : vector<32x128xf32>
    %c3_139 = arith.constant 3 : index
    %c0_140 = arith.constant 0 : index
    %c0_141 = arith.constant 0 : index
    %187 = vector.load %arg9[%c3_139, %c0_140, %c0_141] : memref<4x32x32xf32, #tpu.memory_space<vmem>>, vector<1x32x32xf32>
    %188 = vector.shape_cast %187 : vector<1x32x32xf32> to vector<32x32xf32>
    %cst_142 = arith.constant dense<0.000000e+00> : vector<32x128xf32>
    %189 = tpu.matmul %188, %186, %cst_142 {dimension_numbers = #tpu.dot_dimension_numbers<[1], [0], [0], [1], [0, 0, 1, 1], [], []>} : vector<32x32xf32>, vector<32x128xf32>, vector<32x128xf32> -> vector<32x128xf32>
    %c3_143 = arith.constant 3 : index
    %c0_144 = arith.constant 0 : index
    %c0_145 = arith.constant 0 : index
    %190 = vector.load %arg10[%c3_143, %c0_144, %c0_145] : memref<4x32x1xf32, #tpu.memory_space<vmem>>, vector<1x32x1xf32>
    %191 = vector.shape_cast %190 : vector<1x32x1xf32> to vector<32x1xf32>
    %192 = vector.broadcast %191 : vector<32x1xf32> to vector<32x128xf32>
    %193 = arith.addf %189, %192 : vector<32x128xf32>
    %cst_146 = arith.constant 0.000000e+00 : f32
    %194 = vector.broadcast %cst_146 : f32 to vector<32x128xf32>
    %195 = arith.maximumf %193, %194 : vector<32x128xf32>
    %c3_147 = arith.constant 3 : index
    %c0_148 = arith.constant 0 : index
    %c0_149 = arith.constant 0 : index
    %196 = vector.load %arg11[%c3_147, %c0_148, %c0_149] : memref<4x16x32xf32, #tpu.memory_space<vmem>>, vector<1x16x32xf32>
    %197 = vector.shape_cast %196 : vector<1x16x32xf32> to vector<16x32xf32>
    %cst_150 = arith.constant dense<0.000000e+00> : vector<16x128xf32>
    %198 = tpu.matmul %197, %195, %cst_150 {dimension_numbers = #tpu.dot_dimension_numbers<[1], [0], [0], [1], [0, 0, 1, 1], [], []>} : vector<16x32xf32>, vector<32x128xf32>, vector<16x128xf32> -> vector<16x128xf32>
    %c3_151 = arith.constant 3 : index
    %c0_152 = arith.constant 0 : index
    %c0_153 = arith.constant 0 : index
    %199 = vector.load %arg12[%c3_151, %c0_152, %c0_153] : memref<4x16x1xf32, #tpu.memory_space<vmem>>, vector<1x16x1xf32>
    %200 = vector.shape_cast %199 : vector<1x16x1xf32> to vector<16x1xf32>
    %201 = vector.broadcast %200 : vector<16x1xf32> to vector<16x128xf32>
    %202 = arith.addf %198, %201 : vector<16x128xf32>
    %203 = vector.extract_strided_slice %202 {offsets = [0, 0], sizes = [8, 128], strides = [1, 1]} : vector<16x128xf32> to vector<8x128xf32>
    %204 = vector.extract_strided_slice %202 {offsets = [8, 0], sizes = [8, 128], strides = [1, 1]} : vector<16x128xf32> to vector<8x128xf32>
    %205 = math.tanh %204 : vector<8x128xf32>
    %c3_154 = arith.constant 3 : index
    %c0_155 = arith.constant 0 : index
    %c0_156 = arith.constant 0 : index
    %206 = vector.load %arg13[%c3_154, %c0_155, %c0_156] : memref<4x8x1xf32, #tpu.memory_space<vmem>>, vector<1x8x1xf32>
    %207 = vector.shape_cast %206 : vector<1x8x1xf32> to vector<8x1xf32>
    %208 = vector.broadcast %207 : vector<8x1xf32> to vector<8x128xf32>
    %209 = arith.mulf %205, %208 : vector<8x128xf32>
    %c3_157 = arith.constant 3 : index
    %c0_158 = arith.constant 0 : index
    %c0_159 = arith.constant 0 : index
    %210 = vector.load %arg14[%c3_157, %c0_158, %c0_159] : memref<4x8x1xf32, #tpu.memory_space<vmem>>, vector<1x8x1xf32>
    %211 = vector.shape_cast %210 : vector<1x8x1xf32> to vector<8x1xf32>
    %212 = vector.broadcast %211 : vector<8x1xf32> to vector<8x128xf32>
    %213 = arith.addf %209, %212 : vector<8x128xf32>
    %214 = math.exp %213 : vector<8x128xf32>
    %215 = arith.mulf %173, %214 : vector<8x128xf32>
    %216 = arith.addf %215, %203 : vector<8x128xf32>
    %cst_160 = arith.constant dense<0.000000e+00> : vector<128xf32>
    %217 = vector.multi_reduction <add>, %213, %cst_160 [0] : vector<8x128xf32> to vector<128xf32>
    %218 = vector.shape_cast %217 : vector<128xf32> to vector<1x128xf32>
    %219 = arith.addf %165, %218 : vector<1x128xf32>
    %c0_161 = arith.constant 0 : index
    %c0_162 = arith.constant 0 : index
    %220 = vector.load %arg15[%c0_161, %c0_162] : memref<8x128xf32, #tpu.memory_space<vmem>>, vector<8x128xf32>
    tpu.vector_store %arg15[%c0_161, %c0_162], %216 {strides = array<i32>} : memref<8x128xf32, #tpu.memory_space<vmem>>, vector<8x128xf32>,
    %c0_163 = arith.constant 0 : index
    %c0_164 = arith.constant 0 : index
    %221 = vector.load %arg16[%c0_163, %c0_164] : memref<1x128xf32, #tpu.memory_space<vmem>>, vector<1x128xf32>
    tpu.vector_store %arg16[%c0_163, %c0_164], %219 {strides = array<i32>} : memref<1x128xf32, #tpu.memory_space<vmem>>, vector<1x128xf32>,
    return
  }
  func.func @transform_0(%arg0: i32) -> (i32, i32) {
    %c0_i32 = arith.constant 0 : i32
    %c0_i32_0 = arith.constant 0 : i32
    %c0_i32_1 = arith.constant 0 : i32
    return %c0_i32, %c0_i32_0 : i32, i32
  }
  func.func @transform_1(%arg0: i32) -> (i32, i32) {
    %c0_i32 = arith.constant 0 : i32
    %c0_i32_0 = arith.constant 0 : i32
    return %c0_i32, %arg0 : i32, i32
  }
  func.func @transform_2(%arg0: i32) -> (i32, i32) {
    %c0_i32 = arith.constant 0 : i32
    %c0_i32_0 = arith.constant 0 : i32
    return %c0_i32, %arg0 : i32, i32
  }
  func.func @transform_3(%arg0: i32) -> (i32, i32, i32) {
    %c0_i32 = arith.constant 0 : i32
    %c0_i32_0 = arith.constant 0 : i32
    %c0_i32_1 = arith.constant 0 : i32
    %c0_i32_2 = arith.constant 0 : i32
    return %c0_i32, %c0_i32_0, %c0_i32_1 : i32, i32, i32
  }
  func.func @transform_4(%arg0: i32) -> (i32, i32, i32) {
    %c0_i32 = arith.constant 0 : i32
    %c0_i32_0 = arith.constant 0 : i32
    %c0_i32_1 = arith.constant 0 : i32
    %c0_i32_2 = arith.constant 0 : i32
    return %c0_i32, %c0_i32_0, %c0_i32_1 : i32, i32, i32
  }
  func.func @transform_5(%arg0: i32) -> (i32, i32, i32) {
    %c0_i32 = arith.constant 0 : i32
    %c0_i32_0 = arith.constant 0 : i32
    %c0_i32_1 = arith.constant 0 : i32
    %c0_i32_2 = arith.constant 0 : i32
    return %c0_i32, %c0_i32_0, %c0_i32_1 : i32, i32, i32
  }
  func.func @transform_6(%arg0: i32) -> (i32, i32, i32) {
    %c0_i32 = arith.constant 0 : i32
    %c0_i32_0 = arith.constant 0 : i32
    %c0_i32_1 = arith.constant 0 : i32
    %c0_i32_2 = arith.constant 0 : i32
    return %c0_i32, %c0_i32_0, %c0_i32_1 : i32, i32, i32
  }
  func.func @transform_7(%arg0: i32) -> (i32, i32, i32) {
    %c0_i32 = arith.constant 0 : i32
    %c0_i32_0 = arith.constant 0 : i32
    %c0_i32_1 = arith.constant 0 : i32
    %c0_i32_2 = arith.constant 0 : i32
    return %c0_i32, %c0_i32_0, %c0_i32_1 : i32, i32, i32
  }
  func.func @transform_8(%arg0: i32) -> (i32, i32, i32) {
    %c0_i32 = arith.constant 0 : i32
    %c0_i32_0 = arith.constant 0 : i32
    %c0_i32_1 = arith.constant 0 : i32
    %c0_i32_2 = arith.constant 0 : i32
    return %c0_i32, %c0_i32_0, %c0_i32_1 : i32, i32, i32
  }
  func.func @transform_9(%arg0: i32) -> (i32, i32, i32) {
    %c0_i32 = arith.constant 0 : i32
    %c0_i32_0 = arith.constant 0 : i32
    %c0_i32_1 = arith.constant 0 : i32
    %c0_i32_2 = arith.constant 0 : i32
    return %c0_i32, %c0_i32_0, %c0_i32_1 : i32, i32, i32
  }
  func.func @transform_10(%arg0: i32) -> (i32, i32, i32) {
    %c0_i32 = arith.constant 0 : i32
    %c0_i32_0 = arith.constant 0 : i32
    %c0_i32_1 = arith.constant 0 : i32
    %c0_i32_2 = arith.constant 0 : i32
    return %c0_i32, %c0_i32_0, %c0_i32_1 : i32, i32, i32
  }
  func.func @transform_11(%arg0: i32) -> (i32, i32, i32) {
    %c0_i32 = arith.constant 0 : i32
    %c0_i32_0 = arith.constant 0 : i32
    %c0_i32_1 = arith.constant 0 : i32
    %c0_i32_2 = arith.constant 0 : i32
    return %c0_i32, %c0_i32_0, %c0_i32_1 : i32, i32, i32
  }
  func.func @transform_12(%arg0: i32) -> (i32, i32, i32) {
    %c0_i32 = arith.constant 0 : i32
    %c0_i32_0 = arith.constant 0 : i32
    %c0_i32_1 = arith.constant 0 : i32
    %c0_i32_2 = arith.constant 0 : i32
    return %c0_i32, %c0_i32_0, %c0_i32_1 : i32, i32, i32
  }
  func.func @transform_13(%arg0: i32) -> (i32, i32, i32) {
    %c0_i32 = arith.constant 0 : i32
    %c0_i32_0 = arith.constant 0 : i32
    %c0_i32_1 = arith.constant 0 : i32
    %c0_i32_2 = arith.constant 0 : i32
    return %c0_i32, %c0_i32_0, %c0_i32_1 : i32, i32, i32
  }
  func.func @transform_14(%arg0: i32) -> (i32, i32) {
    %c0_i32 = arith.constant 0 : i32
    %c0_i32_0 = arith.constant 0 : i32
    return %c0_i32, %arg0 : i32, i32
  }
  func.func @transform_15(%arg0: i32) -> (i32, i32) {
    %c0_i32 = arith.constant 0 : i32
    %c0_i32_0 = arith.constant 0 : i32
    return %c0_i32, %arg0 : i32, i32
  }
}

</mosaic_0001>

<llo_original>
// kernel: tpu_custom_call.1
$region0: #{tpu_custom_call.1}
  #allocation0 [shape = 'u32[]', space=smem, size = 0x4, offset = 0x4, fixed_abs, tag = 'smem constant byte address 0x4 - core index']
  #allocation1 [shape = 'u32[144,128]{1,0:T(1,128)}', space=vmem, size = 0x12000, scoped, tag = 'internal scratch']
  #allocation2 [shape = 'f32[1,1]{1,0:T(1,128)S(6)}', space=smem, size = 0x200, scoped, tag = 'scoped memory for tpu_custom_call.1']
  %s0 = inlined_call_operand.<no memory space> [shape: f32[1,1], index: 0, kind: input, shape index: {}]
  %s1 = inlined_call_operand.vmem [shape: f32[8,256], index: 1, kind: input, shape index: {}]
  %s2 = inlined_call_operand.vmem [shape: f32[4,256], index: 2, kind: input, shape index: {}]
  %s3 = inlined_call_operand.vmem [shape: f32[4,8,1], index: 3, kind: input, shape index: {}]
  %s4 = inlined_call_operand.vmem [shape: f32[4,8,1], index: 4, kind: input, shape index: {}]
  %s5 = inlined_call_operand.vmem [shape: f32[4,32,8], index: 5, kind: input, shape index: {}]
  %s6 = inlined_call_operand.vmem [shape: f32[4,32,4], index: 6, kind: input, shape index: {}]
  %s7 = inlined_call_operand.vmem [shape: f32[4,32,1], index: 7, kind: input, shape index: {}]
  %s8 = inlined_call_operand.vmem [shape: f32[4,32,32], index: 8, kind: input, shape index: {}]
  %s9 = inlined_call_operand.vmem [shape: f32[4,32,1], index: 9, kind: input, shape index: {}]
  %s10 = inlined_call_operand.vmem [shape: f32[4,16,32], index: 10, kind: input, shape index: {}]
  %s11 = inlined_call_operand.vmem [shape: f32[4,16,1], index: 11, kind: input, shape index: {}]
  %s12 = inlined_call_operand.vmem [shape: f32[4,8,1], index: 12, kind: input, shape index: {}]
  %s13 = inlined_call_operand.vmem [shape: f32[4,8,1], index: 13, kind: input, shape index: {}]
  %s14 = inlined_call_operand.hbm [shape: f32[8,256], index: 14, kind: output, shape index: {0}]
  %s15 = inlined_call_operand.hbm [shape: f32[1,256], index: 15, kind: output, shape index: {1}]
  %16 = xla_tuple %s14, %s15
  %s17 = sld [smem:[#allocation0]]
  $region97: #{tpu_custom_call.1} parent=0
    _
  %s19 = ssub.s32 1, %s17
  %s20 = scalar_select 0, %s19, %s17
  %21 = sst [smem:[#allocation2]] %s0
  $region1: #{tpu_custom_call.1} parent=0
    #allocation3 [shape = 'u8[8192]{0}', space=vmem, size = 0x2000, scoped, tag = 'output window, operand 0']
    #allocation4 [shape = 's32[2]{0}', space=sflag, size = 0x8, scoped, tag = 'scoped memory for tpu_custom_call.1']
    #allocation5 [shape = 'u8[1024]{0}', space=vmem, size = 0x400, scoped, tag = 'output window, operand 1']
    #allocation6 [shape = 's32[2]{0}', space=sflag, size = 0x8, scoped, tag = 'scoped memory for tpu_custom_call.1']
    %22 = vsyncpa [#allocation4], 0
    %s23 = scalar_lea.sflag [#allocation4], 1
    %24 = vsyncpa %s23, 0
    %25 = vsyncpa [#allocation6], 0
    %s26 = scalar_lea.sflag [#allocation6], 1
    %27 = vsyncpa %s26, 0
    loop: start=0, step=1, limit=4
    $region2: #{tpu_custom_call.1} parent=1 // loop_pre_header
      _
    $region3: #{tpu_custom_call.1} parent=1 // loop_header
      %s29 = sphi 0, %s33
      %p30 = scmp.ge.s32.totalorder %s29, 4
      %s37 = sphi 0, %s37
      %s39 = sphi 0, %s37
      %s40 = sphi 0, %s39
      %s54 = sphi 0, %s40
      %s60 = sphi 0, %s62
      %s63 = sphi 0, %s60
      %s64 = sphi 0, %s63
      %s80 = sphi 0, %s64
      %s86 = sphi 0, %s88
      %s89 = sphi 0, %s86
      %s90 = sphi 0, %s89
      %s106 = sphi 0, %s90
      %s110 = sphi 0, %s110
      %s112 = sphi 0, %s110
      %s113 = sphi 0, %s112
      %s127 = sphi 0, %s113
      %s131 = sphi 0, %s131
      %s133 = sphi 0, %s131
      %s134 = sphi 0, %s133
      %s148 = sphi 0, %s134
      %s152 = sphi 0, %s152
      %s154 = sphi 0, %s152
      %s155 = sphi 0, %s154
      %s169 = sphi 0, %s155
      %s173 = sphi 0, %s173
      %s175 = sphi 0, %s173
      %s176 = sphi 0, %s175
      %s190 = sphi 0, %s176
      %s194 = sphi 0, %s194
      %s196 = sphi 0, %s194
      %s197 = sphi 0, %s196
      %s211 = sphi 0, %s197
      %s215 = sphi 0, %s215
      %s217 = sphi 0, %s215
      %s218 = sphi 0, %s217
      %s232 = sphi 0, %s218
      %s236 = sphi 0, %s236
      %s238 = sphi 0, %s236
      %s239 = sphi 0, %s238
      %s253 = sphi 0, %s239
      %s257 = sphi 0, %s257
      %s259 = sphi 0, %s257
      %s260 = sphi 0, %s259
      %s274 = sphi 0, %s260
      %s278 = sphi 0, %s278
      %s280 = sphi 0, %s278
      %s281 = sphi 0, %s280
      %s295 = sphi 0, %s281
      %s299 = sphi 0, %s299
      %s301 = sphi 0, %s299
      %s302 = sphi 0, %s301
      %s316 = sphi 0, %s302
      %s320 = sphi 0, %s320
      %s322 = sphi 0, %s320
      %s323 = sphi 0, %s322
      %s337 = sphi 0, %s323
      %s343 = sphi 0, %s345
      %s346 = sphi 0, %s343
      %s347 = sphi 0, %s346
      %s363 = sphi 0, %s347
      %s369 = sphi 0, %s371
      %s372 = sphi 0, %s369
      %s373 = sphi 0, %s372
      %s389 = sphi 0, %s373
    $region4: #{tpu_custom_call.1} parent=1 // loop_header_branch
      %32 = sbr.rel (%p30) target = $region8
    $region5: #{tpu_custom_call.1} parent=1 // loop_body
      %s34 = ssub.s32 %s29, 1
      %s35 = ssub.s32 %s29, 2
      %s36 = sadd.s32 %s29, 1
      %s38 = sadd.s32 %s37, 1
      %p41 = scmp.eq.s32.totalorder %s29, 1
      %p42 = scmp.ne.s32.totalorder %s37, %s39
      %p43 = scmp.eq.s32.totalorder %s29, 0
      %p44 = por %p42, %p43
      %p45 = scmp.ne.s32.totalorder %s37, %s39
      %p46 = scmp.eq.s32.totalorder %s34, 1
      %p47 = por %p45, %p46
      %p48 = scmp.ne.s32.totalorder %s39, %s40
      %p49 = scmp.eq.s32.totalorder %s34, 0
      %p50 = por %p48, %p49
      %p51 = scmp.ne.s32.totalorder %s39, %s40
      %p52 = scmp.eq.s32.totalorder %s35, 1
      %p53 = por %p51, %p52
      %p55 = scmp.ne.s32.totalorder %s40, %s54
      %p56 = scmp.eq.s32.totalorder %s35, 0
      %p57 = por %p55, %p56
      %s58 = ssub.s32 %s29, %s36
      %p59 = scmp.eq.s32.totalorder %s58, 0
      %s61 = sadd.s32 %s60, 1
      %s62 = scalar_select %p59, %s60, %s61
      %p65 = pneg %p59
      %p66 = scmp.eq.s32.totalorder %s29, 1
      %p67 = por %p65, %p66
      %p68 = scmp.ne.s32.totalorder %s60, %s63
      %p69 = scmp.eq.s32.totalorder %s29, 0
      %p70 = por %p68, %p69
      %p71 = scmp.ne.s32.totalorder %s60, %s63
      %p72 = scmp.eq.s32.totalorder %s34, 1
      %p73 = por %p71, %p72
      %p74 = scmp.ne.s32.totalorder %s63, %s64
      %p75 = scmp.eq.s32.totalorder %s34, 0
      %p76 = por %p74, %p75
      %p77 = scmp.ne.s32.totalorder %s63, %s64
      %p78 = scmp.eq.s32.totalorder %s35, 1
      %p79 = por %p77, %p78
      %p81 = scmp.ne.s32.totalorder %s64, %s80
      %p82 = scmp.eq.s32.totalorder %s35, 0
      %p83 = por %p81, %p82
      %s84 = ssub.s32 %s29, %s36
      %p85 = scmp.eq.s32.totalorder %s84, 0
      %s87 = sadd.s32 %s86, 1
      %s88 = scalar_select %p85, %s86, %s87
      %p91 = pneg %p85
      %p92 = scmp.eq.s32.totalorder %s29, 1
      %p93 = por %p91, %p92
      %p94 = scmp.ne.s32.totalorder %s86, %s89
      %p95 = scmp.eq.s32.totalorder %s29, 0
      %p96 = por %p94, %p95
      %p97 = scmp.ne.s32.totalorder %s86, %s89
      %p98 = scmp.eq.s32.totalorder %s34, 1
      %p99 = por %p97, %p98
      %p100 = scmp.ne.s32.totalorder %s89, %s90
      %p101 = scmp.eq.s32.totalorder %s34, 0
      %p102 = por %p100, %p101
      %p103 = scmp.ne.s32.totalorder %s89, %s90
      %p104 = scmp.eq.s32.totalorder %s35, 1
      %p105 = por %p103, %p104
      %p107 = scmp.ne.s32.totalorder %s90, %s106
      %p108 = scmp.eq.s32.totalorder %s35, 0
      %p109 = por %p107, %p108
      %s111 = sadd.s32 %s110, 1
      %p114 = scmp.eq.s32.totalorder %s29, 1
      %p115 = scmp.ne.s32.totalorder %s110, %s112
      %p116 = scmp.eq.s32.totalorder %s29, 0
      %p117 = por %p115, %p116
      %p118 = scmp.ne.s32.totalorder %s110, %s112
      %p119 = scmp.eq.s32.totalorder %s34, 1
      %p120 = por %p118, %p119
      %p121 = scmp.ne.s32.totalorder %s112, %s113
      %p122 = scmp.eq.s32.totalorder %s34, 0
      %p123 = por %p121, %p122
      %p124 = scmp.ne.s32.totalorder %s112, %s113
      %p125 = scmp.eq.s32.totalorder %s35, 1
      %p126 = por %p124, %p125
      %p128 = scmp.ne.s32.totalorder %s113, %s127
      %p129 = scmp.eq.s32.totalorder %s35, 0
      %p130 = por %p128, %p129
      %s132 = sadd.s32 %s131, 1
      %p135 = scmp.eq.s32.totalorder %s29, 1
      %p136 = scmp.ne.s32.totalorder %s131, %s133
      %p137 = scmp.eq.s32.totalorder %s29, 0
      %p138 = por %p136, %p137
      %p139 = scmp.ne.s32.totalorder %s131, %s133
      %p140 = scmp.eq.s32.totalorder %s34, 1
      %p141 = por %p139, %p140
      %p142 = scmp.ne.s32.totalorder %s133, %s134
      %p143 = scmp.eq.s32.totalorder %s34, 0
      %p144 = por %p142, %p143
      %p145 = scmp.ne.s32.totalorder %s133, %s134
      %p146 = scmp.eq.s32.totalorder %s35, 1
      %p147 = por %p145, %p146
      %p149 = scmp.ne.s32.totalorder %s134, %s148
      %p150 = scmp.eq.s32.totalorder %s35, 0
      %p151 = por %p149, %p150
      %s153 = sadd.s32 %s152, 1
      %p156 = scmp.eq.s32.totalorder %s29, 1
      %p157 = scmp.ne.s32.totalorder %s152, %s154
      %p158 = scmp.eq.s32.totalorder %s29, 0
      %p159 = por %p157, %p158
      %p160 = scmp.ne.s32.totalorder %s152, %s154
      %p161 = scmp.eq.s32.totalorder %s34, 1
      %p162 = por %p160, %p161
      %p163 = scmp.ne.s32.totalorder %s154, %s155
      %p164 = scmp.eq.s32.totalorder %s34, 0
      %p165 = por %p163, %p164
      %p166 = scmp.ne.s32.totalorder %s154, %s155
      %p167 = scmp.eq.s32.totalorder %s35, 1
      %p168 = por %p166, %p167
      %p170 = scmp.ne.s32.totalorder %s155, %s169
      %p171 = scmp.eq.s32.totalorder %s35, 0
      %p172 = por %p170, %p171
      %s174 = sadd.s32 %s173, 1
      %p177 = scmp.eq.s32.totalorder %s29, 1
      %p178 = scmp.ne.s32.totalorder %s173, %s175
      %p179 = scmp.eq.s32.totalorder %s29, 0
      %p180 = por %p178, %p179
      %p181 = scmp.ne.s32.totalorder %s173, %s175
      %p182 = scmp.eq.s32.totalorder %s34, 1
      %p183 = por %p181, %p182
      %p184 = scmp.ne.s32.totalorder %s175, %s176
      %p185 = scmp.eq.s32.totalorder %s34, 0
      %p186 = por %p184, %p185
      %p187 = scmp.ne.s32.totalorder %s175, %s176
      %p188 = scmp.eq.s32.totalorder %s35, 1
      %p189 = por %p187, %p188
      %p191 = scmp.ne.s32.totalorder %s176, %s190
      %p192 = scmp.eq.s32.totalorder %s35, 0
      %p193 = por %p191, %p192
      %s195 = sadd.s32 %s194, 1
      %p198 = scmp.eq.s32.totalorder %s29, 1
      %p199 = scmp.ne.s32.totalorder %s194, %s196
      %p200 = scmp.eq.s32.totalorder %s29, 0
      %p201 = por %p199, %p200
      %p202 = scmp.ne.s32.totalorder %s194, %s196
      %p203 = scmp.eq.s32.totalorder %s34, 1
      %p204 = por %p202, %p203
      %p205 = scmp.ne.s32.totalorder %s196, %s197
      %p206 = scmp.eq.s32.totalorder %s34, 0
      %p207 = por %p205, %p206
      %p208 = scmp.ne.s32.totalorder %s196, %s197
      %p209 = scmp.eq.s32.totalorder %s35, 1
      %p210 = por %p208, %p209
      %p212 = scmp.ne.s32.totalorder %s197, %s211
      %p213 = scmp.eq.s32.totalorder %s35, 0
      %p214 = por %p212, %p213
      %s216 = sadd.s32 %s215, 1
      %p219 = scmp.eq.s32.totalorder %s29, 1
      %p220 = scmp.ne.s32.totalorder %s215, %s217
      %p221 = scmp.eq.s32.totalorder %s29, 0
      %p222 = por %p220, %p221
      %p223 = scmp.ne.s32.totalorder %s215, %s217
      %p224 = scmp.eq.s32.totalorder %s34, 1
      %p225 = por %p223, %p224
      %p226 = scmp.ne.s32.totalorder %s217, %s218
      %p227 = scmp.eq.s32.totalorder %s34, 0
      %p228 = por %p226, %p227
      %p229 = scmp.ne.s32.totalorder %s217, %s218
      %p230 = scmp.eq.s32.totalorder %s35, 1
      %p231 = por %p229, %p230
      %p233 = scmp.ne.s32.totalorder %s218, %s232
      %p234 = scmp.eq.s32.totalorder %s35, 0
      %p235 = por %p233, %p234
      %s237 = sadd.s32 %s236, 1
      %p240 = scmp.eq.s32.totalorder %s29, 1
      %p241 = scmp.ne.s32.totalorder %s236, %s238
      %p242 = scmp.eq.s32.totalorder %s29, 0
      %p243 = por %p241, %p242
      %p244 = scmp.ne.s32.totalorder %s236, %s238
      %p245 = scmp.eq.s32.totalorder %s34, 1
      %p246 = por %p244, %p245
      %p247 = scmp.ne.s32.totalorder %s238, %s239
      %p248 = scmp.eq.s32.totalorder %s34, 0
      %p249 = por %p247, %p248
      %p250 = scmp.ne.s32.totalorder %s238, %s239
      %p251 = scmp.eq.s32.totalorder %s35, 1
      %p252 = por %p250, %p251
      %p254 = scmp.ne.s32.totalorder %s239, %s253
      %p255 = scmp.eq.s32.totalorder %s35, 0
      %p256 = por %p254, %p255
      %s258 = sadd.s32 %s257, 1
      %p261 = scmp.eq.s32.totalorder %s29, 1
      %p262 = scmp.ne.s32.totalorder %s257, %s259
      %p263 = scmp.eq.s32.totalorder %s29, 0
      %p264 = por %p262, %p263
      %p265 = scmp.ne.s32.totalorder %s257, %s259
      %p266 = scmp.eq.s32.totalorder %s34, 1
      %p267 = por %p265, %p266
      %p268 = scmp.ne.s32.totalorder %s259, %s260
      %p269 = scmp.eq.s32.totalorder %s34, 0
      %p270 = por %p268, %p269
      %p271 = scmp.ne.s32.totalorder %s259, %s260
      %p272 = scmp.eq.s32.totalorder %s35, 1
      %p273 = por %p271, %p272
      %p275 = scmp.ne.s32.totalorder %s260, %s274
      %p276 = scmp.eq.s32.totalorder %s35, 0
      %p277 = por %p275, %p276
      %s279 = sadd.s32 %s278, 1
      %p282 = scmp.eq.s32.totalorder %s29, 1
      %p283 = scmp.ne.s32.totalorder %s278, %s280
      %p284 = scmp.eq.s32.totalorder %s29, 0
      %p285 = por %p283, %p284
      %p286 = scmp.ne.s32.totalorder %s278, %s280
      %p287 = scmp.eq.s32.totalorder %s34, 1
      %p288 = por %p286, %p287
      %p289 = scmp.ne.s32.totalorder %s280, %s281
      %p290 = scmp.eq.s32.totalorder %s34, 0
      %p291 = por %p289, %p290
      %p292 = scmp.ne.s32.totalorder %s280, %s281
      %p293 = scmp.eq.s32.totalorder %s35, 1
      %p294 = por %p292, %p293
      %p296 = scmp.ne.s32.totalorder %s281, %s295
      %p297 = scmp.eq.s32.totalorder %s35, 0
      %p298 = por %p296, %p297
      %s300 = sadd.s32 %s299, 1
      %p303 = scmp.eq.s32.totalorder %s29, 1
      %p304 = scmp.ne.s32.totalorder %s299, %s301
      %p305 = scmp.eq.s32.totalorder %s29, 0
      %p306 = por %p304, %p305
      %p307 = scmp.ne.s32.totalorder %s299, %s301
      %p308 = scmp.eq.s32.totalorder %s34, 1
      %p309 = por %p307, %p308
      %p310 = scmp.ne.s32.totalorder %s301, %s302
      %p311 = scmp.eq.s32.totalorder %s34, 0
      %p312 = por %p310, %p311
      %p313 = scmp.ne.s32.totalorder %s301, %s302
      %p314 = scmp.eq.s32.totalorder %s35, 1
      %p315 = por %p313, %p314
      %p317 = scmp.ne.s32.totalorder %s302, %s316
      %p318 = scmp.eq.s32.totalorder %s35, 0
      %p319 = por %p317, %p318
      %s321 = sadd.s32 %s320, 1
      %p324 = scmp.eq.s32.totalorder %s29, 1
      %p325 = scmp.ne.s32.totalorder %s320, %s322
      %p326 = scmp.eq.s32.totalorder %s29, 0
      %p327 = por %p325, %p326
      %p328 = scmp.ne.s32.totalorder %s320, %s322
      %p329 = scmp.eq.s32.totalorder %s34, 1
      %p330 = por %p328, %p329
      %p331 = scmp.ne.s32.totalorder %s322, %s323
      %p332 = scmp.eq.s32.totalorder %s34, 0
      %p333 = por %p331, %p332
      %p334 = scmp.ne.s32.totalorder %s322, %s323
      %p335 = scmp.eq.s32.totalorder %s35, 1
      %p336 = por %p334, %p335
      %p338 = scmp.ne.s32.totalorder %s323, %s337
      %p339 = scmp.eq.s32.totalorder %s35, 0
      %p340 = por %p338, %p339
      %s341 = ssub.s32 %s29, %s36
      %p342 = scmp.eq.s32.totalorder %s341, 0
      %s344 = sadd.s32 %s343, 1
      %s345 = scalar_select %p342, %s343, %s344
      %p348 = pneg %p342
      %p349 = scmp.eq.s32.totalorder %s29, 1
      %p350 = por %p348, %p349
      %p351 = scmp.ne.s32.totalorder %s343, %s346
      %p352 = scmp.eq.s32.totalorder %s29, 0
      %p353 = por %p351, %p352
      %p354 = scmp.ne.s32.totalorder %s343, %s346
      %p355 = scmp.eq.s32.totalorder %s34, 1
      %p356 = por %p354, %p355
      %p357 = scmp.ne.s32.totalorder %s346, %s347
      %p358 = scmp.eq.s32.totalorder %s34, 0
      %p359 = por %p357, %p358
      %p360 = scmp.ne.s32.totalorder %s346, %s347
      %p361 = scmp.eq.s32.totalorder %s35, 1
      %p362 = por %p360, %p361
      %p364 = scmp.ne.s32.totalorder %s347, %s363
      %p365 = scmp.eq.s32.totalorder %s35, 0
      %p366 = por %p364, %p365
      %s367 = ssub.s32 %s29, %s36
      %p368 = scmp.eq.s32.totalorder %s367, 0
      %s370 = sadd.s32 %s369, 1
      %s371 = scalar_select %p368, %s369, %s370
      %p374 = pneg %p368
      %p375 = scmp.eq.s32.totalorder %s29, 1
      %p376 = por %p374, %p375
      %p377 = scmp.ne.s32.totalorder %s369, %s372
      %p378 = scmp.eq.s32.totalorder %s29, 0
      %p379 = por %p377, %p378
      %p380 = scmp.ne.s32.totalorder %s369, %s372
      %p381 = scmp.eq.s32.totalorder %s34, 1
      %p382 = por %p380, %p381
      %p383 = scmp.ne.s32.totalorder %s372, %s373
      %p384 = scmp.eq.s32.totalorder %s34, 0
      %p385 = por %p383, %p384
      %p386 = scmp.ne.s32.totalorder %s372, %s373
      %p387 = scmp.eq.s32.totalorder %s35, 1
      %p388 = por %p386, %p387
      %p390 = scmp.ne.s32.totalorder %s373, %s389
      %p391 = scmp.eq.s32.totalorder %s35, 0
      %p392 = por %p390, %p391
      %p393 = scmp.le.s32.totalorder 1, %s29
      %p394 = scmp.lt.s32.totalorder %s29, 3
      %p395 = pnand %p393, %p394
      %p396 = pneg %p395
      // Predicated region
      $region9: #{tpu_custom_call.1} parent=5 // pred_check
        _
      $region10: #{tpu_custom_call.1} parent=5 // pred_check_branch
        %398 = sbr.rel (%p395) target = $region12
      $region11: #{tpu_custom_call.1} parent=5 // pred_region
        %s399 = ssub.s32 %s29, 1
        // Predicated region
        $region13: #{tpu_custom_call.1} parent=11 // pred_check
          %p400 = pneg %p50
        $region14: #{tpu_custom_call.1} parent=11 // pred_check_branch
          %402 = sbr.rel (%p400) target = $region16
        $region15: #{tpu_custom_call.1} parent=11 // pred_region
          _
        $region16: #{tpu_custom_call.1} parent=11 // pred_fallthru
          _
        // Predicated region
        $region17: #{tpu_custom_call.1} parent=11 // pred_check
          %p403 = pneg %p123
        $region18: #{tpu_custom_call.1} parent=11 // pred_check_branch
          %405 = sbr.rel (%p403) target = $region20
        $region19: #{tpu_custom_call.1} parent=11 // pred_region
          _
        $region20: #{tpu_custom_call.1} parent=11 // pred_fallthru
          _
        // Predicated region
        $region21: #{tpu_custom_call.1} parent=11 // pred_check
          %p406 = pneg %p144
        $region22: #{tpu_custom_call.1} parent=11 // pred_check_branch
          %408 = sbr.rel (%p406) target = $region24
        $region23: #{tpu_custom_call.1} parent=11 // pred_region
          _
        $region24: #{tpu_custom_call.1} parent=11 // pred_fallthru
          _
        // Predicated region
        $region25: #{tpu_custom_call.1} parent=11 // pred_check
          %p409 = pneg %p165
        $region26: #{tpu_custom_call.1} parent=11 // pred_check_branch
          %411 = sbr.rel (%p409) target = $region28
        $region27: #{tpu_custom_call.1} parent=11 // pred_region
          _
        $region28: #{tpu_custom_call.1} parent=11 // pred_fallthru
          _
        // Predicated region
        $region29: #{tpu_custom_call.1} parent=11 // pred_check
          %p412 = pneg %p186
        $region30: #{tpu_custom_call.1} parent=11 // pred_check_branch
          %414 = sbr.rel (%p412) target = $region32
        $region31: #{tpu_custom_call.1} parent=11 // pred_region
          _
        $region32: #{tpu_custom_call.1} parent=11 // pred_fallthru
          _
        // Predicated region
        $region33: #{tpu_custom_call.1} parent=11 // pred_check
          %p415 = pneg %p207
        $region34: #{tpu_custom_call.1} parent=11 // pred_check_branch
          %417 = sbr.rel (%p415) target = $region36
        $region35: #{tpu_custom_call.1} parent=11 // pred_region
          _
        $region36: #{tpu_custom_call.1} parent=11 // pred_fallthru
          _
        // Predicated region
        $region37: #{tpu_custom_call.1} parent=11 // pred_check
          %p418 = pneg %p228
        $region38: #{tpu_custom_call.1} parent=11 // pred_check_branch
          %420 = sbr.rel (%p418) target = $region40
        $region39: #{tpu_custom_call.1} parent=11 // pred_region
          _
        $region40: #{tpu_custom_call.1} parent=11 // pred_fallthru
          _
        // Predicated region
        $region41: #{tpu_custom_call.1} parent=11 // pred_check
          %p421 = pneg %p249
        $region42: #{tpu_custom_call.1} parent=11 // pred_check_branch
          %423 = sbr.rel (%p421) target = $region44
        $region43: #{tpu_custom_call.1} parent=11 // pred_region
          _
        $region44: #{tpu_custom_call.1} parent=11 // pred_fallthru
          _
        // Predicated region
        $region45: #{tpu_custom_call.1} parent=11 // pred_check
          %p424 = pneg %p270
        $region46: #{tpu_custom_call.1} parent=11 // pred_check_branch
          %426 = sbr.rel (%p424) target = $region48
        $region47: #{tpu_custom_call.1} parent=11 // pred_region
          _
        $region48: #{tpu_custom_call.1} parent=11 // pred_fallthru
          _
        // Predicated region
        $region49: #{tpu_custom_call.1} parent=11 // pred_check
          %p427 = pneg %p291
        $region50: #{tpu_custom_call.1} parent=11 // pred_check_branch
          %429 = sbr.rel (%p427) target = $region52
        $region51: #{tpu_custom_call.1} parent=11 // pred_region
          _
        $region52: #{tpu_custom_call.1} parent=11 // pred_fallthru
          _
        // Predicated region
        $region53: #{tpu_custom_call.1} parent=11 // pred_check
          %p430 = pneg %p312
        $region54: #{tpu_custom_call.1} parent=11 // pred_check_branch
          %432 = sbr.rel (%p430) target = $region56
        $region55: #{tpu_custom_call.1} parent=11 // pred_region
          _
        $region56: #{tpu_custom_call.1} parent=11 // pred_fallthru
          _
        // Predicated region
        $region57: #{tpu_custom_call.1} parent=11 // pred_check
          %p433 = pneg %p333
        $region58: #{tpu_custom_call.1} parent=11 // pred_check_branch
          %435 = sbr.rel (%p433) target = $region60
        $region59: #{tpu_custom_call.1} parent=11 // pred_region
          _
        $region60: #{tpu_custom_call.1} parent=11 // pred_fallthru
          _
      $region12: #{tpu_custom_call.1} parent=5 // pred_fallthru
        _
      %p436 = scmp.lt.s32.totalorder %s29, 2
      // Predicated region
      $region61: #{tpu_custom_call.1} parent=5 // pred_check
        %p437 = pneg %p436
      $region62: #{tpu_custom_call.1} parent=5 // pred_check_branch
        %439 = sbr.rel (%p437) target = $region64
      $region63: #{tpu_custom_call.1} parent=5 // pred_region
        // Predicated region
        $region65: #{tpu_custom_call.1} parent=63 // pred_check
          %p440 = pneg %p70
        $region66: #{tpu_custom_call.1} parent=63 // pred_check_branch
          %442 = sbr.rel (%p440) target = $region68
        $region67: #{tpu_custom_call.1} parent=63 // pred_region
          %p443 = scmp.lt.s32.totalorder %s29, 1
          %s444 = scalar_select %p443, %s29, 1
          %s445 = smul.addr %s444, 8
          %s446 = scalar_lea.vmem %s1, %s445
        $region68: #{tpu_custom_call.1} parent=63 // pred_fallthru
          _
        // Predicated region
        $region69: #{tpu_custom_call.1} parent=63 // pred_check
          %p447 = pneg %p96
        $region70: #{tpu_custom_call.1} parent=63 // pred_check_branch
          %449 = sbr.rel (%p447) target = $region72
        $region71: #{tpu_custom_call.1} parent=63 // pred_region
          %p450 = scmp.lt.s32.totalorder %s29, 1
          %s451 = scalar_select %p450, %s29, 1
          %s452 = smul.addr %s451, 4
          %s453 = scalar_lea.vmem %s2, %s452
        $region72: #{tpu_custom_call.1} parent=63 // pred_fallthru
          _
      $region64: #{tpu_custom_call.1} parent=5 // pred_fallthru
        _
      %p454 = scmp.le.s32.totalorder 1, %s29
      %p455 = scmp.lt.s32.totalorder %s29, 3
      %p456 = pnand %p454, %p455
      %p457 = pneg %p456
      // Predicated region
      $region73: #{tpu_custom_call.1} parent=5 // pred_check
        _
      $region74: #{tpu_custom_call.1} parent=5 // pred_check_branch
        %459 = sbr.rel (%p456) target = $region76
      $region75: #{tpu_custom_call.1} parent=5 // pred_region
        %s460 = ssub.s32 %s29, 1
        %p461 = pneg %p50
        %p462 = pneg %p47
        %p463 = scmp.lt.s32.totalorder %s34, 1
        %s464 = scalar_select %p463, %s34, 1
        %s465 = smul.addr %s464, 8
        %s466 = scalar_lea.vmem %s1, %s465
        %p467 = pneg %p76
        %p468 = pneg %p73
        %p469 = scmp.lt.s32.totalorder %s34, 1
        %s470 = scalar_select %p469, %s34, 1
        %s471 = smul.addr %s470, 4
        %s472 = scalar_lea.vmem %s2, %s471
        %p473 = pneg %p102
        %p474 = pneg %p99
        %p475 = pneg %p123
        %p476 = pneg %p120
        %p477 = pneg %p144
        %p478 = pneg %p141
        %p479 = pneg %p165
        %p480 = pneg %p162
        %p481 = pneg %p186
        %p482 = pneg %p183
        %p483 = pneg %p207
        %p484 = pneg %p204
        %p485 = pneg %p228
        %p486 = pneg %p225
        %p487 = pneg %p249
        %p488 = pneg %p246
        %p489 = pneg %p270
        %p490 = pneg %p267
        %p491 = pneg %p291
        %p492 = pneg %p288
        %p493 = pneg %p312
        %p494 = pneg %p309
        %p495 = pneg %p333
        %p496 = pneg %p330
        %p497 = pneg %p359
        %p498 = pneg %p356
        %s499 = sand.u32 %s346, 1
        %s500 = scalar_lea.sflag [#allocation4], %s499
        %s501 = sand.u32 %s346, 1
        %s502 = smul.addr %s501, 8
        %s503 = scalar_lea.vmem [#allocation3], %s502
        %p504 = pneg %p385
        %p505 = pneg %p382
        %s506 = sand.u32 %s372, 1
        %s507 = scalar_lea.sflag [#allocation6], %s506
        %s508 = sand.u32 %s372, 1
        %s509 = scalar_lea.vmem [#allocation5], %s508
        %p510 = scmp.lt.s32.totalorder %s34, 1
        %s511 = scalar_select %p510, %s34, 1
        %s512 = smul.addr %s511, 8
        %s513 = scalar_lea.vmem %s1, %s512
        %p514 = scmp.lt.s32.totalorder %s34, 1
        %s515 = scalar_select %p514, %s34, 1
        %s516 = smul.addr %s515, 4
        %s517 = scalar_lea.vmem %s2, %s516
        %v518 = vld [vmem:[%s513] sm:$0xff]
        %v519 = vld [vmem:[%s517] sm:$0xf]
        %s520 = sld [smem:[#allocation2]]
        %v521 = vstv %s520
        %v522 = vld [vmem:[%s3] sm:$0xff]
        %524 = vset.pattern.permute.xlu0 0
        %525 = vperm.xlu0 %524, %v522
        %v526 = vpop.permute.xlu0 %525
        %v528 = vmul.f32 %v518, %v526
        %v529 = vld [vmem:[%s4] sm:$0xff]
        %531 = vset.pattern.permute.xlu0 0
        %532 = vperm.xlu0 %531, %v529
        %v533 = vpop.permute.xlu0 %532
        %v535 = vadd.f32 %v528, %v533
        %v536 = vld [vmem:[%s5] sm:$0xff]
        %v537 = vld [vmem:[%s5 + $0x8] sm:$0xff]
        %v538 = vld [vmem:[%s5 + $0x10] sm:$0xff]
        %v539 = vld [vmem:[%s5 + $0x18] sm:$0xff]
        %v540 = vld [vmem:[%s6] sm:$0xff]
        %v541 = vld [vmem:[%s6 + $0x8] sm:$0xff]
        %v542 = vld [vmem:[%s6 + $0x10] sm:$0xff]
        %v543 = vld [vmem:[%s6 + $0x18] sm:$0xff]
        %vm544 = vcmask 31744
        %v546 = vsel %vm544, %v540, 0
        %v549 = vsel %vm544, %v541, 0
        %v552 = vsel %vm544, %v542, 0
        %v555 = vsel %vm544, %v543, 0
        %vm557 = vcmask 1043456
        %v559 = vsel %vm557, %v519, 0
        %561 = vmatprep.subr.mxu0 0.0
        %562 = vmatpush1.msra.mxu0 %v559
        %563 = vmatprep.subr.mxu0 0.0
        %564 = vmatpush1.msra.mxu0 0.0
        %565 = vmatprep.subr.mxu0 0.0
        %566 = vmatpush1.msra.mxu0 0.0
        %567 = vmatprep.subr.mxu0 0.0
        %568 = vmatpush1.msra.mxu0 0.0
        %569 = vmatprep.subr.mxu0 0.0
        %570 = vmatpush1.msra.mxu0 0.0
        %571 = vmatprep.subr.mxu0 0.0
        %572 = vmatpush1.msra.mxu0 0.0
        %573 = vmatprep.subr.mxu0 0.0
        %574 = vmatpush1.msra.mxu0 0.0
        %575 = vmatprep.subr.mxu0 0.0
        %576 = vmatpush1.msra.mxu0 0.0
        %577 = vmatprep.subr.mxu0 0.0
        %578 = vmatpush1.msra.mxu0 0.0
        %579 = vmatprep.subr.mxu0 0.0
        %580 = vmatpush1.msra.mxu0 0.0
        %581 = vmatprep.subr.mxu0 0.0
        %582 = vmatpush1.msra.mxu0 0.0
        %583 = vmatprep.subr.mxu0 0.0
        %584 = vmatpush1.msra.mxu0 0.0
        %585 = vmatprep.subr.mxu0 0.0
        %586 = vmatpush1.msra.mxu0 0.0
        %587 = vmatprep.subr.mxu0 0.0
        %588 = vmatpush1.msra.mxu0 0.0
        %589 = vmatprep.subr.mxu0 0.0
        %590 = vmatpush1.msra.mxu0 0.0
        %591 = vmatprep.subr.mxu0 0.0
        %592 = vmatpush1.msra.mxu0 0.0
        %593 = vmatprep.subr.mxu0 0.0
        %594 = vmatpush1.msra.mxu0 0.0
        %595 = vmatprep.subr.mxu0 0.0
        %596 = vmatpush1.msra.mxu0 0.0
        %597 = vmatprep.subr.mxu0 0.0
        %598 = vmatpush1.msra.mxu0 0.0
        %599 = vmatprep.subr.mxu0 0.0
        %600 = vmatpush1.msra.mxu0 0.0
        %601 = vmatprep.subr.mxu0 0.0
        %602 = vmatpush1.msra.mxu0 0.0
        %603 = vmatprep.subr.mxu0 0.0
        %604 = vmatpush1.msra.mxu0 0.0
        %605 = vmatprep.subr.mxu0 0.0
        %606 = vmatpush1.msra.mxu0 0.0
        %607 = vmatprep.subr.mxu0 0.0
        %608 = vmatpush1.msra.mxu0 0.0
        %609 = vmatprep.subr.mxu0 0.0
        %610 = vmatpush1.msra.mxu0 0.0
        %611 = vmatprep.subr.mxu0 0.0
        %612 = vmatpush1.msra.mxu0 0.0
        %613 = vmatprep.subr.mxu0 0.0
        %614 = vmatpush1.msra.mxu0 0.0
        %615 = vmatprep.subr.mxu0 0.0
        %616 = vmatpush1.msra.mxu0 0.0
        %617 = vmatprep.subr.mxu0 0.0
        %618 = vmatpush1.msra.mxu0 0.0
        %619 = vmatprep.subr.mxu0 0.0
        %620 = vmatpush1.msra.mxu0 0.0
        %621 = vmatprep.subr.mxu0 0.0
        %622 = vmatpush1.msra.mxu0 0.0
        %623 = vmatprep.subr.mxu0 0.0
        %624 = vmatpush1.msra.mxu0 0.0
        %625 = vmatprep.mubr.f32.mxu0 0.0
        %626 = vmatmul.mubr.f32.gmra.mrb[0].mxu0 %v546
        %v627 = vpop.f32.mrb[0].mxu0
        %v628 = vadd.f32 0.0, %v627
        %v629 = vpop.f32.mrb[0].mxu0
        %630 = vmatprep.mubr.f32.mxu0 0.0
        %631 = vmatmul.mubr.f32.gmra.mrb[0].mxu0 %v549
        %v632 = vpop.f32.mrb[0].mxu0
        %v633 = vadd.f32 0.0, %v632
        %v634 = vpop.f32.mrb[0].mxu0
        %635 = vmatprep.mubr.f32.mxu0 0.0
        %636 = vmatmul.mubr.f32.gmra.mrb[0].mxu0 %v552
        %v637 = vpop.f32.mrb[0].mxu0
        %v638 = vadd.f32 0.0, %v637
        %v639 = vpop.f32.mrb[0].mxu0
        %640 = vmatprep.mubr.f32.mxu0 0.0
        %641 = vmatmul.mubr.f32.gmra.mrb[0].mxu0 %v555
        %v642 = vpop.f32.mrb[0].mxu0
        %v643 = vadd.f32 0.0, %v642
        %v644 = vpop.f32.mrb[0].mxu0
        %645 = vdwg.mxu0
        %vm646 = vcmask 64512
        %v648 = vsel %vm646, %v536, 0
        %v651 = vsel %vm646, %v537, 0
        %v654 = vsel %vm646, %v538, 0
        %v657 = vsel %vm646, %v539, 0
        %659 = vmatprep.subr.mxu0 0.0
        %660 = vmatpush1.msra.mxu0 %v535
        %661 = vmatprep.subr.mxu0 0.0
        %662 = vmatpush1.msra.mxu0 0.0
        %663 = vmatprep.subr.mxu0 0.0
        %664 = vmatpush1.msra.mxu0 0.0
        %665 = vmatprep.subr.mxu0 0.0
        %666 = vmatpush1.msra.mxu0 0.0
        %667 = vmatprep.subr.mxu0 0.0
        %668 = vmatpush1.msra.mxu0 0.0
        %669 = vmatprep.subr.mxu0 0.0
        %670 = vmatpush1.msra.mxu0 0.0
        %671 = vmatprep.subr.mxu0 0.0
        %672 = vmatpush1.msra.mxu0 0.0
        %673 = vmatprep.subr.mxu0 0.0
        %674 = vmatpush1.msra.mxu0 0.0
        %675 = vmatprep.subr.mxu0 0.0
        %676 = vmatpush1.msra.mxu0 0.0
        %677 = vmatprep.subr.mxu0 0.0
        %678 = vmatpush1.msra.mxu0 0.0
        %679 = vmatprep.subr.mxu0 0.0
        %680 = vmatpush1.msra.mxu0 0.0
        %681 = vmatprep.subr.mxu0 0.0
        %682 = vmatpush1.msra.mxu0 0.0
        %683 = vmatprep.subr.mxu0 0.0
        %684 = vmatpush1.msra.mxu0 0.0
        %685 = vmatprep.subr.mxu0 0.0
        %686 = vmatpush1.msra.mxu0 0.0
        %687 = vmatprep.subr.mxu0 0.0
        %688 = vmatpush1.msra.mxu0 0.0
        %689 = vmatprep.subr.mxu0 0.0
        %690 = vmatpush1.msra.mxu0 0.0
        %691 = vmatprep.subr.mxu0 0.0
        %692 = vmatpush1.msra.mxu0 0.0
        %693 = vmatprep.subr.mxu0 0.0
        %694 = vmatpush1.msra.mxu0 0.0
        %695 = vmatprep.subr.mxu0 0.0
        %696 = vmatpush1.msra.mxu0 0.0
        %697 = vmatprep.subr.mxu0 0.0
        %698 = vmatpush1.msra.mxu0 0.0
        %699 = vmatprep.subr.mxu0 0.0
        %700 = vmatpush1.msra.mxu0 0.0
        %701 = vmatprep.subr.mxu0 0.0
        %702 = vmatpush1.msra.mxu0 0.0
        %703 = vmatprep.subr.mxu0 0.0
        %704 = vmatpush1.msra.mxu0 0.0
        %705 = vmatprep.subr.mxu0 0.0
        %706 = vmatpush1.msra.mxu0 0.0
        %707 = vmatprep.subr.mxu0 0.0
        %708 = vmatpush1.msra.mxu0 0.0
        %709 = vmatprep.subr.mxu0 0.0
        %710 = vmatpush1.msra.mxu0 0.0
        %711 = vmatprep.subr.mxu0 0.0
        %712 = vmatpush1.msra.mxu0 0.0
        %713 = vmatprep.subr.mxu0 0.0
        %714 = vmatpush1.msra.mxu0 0.0
        %715 = vmatprep.subr.mxu0 0.0
        %716 = vmatpush1.msra.mxu0 0.0
        %717 = vmatprep.subr.mxu0 0.0
        %718 = vmatpush1.msra.mxu0 0.0
        %719 = vmatprep.subr.mxu0 0.0
        %720 = vmatpush1.msra.mxu0 0.0
        %721 = vmatprep.subr.mxu0 0.0
        %722 = vmatpush1.msra.mxu0 0.0
        %723 = vmatprep.mubr.f32.mxu0 0.0
        %724 = vmatmul.mubr.f32.gmra.mrb[0].mxu0 %v648
        %v725 = vpop.f32.mrb[0].mxu0
        %v726 = vadd.f32 %v628, %v725
        %v727 = vpop.f32.mrb[0].mxu0
        %728 = vmatprep.mubr.f32.mxu0 0.0
        %729 = vmatmul.mubr.f32.gmra.mrb[0].mxu0 %v651
        %v730 = vpop.f32.mrb[0].mxu0
        %v731 = vadd.f32 %v633, %v730
        %v732 = vpop.f32.mrb[0].mxu0
        %733 = vmatprep.mubr.f32.mxu0 0.0
        %734 = vmatmul.mubr.f32.gmra.mrb[0].mxu0 %v654
        %v735 = vpop.f32.mrb[0].mxu0
        %v736 = vadd.f32 %v638, %v735
        %v737 = vpop.f32.mrb[0].mxu0
        %738 = vmatprep.mubr.f32.mxu0 0.0
        %739 = vmatmul.mubr.f32.gmra.mrb[0].mxu0 %v657
        %v740 = vpop.f32.mrb[0].mxu0
        %v741 = vadd.f32 %v643, %v740
        %v742 = vpop.f32.mrb[0].mxu0
        %743 = vdwg.mxu0
        %v744 = vld [vmem:[%s7] sm:$0xff]
        %v745 = vld [vmem:[%s7 + $0x8] sm:$0xff]
        %v746 = vld [vmem:[%s7 + $0x10] sm:$0xff]
        %v747 = vld [vmem:[%s7 + $0x18] sm:$0xff]
        %749 = vset.pattern.permute.xlu0 0
        %750 = vperm.xlu0 %749, %v744
        %v751 = vpop.permute.xlu0 %750
        %754 = vset.pattern.permute.xlu0 0
        %755 = vperm.xlu0 %754, %v745
        %v756 = vpop.permute.xlu0 %755
        %759 = vset.pattern.permute.xlu0 0
        %760 = vperm.xlu0 %759, %v746
        %v761 = vpop.permute.xlu0 %760
        %764 = vset.pattern.permute.xlu0 0
        %765 = vperm.xlu0 %764, %v747
        %v766 = vpop.permute.xlu0 %765
        %v768 = vadd.f32 %v726, %v751
        %v769 = vadd.f32 %v731, %v756
        %v770 = vadd.f32 %v736, %v761
        %v771 = vadd.f32 %v741, %v766
        %v772 = vmax.f32 %v768, 0.0
        %v773 = vmax.f32 %v769, 0.0
        %v774 = vmax.f32 %v770, 0.0
        %v775 = vmax.f32 %v771, 0.0
        %v776 = vld [vmem:[%s8] sm:$0xff]
        %v777 = vld [vmem:[%s8 + $0x8] sm:$0xff]
        %v778 = vld [vmem:[%s8 + $0x10] sm:$0xff]
        %v779 = vld [vmem:[%s8 + $0x18] sm:$0xff]
        %v780 = vld [vmem:[%s9] sm:$0xff]
        %v781 = vld [vmem:[%s9 + $0x8] sm:$0xff]
        %v782 = vld [vmem:[%s9 + $0x10] sm:$0xff]
        %v783 = vld [vmem:[%s9 + $0x18] sm:$0xff]
        %785 = vset.pattern.permute.xlu0 0
        %786 = vperm.xlu0 %785, %v780
        %v787 = vpop.permute.xlu0 %786
        %790 = vset.pattern.permute.xlu0 0
        %791 = vperm.xlu0 %790, %v781
        %v792 = vpop.permute.xlu0 %791
        %795 = vset.pattern.permute.xlu0 0
        %796 = vperm.xlu0 %795, %v782
        %v797 = vpop.permute.xlu0 %796
        %800 = vset.pattern.permute.xlu0 0
        %801 = vperm.xlu0 %800, %v783
        %v802 = vpop.permute.xlu0 %801
        %vm804 = vcmask 261120
        %v806 = vsel %vm804, %v776, 0
        %v809 = vsel %vm804, %v777, 0
        %v812 = vsel %vm804, %v778, 0
        %v815 = vsel %vm804, %v779, 0
        %817 = vmatprep.subr.mxu0 0.0
        %818 = vmatpush1.msra.mxu0 %v772
        %819 = vmatprep.subr.mxu0 0.0
        %820 = vmatpush1.msra.mxu0 %v773
        %821 = vmatprep.subr.mxu0 0.0
        %822 = vmatpush1.msra.mxu0 %v774
        %823 = vmatprep.subr.mxu0 0.0
        %824 = vmatpush1.msra.mxu0 %v775
        %825 = vmatprep.subr.mxu0 0.0
        %826 = vmatpush1.msra.mxu0 0.0
        %827 = vmatprep.subr.mxu0 0.0
        %828 = vmatpush1.msra.mxu0 0.0
        %829 = vmatprep.subr.mxu0 0.0
        %830 = vmatpush1.msra.mxu0 0.0
        %831 = vmatprep.subr.mxu0 0.0
        %832 = vmatpush1.msra.mxu0 0.0
        %833 = vmatprep.subr.mxu0 0.0
        %834 = vmatpush1.msra.mxu0 0.0
        %835 = vmatprep.subr.mxu0 0.0
        %836 = vmatpush1.msra.mxu0 0.0
        %837 = vmatprep.subr.mxu0 0.0
        %838 = vmatpush1.msra.mxu0 0.0
        %839 = vmatprep.subr.mxu0 0.0
        %840 = vmatpush1.msra.mxu0 0.0
        %841 = vmatprep.subr.mxu0 0.0
        %842 = vmatpush1.msra.mxu0 0.0
        %843 = vmatprep.subr.mxu0 0.0
        %844 = vmatpush1.msra.mxu0 0.0
        %845 = vmatprep.subr.mxu0 0.0
        %846 = vmatpush1.msra.mxu0 0.0
        %847 = vmatprep.subr.mxu0 0.0
        %848 = vmatpush1.msra.mxu0 0.0
        %849 = vmatprep.subr.mxu0 0.0
        %850 = vmatpush1.msra.mxu0 0.0
        %851 = vmatprep.subr.mxu0 0.0
        %852 = vmatpush1.msra.mxu0 0.0
        %853 = vmatprep.subr.mxu0 0.0
        %854 = vmatpush1.msra.mxu0 0.0
        %855 = vmatprep.subr.mxu0 0.0
        %856 = vmatpush1.msra.mxu0 0.0
        %857 = vmatprep.subr.mxu0 0.0
        %858 = vmatpush1.msra.mxu0 0.0
        %859 = vmatprep.subr.mxu0 0.0
        %860 = vmatpush1.msra.mxu0 0.0
        %861 = vmatprep.subr.mxu0 0.0
        %862 = vmatpush1.msra.mxu0 0.0
        %863 = vmatprep.subr.mxu0 0.0
        %864 = vmatpush1.msra.mxu0 0.0
        %865 = vmatprep.subr.mxu0 0.0
        %866 = vmatpush1.msra.mxu0 0.0
        %867 = vmatprep.subr.mxu0 0.0
        %868 = vmatpush1.msra.mxu0 0.0
        %869 = vmatprep.subr.mxu0 0.0
        %870 = vmatpush1.msra.mxu0 0.0
        %871 = vmatprep.subr.mxu0 0.0
        %872 = vmatpush1.msra.mxu0 0.0
        %873 = vmatprep.subr.mxu0 0.0
        %874 = vmatpush1.msra.mxu0 0.0
        %875 = vmatprep.subr.mxu0 0.0
        %876 = vmatpush1.msra.mxu0 0.0
        %877 = vmatprep.subr.mxu0 0.0
        %878 = vmatpush1.msra.mxu0 0.0
        %879 = vmatprep.subr.mxu0 0.0
        %880 = vmatpush1.msra.mxu0 0.0
        %881 = vmatprep.mubr.f32.mxu0 0.0
        %882 = vmatmul.mubr.f32.gmra.mrb[0].mxu0 %v806
        %v883 = vpop.f32.mrb[0].mxu0
        %v884 = vadd.f32 %v787, %v883
        %v885 = vpop.f32.mrb[0].mxu0
        %886 = vmatprep.mubr.f32.mxu0 0.0
        %887 = vmatmul.mubr.f32.gmra.mrb[0].mxu0 %v809
        %v888 = vpop.f32.mrb[0].mxu0
        %v889 = vadd.f32 %v792, %v888
        %v890 = vpop.f32.mrb[0].mxu0
        %891 = vmatprep.mubr.f32.mxu0 0.0
        %892 = vmatmul.mubr.f32.gmra.mrb[0].mxu0 %v812
        %v893 = vpop.f32.mrb[0].mxu0
        %v894 = vadd.f32 %v797, %v893
        %v895 = vpop.f32.mrb[0].mxu0
        %896 = vmatprep.mubr.f32.mxu0 0.0
        %897 = vmatmul.mubr.f32.gmra.mrb[0].mxu0 %v815
        %v898 = vpop.f32.mrb[0].mxu0
        %v899 = vadd.f32 %v802, %v898
        %v900 = vpop.f32.mrb[0].mxu0
        %901 = vdwg.mxu0
        %v902 = vmax.f32 %v884, 0.0
        %v903 = vmax.f32 %v889, 0.0
        %v904 = vmax.f32 %v894, 0.0
        %v905 = vmax.f32 %v899, 0.0
        %v906 = vld [vmem:[%s10] sm:$0xff]
        %v907 = vld [vmem:[%s10 + $0x8] sm:$0xff]
        %v908 = vld [vmem:[%s11] sm:$0xff]
        %v909 = vld [vmem:[%s11 + $0x8] sm:$0xff]
        %911 = vset.pattern.permute.xlu0 0
        %912 = vperm.xlu0 %911, %v908
        %v913 = vpop.permute.xlu0 %912
        %916 = vset.pattern.permute.xlu0 0
        %917 = vperm.xlu0 %916, %v909
        %v918 = vpop.permute.xlu0 %917
        %v921 = vsel %vm804, %v906, 0
        %v924 = vsel %vm804, %v907, 0
        %926 = vmatprep.subr.mxu0 0.0
        %927 = vmatpush1.msra.mxu0 %v902
        %928 = vmatprep.subr.mxu0 0.0
        %929 = vmatpush1.msra.mxu0 %v903
        %930 = vmatprep.subr.mxu0 0.0
        %931 = vmatpush1.msra.mxu0 %v904
        %932 = vmatprep.subr.mxu0 0.0
        %933 = vmatpush1.msra.mxu0 %v905
        %934 = vmatprep.subr.mxu0 0.0
        %935 = vmatpush1.msra.mxu0 0.0
        %936 = vmatprep.subr.mxu0 0.0
        %937 = vmatpush1.msra.mxu0 0.0
        %938 = vmatprep.subr.mxu0 0.0
        %939 = vmatpush1.msra.mxu0 0.0
        %940 = vmatprep.subr.mxu0 0.0
        %941 = vmatpush1.msra.mxu0 0.0
        %942 = vmatprep.subr.mxu0 0.0
        %943 = vmatpush1.msra.mxu0 0.0
        %944 = vmatprep.subr.mxu0 0.0
        %945 = vmatpush1.msra.mxu0 0.0
        %946 = vmatprep.subr.mxu0 0.0
        %947 = vmatpush1.msra.mxu0 0.0
        %948 = vmatprep.subr.mxu0 0.0
        %949 = vmatpush1.msra.mxu0 0.0
        %950 = vmatprep.subr.mxu0 0.0
        %951 = vmatpush1.msra.mxu0 0.0
        %952 = vmatprep.subr.mxu0 0.0
        %953 = vmatpush1.msra.mxu0 0.0
        %954 = vmatprep.subr.mxu0 0.0
        %955 = vmatpush1.msra.mxu0 0.0
        %956 = vmatprep.subr.mxu0 0.0
        %957 = vmatpush1.msra.mxu0 0.0
        %958 = vmatprep.subr.mxu0 0.0
        %959 = vmatpush1.msra.mxu0 0.0
        %960 = vmatprep.subr.mxu0 0.0
        %961 = vmatpush1.msra.mxu0 0.0
        %962 = vmatprep.subr.mxu0 0.0
        %963 = vmatpush1.msra.mxu0 0.0
        %964 = vmatprep.subr.mxu0 0.0
        %965 = vmatpush1.msra.mxu0 0.0
        %966 = vmatprep.subr.mxu0 0.0
        %967 = vmatpush1.msra.mxu0 0.0
        %968 = vmatprep.subr.mxu0 0.0
        %969 = vmatpush1.msra.mxu0 0.0
        %970 = vmatprep.subr.mxu0 0.0
        %971 = vmatpush1.msra.mxu0 0.0
        %972 = vmatprep.subr.mxu0 0.0
        %973 = vmatpush1.msra.mxu0 0.0
        %974 = vmatprep.subr.mxu0 0.0
        %975 = vmatpush1.msra.mxu0 0.0
        %976 = vmatprep.subr.mxu0 0.0
        %977 = vmatpush1.msra.mxu0 0.0
        %978 = vmatprep.subr.mxu0 0.0
        %979 = vmatpush1.msra.mxu0 0.0
        %980 = vmatprep.subr.mxu0 0.0
        %981 = vmatpush1.msra.mxu0 0.0
        %982 = vmatprep.subr.mxu0 0.0
        %983 = vmatpush1.msra.mxu0 0.0
        %984 = vmatprep.subr.mxu0 0.0
        %985 = vmatpush1.msra.mxu0 0.0
        %986 = vmatprep.subr.mxu0 0.0
        %987 = vmatpush1.msra.mxu0 0.0
        %988 = vmatprep.subr.mxu0 0.0
        %989 = vmatpush1.msra.mxu0 0.0
        %990 = vmatprep.mubr.f32.mxu0 0.0
        %991 = vmatmul.mubr.f32.gmra.mrb[0].mxu0 %v921
        %v992 = vpop.f32.mrb[0].mxu0
        %v993 = vadd.f32 %v913, %v992
        %v994 = vpop.f32.mrb[0].mxu0
        %995 = vmatprep.mubr.f32.mxu0 0.0
        %996 = vmatmul.mubr.f32.gmra.mrb[0].mxu0 %v924
        %v997 = vpop.f32.mrb[0].mxu0
        %v998 = vadd.f32 %v918, %v997
        %v999 = vpop.f32.mrb[0].mxu0
        %1000 = vdwg.mxu0
        %v1001 = vtanh.pop %v998
        %v1002 = vld [vmem:[%s12] sm:$0xff]
        %1004 = vset.pattern.permute.xlu0 0
        %1005 = vperm.xlu0 %1004, %v1002
        %v1006 = vpop.permute.xlu0 %1005
        %v1008 = vmul.f32 %v1001, %v1006
        %v1009 = vld [vmem:[%s13] sm:$0xff]
        %1011 = vset.pattern.permute.xlu0 0
        %1012 = vperm.xlu0 %1011, %v1009
        %v1013 = vpop.permute.xlu0 %1012
        %v1015 = vadd.f32 %v1008, %v1013
        %v1016 = vmul.f32 %v1015, 1.442695
        %v1017 = vpow.pop %v1016
        %v1018 = vmul.f32 %v535, %v1017
        %v1019 = vadd.f32 %v1018, %v993
        %v1020 = vrot.slane %v1015, 4
        %v1021 = vadd.f32 %v1015, %v1020
        %v1022 = vrot.slane %v1021, 2
        %v1023 = vadd.f32 %v1021, %v1022
        %v1024 = vrot.slane %v1023, 1
        %v1025 = vadd.f32 %v1023, %v1024
        %v1026 = vadd.f32 %v521, %v1025
        %s1027 = scalar_lea.vmem %s3, 8
        %v1028 = vld [vmem:[%s1027] sm:$0xff]
        %1030 = vset.pattern.permute.xlu0 0
        %1031 = vperm.xlu0 %1030, %v1028
        %v1032 = vpop.permute.xlu0 %1031
        %v1034 = vmul.f32 %v1019, %v1032
        %s1035 = scalar_lea.vmem %s4, 8
        %v1036 = vld [vmem:[%s1035] sm:$0xff]
        %1038 = vset.pattern.permute.xlu0 0
        %1039 = vperm.xlu0 %1038, %v1036
        %v1040 = vpop.permute.xlu0 %1039
        %v1042 = vadd.f32 %v1034, %v1040
        %s1043 = scalar_lea.vmem %s5, 32
        %v1044 = vld [vmem:[%s1043] sm:$0xff]
        %v1045 = vld [vmem:[%s1043 + $0x8] sm:$0xff]
        %v1046 = vld [vmem:[%s1043 + $0x10] sm:$0xff]
        %v1047 = vld [vmem:[%s1043 + $0x18] sm:$0xff]
        %s1048 = scalar_lea.vmem %s6, 32
        %v1049 = vld [vmem:[%s1048] sm:$0xff]
        %v1050 = vld [vmem:[%s1048 + $0x8] sm:$0xff]
        %v1051 = vld [vmem:[%s1048 + $0x10] sm:$0xff]
        %v1052 = vld [vmem:[%s1048 + $0x18] sm:$0xff]
        %v1054 = vsel %vm544, %v1049, 0
        %v1057 = vsel %vm544, %v1050, 0
        %v1060 = vsel %vm544, %v1051, 0
        %v1063 = vsel %vm544, %v1052, 0
        %1065 = vmatprep.subr.mxu0 0.0
        %1066 = vmatpush1.msra.mxu0 %v559
        %1067 = vmatprep.subr.mxu0 0.0
        %1068 = vmatpush1.msra.mxu0 0.0
        %1069 = vmatprep.subr.mxu0 0.0
        %1070 = vmatpush1.msra.mxu0 0.0
        %1071 = vmatprep.subr.mxu0 0.0
        %1072 = vmatpush1.msra.mxu0 0.0
        %1073 = vmatprep.subr.mxu0 0.0
        %1074 = vmatpush1.msra.mxu0 0.0
        %1075 = vmatprep.subr.mxu0 0.0
        %1076 = vmatpush1.msra.mxu0 0.0
        %1077 = vmatprep.subr.mxu0 0.0
        %1078 = vmatpush1.msra.mxu0 0.0
        %1079 = vmatprep.subr.mxu0 0.0
        %1080 = vmatpush1.msra.mxu0 0.0
        %1081 = vmatprep.subr.mxu0 0.0
        %1082 = vmatpush1.msra.mxu0 0.0
        %1083 = vmatprep.subr.mxu0 0.0
        %1084 = vmatpush1.msra.mxu0 0.0
        %1085 = vmatprep.subr.mxu0 0.0
        %1086 = vmatpush1.msra.mxu0 0.0
        %1087 = vmatprep.subr.mxu0 0.0
        %1088 = vmatpush1.msra.mxu0 0.0
        %1089 = vmatprep.subr.mxu0 0.0
        %1090 = vmatpush1.msra.mxu0 0.0
        %1091 = vmatprep.subr.mxu0 0.0
        %1092 = vmatpush1.msra.mxu0 0.0
        %1093 = vmatprep.subr.mxu0 0.0
        %1094 = vmatpush1.msra.mxu0 0.0
        %1095 = vmatprep.subr.mxu0 0.0
        %1096 = vmatpush1.msra.mxu0 0.0
        %1097 = vmatprep.subr.mxu0 0.0
        %1098 = vmatpush1.msra.mxu0 0.0
        %1099 = vmatprep.subr.mxu0 0.0
        %1100 = vmatpush1.msra.mxu0 0.0
        %1101 = vmatprep.subr.mxu0 0.0
        %1102 = vmatpush1.msra.mxu0 0.0
        %1103 = vmatprep.subr.mxu0 0.0
        %1104 = vmatpush1.msra.mxu0 0.0
        %1105 = vmatprep.subr.mxu0 0.0
        %1106 = vmatpush1.msra.mxu0 0.0
        %1107 = vmatprep.subr.mxu0 0.0
        %1108 = vmatpush1.msra.mxu0 0.0
        %1109 = vmatprep.subr.mxu0 0.0
        %1110 = vmatpush1.msra.mxu0 0.0
        %1111 = vmatprep.subr.mxu0 0.0
        %1112 = vmatpush1.msra.mxu0 0.0
        %1113 = vmatprep.subr.mxu0 0.0
        %1114 = vmatpush1.msra.mxu0 0.0
        %1115 = vmatprep.subr.mxu0 0.0
        %1116 = vmatpush1.msra.mxu0 0.0
        %1117 = vmatprep.subr.mxu0 0.0
        %1118 = vmatpush1.msra.mxu0 0.0
        %1119 = vmatprep.subr.mxu0 0.0
        %1120 = vmatpush1.msra.mxu0 0.0
        %1121 = vmatprep.subr.mxu0 0.0
        %1122 = vmatpush1.msra.mxu0 0.0
        %1123 = vmatprep.subr.mxu0 0.0
        %1124 = vmatpush1.msra.mxu0 0.0
        %1125 = vmatprep.subr.mxu0 0.0
        %1126 = vmatpush1.msra.mxu0 0.0
        %1127 = vmatprep.subr.mxu0 0.0
        %1128 = vmatpush1.msra.mxu0 0.0
        %1129 = vmatprep.mubr.f32.mxu0 0.0
        %1130 = vmatmul.mubr.f32.gmra.mrb[0].mxu0 %v1054
        %v1131 = vpop.f32.mrb[0].mxu0
        %v1132 = vadd.f32 0.0, %v1131
        %v1133 = vpop.f32.mrb[0].mxu0
        %1134 = vmatprep.mubr.f32.mxu0 0.0
        %1135 = vmatmul.mubr.f32.gmra.mrb[0].mxu0 %v1057
        %v1136 = vpop.f32.mrb[0].mxu0
        %v1137 = vadd.f32 0.0, %v1136
        %v1138 = vpop.f32.mrb[0].mxu0
        %1139 = vmatprep.mubr.f32.mxu0 0.0
        %1140 = vmatmul.mubr.f32.gmra.mrb[0].mxu0 %v1060
        %v1141 = vpop.f32.mrb[0].mxu0
        %v1142 = vadd.f32 0.0, %v1141
        %v1143 = vpop.f32.mrb[0].mxu0
        %1144 = vmatprep.mubr.f32.mxu0 0.0
        %1145 = vmatmul.mubr.f32.gmra.mrb[0].mxu0 %v1063
        %v1146 = vpop.f32.mrb[0].mxu0
        %v1147 = vadd.f32 0.0, %v1146
        %v1148 = vpop.f32.mrb[0].mxu0
        %1149 = vdwg.mxu0
        %v1151 = vsel %vm646, %v1044, 0
        %v1154 = vsel %vm646, %v1045, 0
        %v1157 = vsel %vm646, %v1046, 0
        %v1160 = vsel %vm646, %v1047, 0
        %1162 = vmatprep.subr.mxu0 0.0
        %1163 = vmatpush1.msra.mxu0 %v1042
        %1164 = vmatprep.subr.mxu0 0.0
        %1165 = vmatpush1.msra.mxu0 0.0
        %1166 = vmatprep.subr.mxu0 0.0
        %1167 = vmatpush1.msra.mxu0 0.0
        %1168 = vmatprep.subr.mxu0 0.0
        %1169 = vmatpush1.msra.mxu0 0.0
        %1170 = vmatprep.subr.mxu0 0.0
        %1171 = vmatpush1.msra.mxu0 0.0
        %1172 = vmatprep.subr.mxu0 0.0
        %1173 = vmatpush1.msra.mxu0 0.0
        %1174 = vmatprep.subr.mxu0 0.0
        %1175 = vmatpush1.msra.mxu0 0.0
        %1176 = vmatprep.subr.mxu0 0.0
        %1177 = vmatpush1.msra.mxu0 0.0
        %1178 = vmatprep.subr.mxu0 0.0
        %1179 = vmatpush1.msra.mxu0 0.0
        %1180 = vmatprep.subr.mxu0 0.0
        %1181 = vmatpush1.msra.mxu0 0.0
        %1182 = vmatprep.subr.mxu0 0.0
        %1183 = vmatpush1.msra.mxu0 0.0
        %1184 = vmatprep.subr.mxu0 0.0
        %1185 = vmatpush1.msra.mxu0 0.0
        %1186 = vmatprep.subr.mxu0 0.0
        %1187 = vmatpush1.msra.mxu0 0.0
        %1188 = vmatprep.subr.mxu0 0.0
        %1189 = vmatpush1.msra.mxu0 0.0
        %1190 = vmatprep.subr.mxu0 0.0
        %1191 = vmatpush1.msra.mxu0 0.0
        %1192 = vmatprep.subr.mxu0 0.0
        %1193 = vmatpush1.msra.mxu0 0.0
        %1194 = vmatprep.subr.mxu0 0.0
        %1195 = vmatpush1.msra.mxu0 0.0
        %1196 = vmatprep.subr.mxu0 0.0
        %1197 = vmatpush1.msra.mxu0 0.0
        %1198 = vmatprep.subr.mxu0 0.0
        %1199 = vmatpush1.msra.mxu0 0.0
        %1200 = vmatprep.subr.mxu0 0.0
        %1201 = vmatpush1.msra.mxu0 0.0
        %1202 = vmatprep.subr.mxu0 0.0
        %1203 = vmatpush1.msra.mxu0 0.0
        %1204 = vmatprep.subr.mxu0 0.0
        %1205 = vmatpush1.msra.mxu0 0.0
        %1206 = vmatprep.subr.mxu0 0.0
        %1207 = vmatpush1.msra.mxu0 0.0
        %1208 = vmatprep.subr.mxu0 0.0
        %1209 = vmatpush1.msra.mxu0 0.0
        %1210 = vmatprep.subr.mxu0 0.0
        %1211 = vmatpush1.msra.mxu0 0.0
        %1212 = vmatprep.subr.mxu0 0.0
        %1213 = vmatpush1.msra.mxu0 0.0
        %1214 = vmatprep.subr.mxu0 0.0
        %1215 = vmatpush1.msra.mxu0 0.0
        %1216 = vmatprep.subr.mxu0 0.0
        %1217 = vmatpush1.msra.mxu0 0.0
        %1218 = vmatprep.subr.mxu0 0.0
        %1219 = vmatpush1.msra.mxu0 0.0
        %1220 = vmatprep.subr.mxu0 0.0
        %1221 = vmatpush1.msra.mxu0 0.0
        %1222 = vmatprep.subr.mxu0 0.0
        %1223 = vmatpush1.msra.mxu0 0.0
        %1224 = vmatprep.subr.mxu0 0.0
        %1225 = vmatpush1.msra.mxu0 0.0
        %1226 = vmatprep.mubr.f32.mxu0 0.0
        %1227 = vmatmul.mubr.f32.gmra.mrb[0].mxu0 %v1151
        %v1228 = vpop.f32.mrb[0].mxu0
        %v1229 = vadd.f32 %v1132, %v1228
        %v1230 = vpop.f32.mrb[0].mxu0
        %1231 = vmatprep.mubr.f32.mxu0 0.0
        %1232 = vmatmul.mubr.f32.gmra.mrb[0].mxu0 %v1154
        %v1233 = vpop.f32.mrb[0].mxu0
        %v1234 = vadd.f32 %v1137, %v1233
        %v1235 = vpop.f32.mrb[0].mxu0
        %1236 = vmatprep.mubr.f32.mxu0 0.0
        %1237 = vmatmul.mubr.f32.gmra.mrb[0].mxu0 %v1157
        %v1238 = vpop.f32.mrb[0].mxu0
        %v1239 = vadd.f32 %v1142, %v1238
        %v1240 = vpop.f32.mrb[0].mxu0
        %1241 = vmatprep.mubr.f32.mxu0 0.0
        %1242 = vmatmul.mubr.f32.gmra.mrb[0].mxu0 %v1160
        %v1243 = vpop.f32.mrb[0].mxu0
        %v1244 = vadd.f32 %v1147, %v1243
        %v1245 = vpop.f32.mrb[0].mxu0
        %1246 = vdwg.mxu0
        %s1247 = scalar_lea.vmem %s7, 32
        %v1248 = vld [vmem:[%s1247] sm:$0xff]
        %v1249 = vld [vmem:[%s1247 + $0x8] sm:$0xff]
        %v1250 = vld [vmem:[%s1247 + $0x10] sm:$0xff]
        %v1251 = vld [vmem:[%s1247 + $0x18] sm:$0xff]
        %1253 = vset.pattern.permute.xlu0 0
        %1254 = vperm.xlu0 %1253, %v1248
        %v1255 = vpop.permute.xlu0 %1254
        %1258 = vset.pattern.permute.xlu0 0
        %1259 = vperm.xlu0 %1258, %v1249
        %v1260 = vpop.permute.xlu0 %1259
        %1263 = vset.pattern.permute.xlu0 0
        %1264 = vperm.xlu0 %1263, %v1250
        %v1265 = vpop.permute.xlu0 %1264
        %1268 = vset.pattern.permute.xlu0 0
        %1269 = vperm.xlu0 %1268, %v1251
        %v1270 = vpop.permute.xlu0 %1269
        %v1272 = vadd.f32 %v1229, %v1255
        %v1273 = vadd.f32 %v1234, %v1260
        %v1274 = vadd.f32 %v1239, %v1265
        %v1275 = vadd.f32 %v1244, %v1270
        %v1276 = vmax.f32 %v1272, 0.0
        %v1277 = vmax.f32 %v1273, 0.0
        %v1278 = vmax.f32 %v1274, 0.0
        %v1279 = vmax.f32 %v1275, 0.0
        %s1280 = scalar_lea.vmem %s8, 32
        %v1281 = vld [vmem:[%s1280] sm:$0xff]
        %v1282 = vld [vmem:[%s1280 + $0x8] sm:$0xff]
        %v1283 = vld [vmem:[%s1280 + $0x10] sm:$0xff]
        %v1284 = vld [vmem:[%s1280 + $0x18] sm:$0xff]
        %s1285 = scalar_lea.vmem %s9, 32
        %v1286 = vld [vmem:[%s1285] sm:$0xff]
        %v1287 = vld [vmem:[%s1285 + $0x8] sm:$0xff]
        %v1288 = vld [vmem:[%s1285 + $0x10] sm:$0xff]
        %v1289 = vld [vmem:[%s1285 + $0x18] sm:$0xff]
        %1291 = vset.pattern.permute.xlu0 0
        %1292 = vperm.xlu0 %1291, %v1286
        %v1293 = vpop.permute.xlu0 %1292
        %1296 = vset.pattern.permute.xlu0 0
        %1297 = vperm.xlu0 %1296, %v1287
        %v1298 = vpop.permute.xlu0 %1297
        %1301 = vset.pattern.permute.xlu0 0
        %1302 = vperm.xlu0 %1301, %v1288
        %v1303 = vpop.permute.xlu0 %1302
        %1306 = vset.pattern.permute.xlu0 0
        %1307 = vperm.xlu0 %1306, %v1289
        %v1308 = vpop.permute.xlu0 %1307
        %v1311 = vsel %vm804, %v1281, 0
        %v1314 = vsel %vm804, %v1282, 0
        %v1317 = vsel %vm804, %v1283, 0
        %v1320 = vsel %vm804, %v1284, 0
        %1322 = vmatprep.subr.mxu0 0.0
        %1323 = vmatpush1.msra.mxu0 %v1276
        %1324 = vmatprep.subr.mxu0 0.0
        %1325 = vmatpush1.msra.mxu0 %v1277
        %1326 = vmatprep.subr.mxu0 0.0
        %1327 = vmatpush1.msra.mxu0 %v1278
        %1328 = vmatprep.subr.mxu0 0.0
        %1329 = vmatpush1.msra.mxu0 %v1279
        %1330 = vmatprep.subr.mxu0 0.0
        %1331 = vmatpush1.msra.mxu0 0.0
        %1332 = vmatprep.subr.mxu0 0.0
        %1333 = vmatpush1.msra.mxu0 0.0
        %1334 = vmatprep.subr.mxu0 0.0
        %1335 = vmatpush1.msra.mxu0 0.0
        %1336 = vmatprep.subr.mxu0 0.0
        %1337 = vmatpush1.msra.mxu0 0.0
        %1338 = vmatprep.subr.mxu0 0.0
        %1339 = vmatpush1.msra.mxu0 0.0
        %1340 = vmatprep.subr.mxu0 0.0
        %1341 = vmatpush1.msra.mxu0 0.0
        %1342 = vmatprep.subr.mxu0 0.0
        %1343 = vmatpush1.msra.mxu0 0.0
        %1344 = vmatprep.subr.mxu0 0.0
        %1345 = vmatpush1.msra.mxu0 0.0
        %1346 = vmatprep.subr.mxu0 0.0
        %1347 = vmatpush1.msra.mxu0 0.0
        %1348 = vmatprep.subr.mxu0 0.0
        %1349 = vmatpush1.msra.mxu0 0.0
        %1350 = vmatprep.subr.mxu0 0.0
        %1351 = vmatpush1.msra.mxu0 0.0
        %1352 = vmatprep.subr.mxu0 0.0
        %1353 = vmatpush1.msra.mxu0 0.0
        %1354 = vmatprep.subr.mxu0 0.0
        %1355 = vmatpush1.msra.mxu0 0.0
        %1356 = vmatprep.subr.mxu0 0.0
        %1357 = vmatpush1.msra.mxu0 0.0
        %1358 = vmatprep.subr.mxu0 0.0
        %1359 = vmatpush1.msra.mxu0 0.0
        %1360 = vmatprep.subr.mxu0 0.0
        %1361 = vmatpush1.msra.mxu0 0.0
        %1362 = vmatprep.subr.mxu0 0.0
        %1363 = vmatpush1.msra.mxu0 0.0
        %1364 = vmatprep.subr.mxu0 0.0
        %1365 = vmatpush1.msra.mxu0 0.0
        %1366 = vmatprep.subr.mxu0 0.0
        %1367 = vmatpush1.msra.mxu0 0.0
        %1368 = vmatprep.subr.mxu0 0.0
        %1369 = vmatpush1.msra.mxu0 0.0
        %1370 = vmatprep.subr.mxu0 0.0
        %1371 = vmatpush1.msra.mxu0 0.0
        %1372 = vmatprep.subr.mxu0 0.0
        %1373 = vmatpush1.msra.mxu0 0.0
        %1374 = vmatprep.subr.mxu0 0.0
        %1375 = vmatpush1.msra.mxu0 0.0
        %1376 = vmatprep.subr.mxu0 0.0
        %1377 = vmatpush1.msra.mxu0 0.0
        %1378 = vmatprep.subr.mxu0 0.0
        %1379 = vmatpush1.msra.mxu0 0.0
        %1380 = vmatprep.subr.mxu0 0.0
        %1381 = vmatpush1.msra.mxu0 0.0
        %1382 = vmatprep.subr.mxu0 0.0
        %1383 = vmatpush1.msra.mxu0 0.0
        %1384 = vmatprep.subr.mxu0 0.0
        %1385 = vmatpush1.msra.mxu0 0.0
        %1386 = vmatprep.mubr.f32.mxu0 0.0
        %1387 = vmatmul.mubr.f32.gmra.mrb[0].mxu0 %v1311
        %v1388 = vpop.f32.mrb[0].mxu0
        %v1389 = vadd.f32 %v1293, %v1388
        %v1390 = vpop.f32.mrb[0].mxu0
        %1391 = vmatprep.mubr.f32.mxu0 0.0
        %1392 = vmatmul.mubr.f32.gmra.mrb[0].mxu0 %v1314
        %v1393 = vpop.f32.mrb[0].mxu0
        %v1394 = vadd.f32 %v1298, %v1393
        %v1395 = vpop.f32.mrb[0].mxu0
        %1396 = vmatprep.mubr.f32.mxu0 0.0
        %1397 = vmatmul.mubr.f32.gmra.mrb[0].mxu0 %v1317
        %v1398 = vpop.f32.mrb[0].mxu0
        %v1399 = vadd.f32 %v1303, %v1398
        %v1400 = vpop.f32.mrb[0].mxu0
        %1401 = vmatprep.mubr.f32.mxu0 0.0
        %1402 = vmatmul.mubr.f32.gmra.mrb[0].mxu0 %v1320
        %v1403 = vpop.f32.mrb[0].mxu0
        %v1404 = vadd.f32 %v1308, %v1403
        %v1405 = vpop.f32.mrb[0].mxu0
        %1406 = vdwg.mxu0
        %v1407 = vmax.f32 %v1389, 0.0
        %v1408 = vmax.f32 %v1394, 0.0
        %v1409 = vmax.f32 %v1399, 0.0
        %v1410 = vmax.f32 %v1404, 0.0
        %s1411 = scalar_lea.vmem %s10, 16
        %v1412 = vld [vmem:[%s1411] sm:$0xff]
        %v1413 = vld [vmem:[%s1411 + $0x8] sm:$0xff]
        %s1414 = scalar_lea.vmem %s11, 16
        %v1415 = vld [vmem:[%s1414] sm:$0xff]
        %v1416 = vld [vmem:[%s1414 + $0x8] sm:$0xff]
        %1418 = vset.pattern.permute.xlu0 0
        %1419 = vperm.xlu0 %1418, %v1415
        %v1420 = vpop.permute.xlu0 %1419
        %1423 = vset.pattern.permute.xlu0 0
        %1424 = vperm.xlu0 %1423, %v1416
        %v1425 = vpop.permute.xlu0 %1424
        %v1428 = vsel %vm804, %v1412, 0
        %v1431 = vsel %vm804, %v1413, 0
        %1433 = vmatprep.subr.mxu0 0.0
        %1434 = vmatpush1.msra.mxu0 %v1407
        %1435 = vmatprep.subr.mxu0 0.0
        %1436 = vmatpush1.msra.mxu0 %v1408
        %1437 = vmatprep.subr.mxu0 0.0
        %1438 = vmatpush1.msra.mxu0 %v1409
        %1439 = vmatprep.subr.mxu0 0.0
        %1440 = vmatpush1.msra.mxu0 %v1410
        %1441 = vmatprep.subr.mxu0 0.0
        %1442 = vmatpush1.msra.mxu0 0.0
        %1443 = vmatprep.subr.mxu0 0.0
        %1444 = vmatpush1.msra.mxu0 0.0
        %1445 = vmatprep.subr.mxu0 0.0
        %1446 = vmatpush1.msra.mxu0 0.0
        %1447 = vmatprep.subr.mxu0 0.0
        %1448 = vmatpush1.msra.mxu0 0.0
        %1449 = vmatprep.subr.mxu0 0.0
        %1450 = vmatpush1.msra.mxu0 0.0
        %1451 = vmatprep.subr.mxu0 0.0
        %1452 = vmatpush1.msra.mxu0 0.0
        %1453 = vmatprep.subr.mxu0 0.0
        %1454 = vmatpush1.msra.mxu0 0.0
        %1455 = vmatprep.subr.mxu0 0.0
        %1456 = vmatpush1.msra.mxu0 0.0
        %1457 = vmatprep.subr.mxu0 0.0
        %1458 = vmatpush1.msra.mxu0 0.0
        %1459 = vmatprep.subr.mxu0 0.0
        %1460 = vmatpush1.msra.mxu0 0.0
        %1461 = vmatprep.subr.mxu0 0.0
        %1462 = vmatpush1.msra.mxu0 0.0
        %1463 = vmatprep.subr.mxu0 0.0
        %1464 = vmatpush1.msra.mxu0 0.0
        %1465 = vmatprep.subr.mxu0 0.0
        %1466 = vmatpush1.msra.mxu0 0.0
        %1467 = vmatprep.subr.mxu0 0.0
        %1468 = vmatpush1.msra.mxu0 0.0
        %1469 = vmatprep.subr.mxu0 0.0
        %1470 = vmatpush1.msra.mxu0 0.0
        %1471 = vmatprep.subr.mxu0 0.0
        %1472 = vmatpush1.msra.mxu0 0.0
        %1473 = vmatprep.subr.mxu0 0.0
        %1474 = vmatpush1.msra.mxu0 0.0
        %1475 = vmatprep.subr.mxu0 0.0
        %1476 = vmatpush1.msra.mxu0 0.0
        %1477 = vmatprep.subr.mxu0 0.0
        %1478 = vmatpush1.msra.mxu0 0.0
        %1479 = vmatprep.subr.mxu0 0.0
        %1480 = vmatpush1.msra.mxu0 0.0
        %1481 = vmatprep.subr.mxu0 0.0
        %1482 = vmatpush1.msra.mxu0 0.0
        %1483 = vmatprep.subr.mxu0 0.0
        %1484 = vmatpush1.msra.mxu0 0.0
        %1485 = vmatprep.subr.mxu0 0.0
        %1486 = vmatpush1.msra.mxu0 0.0
        %1487 = vmatprep.subr.mxu0 0.0
        %1488 = vmatpush1.msra.mxu0 0.0
        %1489 = vmatprep.subr.mxu0 0.0
        %1490 = vmatpush1.msra.mxu0 0.0
        %1491 = vmatprep.subr.mxu0 0.0
        %1492 = vmatpush1.msra.mxu0 0.0
        %1493 = vmatprep.subr.mxu0 0.0
        %1494 = vmatpush1.msra.mxu0 0.0
        %1495 = vmatprep.subr.mxu0 0.0
        %1496 = vmatpush1.msra.mxu0 0.0
        %1497 = vmatprep.mubr.f32.mxu0 0.0
        %1498 = vmatmul.mubr.f32.gmra.mrb[0].mxu0 %v1428
        %v1499 = vpop.f32.mrb[0].mxu0
        %v1500 = vadd.f32 %v1420, %v1499
        %v1501 = vpop.f32.mrb[0].mxu0
        %1502 = vmatprep.mubr.f32.mxu0 0.0
        %1503 = vmatmul.mubr.f32.gmra.mrb[0].mxu0 %v1431
        %v1504 = vpop.f32.mrb[0].mxu0
        %v1505 = vadd.f32 %v1425, %v1504
        %v1506 = vpop.f32.mrb[0].mxu0
        %1507 = vdwg.mxu0
        %v1508 = vtanh.pop %v1505
        %s1509 = scalar_lea.vmem %s12, 8
        %v1510 = vld [vmem:[%s1509] sm:$0xff]
        %1512 = vset.pattern.permute.xlu0 0
        %1513 = vperm.xlu0 %1512, %v1510
        %v1514 = vpop.permute.xlu0 %1513
        %v1516 = vmul.f32 %v1508, %v1514
        %s1517 = scalar_lea.vmem %s13, 8
        %v1518 = vld [vmem:[%s1517] sm:$0xff]
        %1520 = vset.pattern.permute.xlu0 0
        %1521 = vperm.xlu0 %1520, %v1518
        %v1522 = vpop.permute.xlu0 %1521
        %v1524 = vadd.f32 %v1516, %v1522
        %v1525 = vmul.f32 %v1524, 1.442695
        %v1526 = vpow.pop %v1525
        %v1527 = vmul.f32 %v1042, %v1526
        %v1528 = vadd.f32 %v1527, %v1500
        %v1529 = vrot.slane %v1524, 4
        %v1530 = vadd.f32 %v1524, %v1529
        %v1531 = vrot.slane %v1530, 2
        %v1532 = vadd.f32 %v1530, %v1531
        %v1533 = vrot.slane %v1532, 1
        %v1534 = vadd.f32 %v1532, %v1533
        %v1535 = vadd.f32 %v1026, %v1534
        %s1536 = scalar_lea.vmem %s3, 16
        %v1537 = vld [vmem:[%s1536] sm:$0xff]
        %1539 = vset.pattern.permute.xlu0 0
        %1540 = vperm.xlu0 %1539, %v1537
        %v1541 = vpop.permute.xlu0 %1540
        %v1543 = vmul.f32 %v1528, %v1541
        %s1544 = scalar_lea.vmem %s4, 16
        %v1545 = vld [vmem:[%s1544] sm:$0xff]
        %1547 = vset.pattern.permute.xlu0 0
        %1548 = vperm.xlu0 %1547, %v1545
        %v1549 = vpop.permute.xlu0 %1548
        %v1551 = vadd.f32 %v1543, %v1549
        %s1552 = scalar_lea.vmem %s5, 64
        %v1553 = vld [vmem:[%s1552] sm:$0xff]
        %v1554 = vld [vmem:[%s1552 + $0x8] sm:$0xff]
        %v1555 = vld [vmem:[%s1552 + $0x10] sm:$0xff]
        %v1556 = vld [vmem:[%s1552 + $0x18] sm:$0xff]
        %s1557 = scalar_lea.vmem %s6, 64
        %v1558 = vld [vmem:[%s1557] sm:$0xff]
        %v1559 = vld [vmem:[%s1557 + $0x8] sm:$0xff]
        %v1560 = vld [vmem:[%s1557 + $0x10] sm:$0xff]
        %v1561 = vld [vmem:[%s1557 + $0x18] sm:$0xff]
        %v1563 = vsel %vm544, %v1558, 0
        %v1566 = vsel %vm544, %v1559, 0
        %v1569 = vsel %vm544, %v1560, 0
        %v1572 = vsel %vm544, %v1561, 0
        %1574 = vmatprep.subr.mxu0 0.0
        %1575 = vmatpush1.msra.mxu0 %v559
        %1576 = vmatprep.subr.mxu0 0.0
        %1577 = vmatpush1.msra.mxu0 0.0
        %1578 = vmatprep.subr.mxu0 0.0
        %1579 = vmatpush1.msra.mxu0 0.0
        %1580 = vmatprep.subr.mxu0 0.0
        %1581 = vmatpush1.msra.mxu0 0.0
        %1582 = vmatprep.subr.mxu0 0.0
        %1583 = vmatpush1.msra.mxu0 0.0
        %1584 = vmatprep.subr.mxu0 0.0
        %1585 = vmatpush1.msra.mxu0 0.0
        %1586 = vmatprep.subr.mxu0 0.0
        %1587 = vmatpush1.msra.mxu0 0.0
        %1588 = vmatprep.subr.mxu0 0.0
        %1589 = vmatpush1.msra.mxu0 0.0
        %1590 = vmatprep.subr.mxu0 0.0
        %1591 = vmatpush1.msra.mxu0 0.0
        %1592 = vmatprep.subr.mxu0 0.0
        %1593 = vmatpush1.msra.mxu0 0.0
        %1594 = vmatprep.subr.mxu0 0.0
        %1595 = vmatpush1.msra.mxu0 0.0
        %1596 = vmatprep.subr.mxu0 0.0
        %1597 = vmatpush1.msra.mxu0 0.0
        %1598 = vmatprep.subr.mxu0 0.0
        %1599 = vmatpush1.msra.mxu0 0.0
        %1600 = vmatprep.subr.mxu0 0.0
        %1601 = vmatpush1.msra.mxu0 0.0
        %1602 = vmatprep.subr.mxu0 0.0
        %1603 = vmatpush1.msra.mxu0 0.0
        %1604 = vmatprep.subr.mxu0 0.0
        %1605 = vmatpush1.msra.mxu0 0.0
        %1606 = vmatprep.subr.mxu0 0.0
        %1607 = vmatpush1.msra.mxu0 0.0
        %1608 = vmatprep.subr.mxu0 0.0
        %1609 = vmatpush1.msra.mxu0 0.0
        %1610 = vmatprep.subr.mxu0 0.0
        %1611 = vmatpush1.msra.mxu0 0.0
        %1612 = vmatprep.subr.mxu0 0.0
        %1613 = vmatpush1.msra.mxu0 0.0
        %1614 = vmatprep.subr.mxu0 0.0
        %1615 = vmatpush1.msra.mxu0 0.0
        %1616 = vmatprep.subr.mxu0 0.0
        %1617 = vmatpush1.msra.mxu0 0.0
        %1618 = vmatprep.subr.mxu0 0.0
        %1619 = vmatpush1.msra.mxu0 0.0
        %1620 = vmatprep.subr.mxu0 0.0
        %1621 = vmatpush1.msra.mxu0 0.0
        %1622 = vmatprep.subr.mxu0 0.0
        %1623 = vmatpush1.msra.mxu0 0.0
        %1624 = vmatprep.subr.mxu0 0.0
        %1625 = vmatpush1.msra.mxu0 0.0
        %1626 = vmatprep.subr.mxu0 0.0
        %1627 = vmatpush1.msra.mxu0 0.0
        %1628 = vmatprep.subr.mxu0 0.0
        %1629 = vmatpush1.msra.mxu0 0.0
        %1630 = vmatprep.subr.mxu0 0.0
        %1631 = vmatpush1.msra.mxu0 0.0
        %1632 = vmatprep.subr.mxu0 0.0
        %1633 = vmatpush1.msra.mxu0 0.0
        %1634 = vmatprep.subr.mxu0 0.0
        %1635 = vmatpush1.msra.mxu0 0.0
        %1636 = vmatprep.subr.mxu0 0.0
        %1637 = vmatpush1.msra.mxu0 0.0
        %1638 = vmatprep.mubr.f32.mxu0 0.0
        %1639 = vmatmul.mubr.f32.gmra.mrb[0].mxu0 %v1563
        %v1640 = vpop.f32.mrb[0].mxu0
        %v1641 = vadd.f32 0.0, %v1640
        %v1642 = vpop.f32.mrb[0].mxu0
        %1643 = vmatprep.mubr.f32.mxu0 0.0
        %1644 = vmatmul.mubr.f32.gmra.mrb[0].mxu0 %v1566
        %v1645 = vpop.f32.mrb[0].mxu0
        %v1646 = vadd.f32 0.0, %v1645
        %v1647 = vpop.f32.mrb[0].mxu0
        %1648 = vmatprep.mubr.f32.mxu0 0.0
        %1649 = vmatmul.mubr.f32.gmra.mrb[0].mxu0 %v1569
        %v1650 = vpop.f32.mrb[0].mxu0
        %v1651 = vadd.f32 0.0, %v1650
        %v1652 = vpop.f32.mrb[0].mxu0
        %1653 = vmatprep.mubr.f32.mxu0 0.0
        %1654 = vmatmul.mubr.f32.gmra.mrb[0].mxu0 %v1572
        %v1655 = vpop.f32.mrb[0].mxu0
        %v1656 = vadd.f32 0.0, %v1655
        %v1657 = vpop.f32.mrb[0].mxu0
        %1658 = vdwg.mxu0
        %v1660 = vsel %vm646, %v1553, 0
        %v1663 = vsel %vm646, %v1554, 0
        %v1666 = vsel %vm646, %v1555, 0
        %v1669 = vsel %vm646, %v1556, 0
        %1671 = vmatprep.subr.mxu0 0.0
        %1672 = vmatpush1.msra.mxu0 %v1551
        %1673 = vmatprep.subr.mxu0 0.0
        %1674 = vmatpush1.msra.mxu0 0.0
        %1675 = vmatprep.subr.mxu0 0.0
        %1676 = vmatpush1.msra.mxu0 0.0
        %1677 = vmatprep.subr.mxu0 0.0
        %1678 = vmatpush1.msra.mxu0 0.0
        %1679 = vmatprep.subr.mxu0 0.0
        %1680 = vmatpush1.msra.mxu0 0.0
        %1681 = vmatprep.subr.mxu0 0.0
        %1682 = vmatpush1.msra.mxu0 0.0
        %1683 = vmatprep.subr.mxu0 0.0
        %1684 = vmatpush1.msra.mxu0 0.0
        %1685 = vmatprep.subr.mxu0 0.0
        %1686 = vmatpush1.msra.mxu0 0.0
        %1687 = vmatprep.subr.mxu0 0.0
        %1688 = vmatpush1.msra.mxu0 0.0
        %1689 = vmatprep.subr.mxu0 0.0
        %1690 = vmatpush1.msra.mxu0 0.0
        %1691 = vmatprep.subr.mxu0 0.0
        %1692 = vmatpush1.msra.mxu0 0.0
        %1693 = vmatprep.subr.mxu0 0.0
        %1694 = vmatpush1.msra.mxu0 0.0
        %1695 = vmatprep.subr.mxu0 0.0
        %1696 = vmatpush1.msra.mxu0 0.0
        %1697 = vmatprep.subr.mxu0 0.0
        %1698 = vmatpush1.msra.mxu0 0.0
        %1699 = vmatprep.subr.mxu0 0.0
        %1700 = vmatpush1.msra.mxu0 0.0
        %1701 = vmatprep.subr.mxu0 0.0
        %1702 = vmatpush1.msra.mxu0 0.0
        %1703 = vmatprep.subr.mxu0 0.0
        %1704 = vmatpush1.msra.mxu0 0.0
        %1705 = vmatprep.subr.mxu0 0.0
        %1706 = vmatpush1.msra.mxu0 0.0
        %1707 = vmatprep.subr.mxu0 0.0
        %1708 = vmatpush1.msra.mxu0 0.0
        %1709 = vmatprep.subr.mxu0 0.0
        %1710 = vmatpush1.msra.mxu0 0.0
        %1711 = vmatprep.subr.mxu0 0.0
        %1712 = vmatpush1.msra.mxu0 0.0
        %1713 = vmatprep.subr.mxu0 0.0
        %1714 = vmatpush1.msra.mxu0 0.0
        %1715 = vmatprep.subr.mxu0 0.0
        %1716 = vmatpush1.msra.mxu0 0.0
        %1717 = vmatprep.subr.mxu0 0.0
        %1718 = vmatpush1.msra.mxu0 0.0
        %1719 = vmatprep.subr.mxu0 0.0
        %1720 = vmatpush1.msra.mxu0 0.0
        %1721 = vmatprep.subr.mxu0 0.0
        %1722 = vmatpush1.msra.mxu0 0.0
        %1723 = vmatprep.subr.mxu0 0.0
        %1724 = vmatpush1.msra.mxu0 0.0
        %1725 = vmatprep.subr.mxu0 0.0
        %1726 = vmatpush1.msra.mxu0 0.0
        %1727 = vmatprep.subr.mxu0 0.0
        %1728 = vmatpush1.msra.mxu0 0.0
        %1729 = vmatprep.subr.mxu0 0.0
        %1730 = vmatpush1.msra.mxu0 0.0
        %1731 = vmatprep.subr.mxu0 0.0
        %1732 = vmatpush1.msra.mxu0 0.0
        %1733 = vmatprep.subr.mxu0 0.0
        %1734 = vmatpush1.msra.mxu0 0.0
        %1735 = vmatprep.mubr.f32.mxu0 0.0
        %1736 = vmatmul.mubr.f32.gmra.mrb[0].mxu0 %v1660
        %v1737 = vpop.f32.mrb[0].mxu0
        %v1738 = vadd.f32 %v1641, %v1737
        %v1739 = vpop.f32.mrb[0].mxu0
        %1740 = vmatprep.mubr.f32.mxu0 0.0
        %1741 = vmatmul.mubr.f32.gmra.mrb[0].mxu0 %v1663
        %v1742 = vpop.f32.mrb[0].mxu0
        %v1743 = vadd.f32 %v1646, %v1742
        %v1744 = vpop.f32.mrb[0].mxu0
        %1745 = vmatprep.mubr.f32.mxu0 0.0
        %1746 = vmatmul.mubr.f32.gmra.mrb[0].mxu0 %v1666
        %v1747 = vpop.f32.mrb[0].mxu0
        %v1748 = vadd.f32 %v1651, %v1747
        %v1749 = vpop.f32.mrb[0].mxu0
        %1750 = vmatprep.mubr.f32.mxu0 0.0
        %1751 = vmatmul.mubr.f32.gmra.mrb[0].mxu0 %v1669
        %v1752 = vpop.f32.mrb[0].mxu0
        %v1753 = vadd.f32 %v1656, %v1752
        %v1754 = vpop.f32.mrb[0].mxu0
        %1755 = vdwg.mxu0
        %s1756 = scalar_lea.vmem %s7, 64
        %v1757 = vld [vmem:[%s1756] sm:$0xff]
        %v1758 = vld [vmem:[%s1756 + $0x8] sm:$0xff]
        %v1759 = vld [vmem:[%s1756 + $0x10] sm:$0xff]
        %v1760 = vld [vmem:[%s1756 + $0x18] sm:$0xff]
        %1762 = vset.pattern.permute.xlu0 0
        %1763 = vperm.xlu0 %1762, %v1757
        %v1764 = vpop.permute.xlu0 %1763
        %1767 = vset.pattern.permute.xlu0 0
        %1768 = vperm.xlu0 %1767, %v1758
        %v1769 = vpop.permute.xlu0 %1768
        %1772 = vset.pattern.permute.xlu0 0
        %1773 = vperm.xlu0 %1772, %v1759
        %v1774 = vpop.permute.xlu0 %1773
        %1777 = vset.pattern.permute.xlu0 0
        %1778 = vperm.xlu0 %1777, %v1760
        %v1779 = vpop.permute.xlu0 %1778
        %v1781 = vadd.f32 %v1738, %v1764
        %v1782 = vadd.f32 %v1743, %v1769
        %v1783 = vadd.f32 %v1748, %v1774
        %v1784 = vadd.f32 %v1753, %v1779
        %v1785 = vmax.f32 %v1781, 0.0
        %v1786 = vmax.f32 %v1782, 0.0
        %v1787 = vmax.f32 %v1783, 0.0
        %v1788 = vmax.f32 %v1784, 0.0
        %s1789 = scalar_lea.vmem %s8, 64
        %v1790 = vld [vmem:[%s1789] sm:$0xff]
        %v1791 = vld [vmem:[%s1789 + $0x8] sm:$0xff]
        %v1792 = vld [vmem:[%s1789 + $0x10] sm:$0xff]
        %v1793 = vld [vmem:[%s1789 + $0x18] sm:$0xff]
        %s1794 = scalar_lea.vmem %s9, 64
        %v1795 = vld [vmem:[%s1794] sm:$0xff]
        %v1796 = vld [vmem:[%s1794 + $0x8] sm:$0xff]
        %v1797 = vld [vmem:[%s1794 + $0x10] sm:$0xff]
        %v1798 = vld [vmem:[%s1794 + $0x18] sm:$0xff]
        %1800 = vset.pattern.permute.xlu0 0
        %1801 = vperm.xlu0 %1800, %v1795
        %v1802 = vpop.permute.xlu0 %1801
        %1805 = vset.pattern.permute.xlu0 0
        %1806 = vperm.xlu0 %1805, %v1796
        %v1807 = vpop.permute.xlu0 %1806
        %1810 = vset.pattern.permute.xlu0 0
        %1811 = vperm.xlu0 %1810, %v1797
        %v1812 = vpop.permute.xlu0 %1811
        %1815 = vset.pattern.permute.xlu0 0
        %1816 = vperm.xlu0 %1815, %v1798
        %v1817 = vpop.permute.xlu0 %1816
        %v1820 = vsel %vm804, %v1790, 0
        %v1823 = vsel %vm804, %v1791, 0
        %v1826 = vsel %vm804, %v1792, 0
        %v1829 = vsel %vm804, %v1793, 0
        %1831 = vmatprep.subr.mxu0 0.0
        %1832 = vmatpush1.msra.mxu0 %v1785
        %1833 = vmatprep.subr.mxu0 0.0
        %1834 = vmatpush1.msra.mxu0 %v1786
        %1835 = vmatprep.subr.mxu0 0.0
        %1836 = vmatpush1.msra.mxu0 %v1787
        %1837 = vmatprep.subr.mxu0 0.0
        %1838 = vmatpush1.msra.mxu0 %v1788
        %1839 = vmatprep.subr.mxu0 0.0
        %1840 = vmatpush1.msra.mxu0 0.0
        %1841 = vmatprep.subr.mxu0 0.0
        %1842 = vmatpush1.msra.mxu0 0.0
        %1843 = vmatprep.subr.mxu0 0.0
        %1844 = vmatpush1.msra.mxu0 0.0
        %1845 = vmatprep.subr.mxu0 0.0
        %1846 = vmatpush1.msra.mxu0 0.0
        %1847 = vmatprep.subr.mxu0 0.0
        %1848 = vmatpush1.msra.mxu0 0.0
        %1849 = vmatprep.subr.mxu0 0.0
        %1850 = vmatpush1.msra.mxu0 0.0
        %1851 = vmatprep.subr.mxu0 0.0
        %1852 = vmatpush1.msra.mxu0 0.0
        %1853 = vmatprep.subr.mxu0 0.0
        %1854 = vmatpush1.msra.mxu0 0.0
        %1855 = vmatprep.subr.mxu0 0.0
        %1856 = vmatpush1.msra.mxu0 0.0
        %1857 = vmatprep.subr.mxu0 0.0
        %1858 = vmatpush1.msra.mxu0 0.0
        %1859 = vmatprep.subr.mxu0 0.0
        %1860 = vmatpush1.msra.mxu0 0.0
        %1861 = vmatprep.subr.mxu0 0.0
        %1862 = vmatpush1.msra.mxu0 0.0
        %1863 = vmatprep.subr.mxu0 0.0
        %1864 = vmatpush1.msra.mxu0 0.0
        %1865 = vmatprep.subr.mxu0 0.0
        %1866 = vmatpush1.msra.mxu0 0.0
        %1867 = vmatprep.subr.mxu0 0.0
        %1868 = vmatpush1.msra.mxu0 0.0
        %1869 = vmatprep.subr.mxu0 0.0
        %1870 = vmatpush1.msra.mxu0 0.0
        %1871 = vmatprep.subr.mxu0 0.0
        %1872 = vmatpush1.msra.mxu0 0.0
        %1873 = vmatprep.subr.mxu0 0.0
        %1874 = vmatpush1.msra.mxu0 0.0
        %1875 = vmatprep.subr.mxu0 0.0
        %1876 = vmatpush1.msra.mxu0 0.0
        %1877 = vmatprep.subr.mxu0 0.0
        %1878 = vmatpush1.msra.mxu0 0.0
        %1879 = vmatprep.subr.mxu0 0.0
        %1880 = vmatpush1.msra.mxu0 0.0
        %1881 = vmatprep.subr.mxu0 0.0
        %1882 = vmatpush1.msra.mxu0 0.0
        %1883 = vmatprep.subr.mxu0 0.0
        %1884 = vmatpush1.msra.mxu0 0.0
        %1885 = vmatprep.subr.mxu0 0.0
        %1886 = vmatpush1.msra.mxu0 0.0
        %1887 = vmatprep.subr.mxu0 0.0
        %1888 = vmatpush1.msra.mxu0 0.0
        %1889 = vmatprep.subr.mxu0 0.0
        %1890 = vmatpush1.msra.mxu0 0.0
        %1891 = vmatprep.subr.mxu0 0.0
        %1892 = vmatpush1.msra.mxu0 0.0
        %1893 = vmatprep.subr.mxu0 0.0
        %1894 = vmatpush1.msra.mxu0 0.0
        %1895 = vmatprep.mubr.f32.mxu0 0.0
        %1896 = vmatmul.mubr.f32.gmra.mrb[0].mxu0 %v1820
        %v1897 = vpop.f32.mrb[0].mxu0
        %v1898 = vadd.f32 %v1802, %v1897
        %v1899 = vpop.f32.mrb[0].mxu0
        %1900 = vmatprep.mubr.f32.mxu0 0.0
        %1901 = vmatmul.mubr.f32.gmra.mrb[0].mxu0 %v1823
        %v1902 = vpop.f32.mrb[0].mxu0
        %v1903 = vadd.f32 %v1807, %v1902
        %v1904 = vpop.f32.mrb[0].mxu0
        %1905 = vmatprep.mubr.f32.mxu0 0.0
        %1906 = vmatmul.mubr.f32.gmra.mrb[0].mxu0 %v1826
        %v1907 = vpop.f32.mrb[0].mxu0
        %v1908 = vadd.f32 %v1812, %v1907
        %v1909 = vpop.f32.mrb[0].mxu0
        %1910 = vmatprep.mubr.f32.mxu0 0.0
        %1911 = vmatmul.mubr.f32.gmra.mrb[0].mxu0 %v1829
        %v1912 = vpop.f32.mrb[0].mxu0
        %v1913 = vadd.f32 %v1817, %v1912
        %v1914 = vpop.f32.mrb[0].mxu0
        %1915 = vdwg.mxu0
        %v1916 = vmax.f32 %v1898, 0.0
        %v1917 = vmax.f32 %v1903, 0.0
        %v1918 = vmax.f32 %v1908, 0.0
        %v1919 = vmax.f32 %v1913, 0.0
        %s1920 = scalar_lea.vmem %s10, 32
        %v1921 = vld [vmem:[%s1920] sm:$0xff]
        %v1922 = vld [vmem:[%s1920 + $0x8] sm:$0xff]
        %s1923 = scalar_lea.vmem %s11, 32
        %v1924 = vld [vmem:[%s1923] sm:$0xff]
        %v1925 = vld [vmem:[%s1923 + $0x8] sm:$0xff]
        %1927 = vset.pattern.permute.xlu0 0
        %1928 = vperm.xlu0 %1927, %v1924
        %v1929 = vpop.permute.xlu0 %1928
        %1932 = vset.pattern.permute.xlu0 0
        %1933 = vperm.xlu0 %1932, %v1925
        %v1934 = vpop.permute.xlu0 %1933
        %v1937 = vsel %vm804, %v1921, 0
        %v1940 = vsel %vm804, %v1922, 0
        %1942 = vmatprep.subr.mxu0 0.0
        %1943 = vmatpush1.msra.mxu0 %v1916
        %1944 = vmatprep.subr.mxu0 0.0
        %1945 = vmatpush1.msra.mxu0 %v1917
        %1946 = vmatprep.subr.mxu0 0.0
        %1947 = vmatpush1.msra.mxu0 %v1918
        %1948 = vmatprep.subr.mxu0 0.0
        %1949 = vmatpush1.msra.mxu0 %v1919
        %1950 = vmatprep.subr.mxu0 0.0
        %1951 = vmatpush1.msra.mxu0 0.0
        %1952 = vmatprep.subr.mxu0 0.0
        %1953 = vmatpush1.msra.mxu0 0.0
        %1954 = vmatprep.subr.mxu0 0.0
        %1955 = vmatpush1.msra.mxu0 0.0
        %1956 = vmatprep.subr.mxu0 0.0
        %1957 = vmatpush1.msra.mxu0 0.0
        %1958 = vmatprep.subr.mxu0 0.0
        %1959 = vmatpush1.msra.mxu0 0.0
        %1960 = vmatprep.subr.mxu0 0.0
        %1961 = vmatpush1.msra.mxu0 0.0
        %1962 = vmatprep.subr.mxu0 0.0
        %1963 = vmatpush1.msra.mxu0 0.0
        %1964 = vmatprep.subr.mxu0 0.0
        %1965 = vmatpush1.msra.mxu0 0.0
        %1966 = vmatprep.subr.mxu0 0.0
        %1967 = vmatpush1.msra.mxu0 0.0
        %1968 = vmatprep.subr.mxu0 0.0
        %1969 = vmatpush1.msra.mxu0 0.0
        %1970 = vmatprep.subr.mxu0 0.0
        %1971 = vmatpush1.msra.mxu0 0.0
        %1972 = vmatprep.subr.mxu0 0.0
        %1973 = vmatpush1.msra.mxu0 0.0
        %1974 = vmatprep.subr.mxu0 0.0
        %1975 = vmatpush1.msra.mxu0 0.0
        %1976 = vmatprep.subr.mxu0 0.0
        %1977 = vmatpush1.msra.mxu0 0.0
        %1978 = vmatprep.subr.mxu0 0.0
        %1979 = vmatpush1.msra.mxu0 0.0
        %1980 = vmatprep.subr.mxu0 0.0
        %1981 = vmatpush1.msra.mxu0 0.0
        %1982 = vmatprep.subr.mxu0 0.0
        %1983 = vmatpush1.msra.mxu0 0.0
        %1984 = vmatprep.subr.mxu0 0.0
        %1985 = vmatpush1.msra.mxu0 0.0
        %1986 = vmatprep.subr.mxu0 0.0
        %1987 = vmatpush1.msra.mxu0 0.0
        %1988 = vmatprep.subr.mxu0 0.0
        %1989 = vmatpush1.msra.mxu0 0.0
        %1990 = vmatprep.subr.mxu0 0.0
        %1991 = vmatpush1.msra.mxu0 0.0
        %1992 = vmatprep.subr.mxu0 0.0
        %1993 = vmatpush1.msra.mxu0 0.0
        %1994 = vmatprep.subr.mxu0 0.0
        %1995 = vmatpush1.msra.mxu0 0.0
        %1996 = vmatprep.subr.mxu0 0.0
        %1997 = vmatpush1.msra.mxu0 0.0
        %1998 = vmatprep.subr.mxu0 0.0
        %1999 = vmatpush1.msra.mxu0 0.0
        %2000 = vmatprep.subr.mxu0 0.0
        %2001 = vmatpush1.msra.mxu0 0.0
        %2002 = vmatprep.subr.mxu0 0.0
        %2003 = vmatpush1.msra.mxu0 0.0
        %2004 = vmatprep.subr.mxu0 0.0
        %2005 = vmatpush1.msra.mxu0 0.0
        %2006 = vmatprep.mubr.f32.mxu0 0.0
        %2007 = vmatmul.mubr.f32.gmra.mrb[0].mxu0 %v1937
        %v2008 = vpop.f32.mrb[0].mxu0
        %v2009 = vadd.f32 %v1929, %v2008
        %v2010 = vpop.f32.mrb[0].mxu0
        %2011 = vmatprep.mubr.f32.mxu0 0.0
        %2012 = vmatmul.mubr.f32.gmra.mrb[0].mxu0 %v1940
        %v2013 = vpop.f32.mrb[0].mxu0
        %v2014 = vadd.f32 %v1934, %v2013
        %v2015 = vpop.f32.mrb[0].mxu0
        %2016 = vdwg.mxu0
        %v2017 = vtanh.pop %v2014
        %s2018 = scalar_lea.vmem %s12, 16
        %v2019 = vld [vmem:[%s2018] sm:$0xff]
        %2021 = vset.pattern.permute.xlu0 0
        %2022 = vperm.xlu0 %2021, %v2019
        %v2023 = vpop.permute.xlu0 %2022
        %v2025 = vmul.f32 %v2017, %v2023
        %s2026 = scalar_lea.vmem %s13, 16
        %v2027 = vld [vmem:[%s2026] sm:$0xff]
        %2029 = vset.pattern.permute.xlu0 0
        %2030 = vperm.xlu0 %2029, %v2027
        %v2031 = vpop.permute.xlu0 %2030
        %v2033 = vadd.f32 %v2025, %v2031
        %v2034 = vmul.f32 %v2033, 1.442695
        %v2035 = vpow.pop %v2034
        %v2036 = vmul.f32 %v1551, %v2035
        %v2037 = vadd.f32 %v2036, %v2009
        %v2038 = vrot.slane %v2033, 4
        %v2039 = vadd.f32 %v2033, %v2038
        %v2040 = vrot.slane %v2039, 2
        %v2041 = vadd.f32 %v2039, %v2040
        %v2042 = vrot.slane %v2041, 1
        %v2043 = vadd.f32 %v2041, %v2042
        %v2044 = vadd.f32 %v1535, %v2043
        %s2045 = scalar_lea.vmem %s3, 24
        %v2046 = vld [vmem:[%s2045] sm:$0xff]
        %2048 = vset.pattern.permute.xlu0 0
        %2049 = vperm.xlu0 %2048, %v2046
        %v2050 = vpop.permute.xlu0 %2049
        %v2052 = vmul.f32 %v2037, %v2050
        %s2053 = scalar_lea.vmem %s4, 24
        %v2054 = vld [vmem:[%s2053] sm:$0xff]
        %2056 = vset.pattern.permute.xlu0 0
        %2057 = vperm.xlu0 %2056, %v2054
        %v2058 = vpop.permute.xlu0 %2057
        %v2060 = vadd.f32 %v2052, %v2058
        %s2061 = scalar_lea.vmem %s5, 96
        %v2062 = vld [vmem:[%s2061] sm:$0xff]
        %v2063 = vld [vmem:[%s2061 + $0x8] sm:$0xff]
        %v2064 = vld [vmem:[%s2061 + $0x10] sm:$0xff]
        %v2065 = vld [vmem:[%s2061 + $0x18] sm:$0xff]
        %s2066 = scalar_lea.vmem %s6, 96
        %v2067 = vld [vmem:[%s2066] sm:$0xff]
        %v2068 = vld [vmem:[%s2066 + $0x8] sm:$0xff]
        %v2069 = vld [vmem:[%s2066 + $0x10] sm:$0xff]
        %v2070 = vld [vmem:[%s2066 + $0x18] sm:$0xff]
        %v2072 = vsel %vm544, %v2067, 0
        %v2075 = vsel %vm544, %v2068, 0
        %v2078 = vsel %vm544, %v2069, 0
        %v2081 = vsel %vm544, %v2070, 0
        %2083 = vmatprep.subr.mxu0 0.0
        %2084 = vmatpush1.msra.mxu0 %v559
        %2085 = vmatprep.subr.mxu0 0.0
        %2086 = vmatpush1.msra.mxu0 0.0
        %2087 = vmatprep.subr.mxu0 0.0
        %2088 = vmatpush1.msra.mxu0 0.0
        %2089 = vmatprep.subr.mxu0 0.0
        %2090 = vmatpush1.msra.mxu0 0.0
        %2091 = vmatprep.subr.mxu0 0.0
        %2092 = vmatpush1.msra.mxu0 0.0
        %2093 = vmatprep.subr.mxu0 0.0
        %2094 = vmatpush1.msra.mxu0 0.0
        %2095 = vmatprep.subr.mxu0 0.0
        %2096 = vmatpush1.msra.mxu0 0.0
        %2097 = vmatprep.subr.mxu0 0.0
        %2098 = vmatpush1.msra.mxu0 0.0
        %2099 = vmatprep.subr.mxu0 0.0
        %2100 = vmatpush1.msra.mxu0 0.0
        %2101 = vmatprep.subr.mxu0 0.0
        %2102 = vmatpush1.msra.mxu0 0.0
        %2103 = vmatprep.subr.mxu0 0.0
        %2104 = vmatpush1.msra.mxu0 0.0
        %2105 = vmatprep.subr.mxu0 0.0
        %2106 = vmatpush1.msra.mxu0 0.0
        %2107 = vmatprep.subr.mxu0 0.0
        %2108 = vmatpush1.msra.mxu0 0.0
        %2109 = vmatprep.subr.mxu0 0.0
        %2110 = vmatpush1.msra.mxu0 0.0
        %2111 = vmatprep.subr.mxu0 0.0
        %2112 = vmatpush1.msra.mxu0 0.0
        %2113 = vmatprep.subr.mxu0 0.0
        %2114 = vmatpush1.msra.mxu0 0.0
        %2115 = vmatprep.subr.mxu0 0.0
        %2116 = vmatpush1.msra.mxu0 0.0
        %2117 = vmatprep.subr.mxu0 0.0
        %2118 = vmatpush1.msra.mxu0 0.0
        %2119 = vmatprep.subr.mxu0 0.0
        %2120 = vmatpush1.msra.mxu0 0.0
        %2121 = vmatprep.subr.mxu0 0.0
        %2122 = vmatpush1.msra.mxu0 0.0
        %2123 = vmatprep.subr.mxu0 0.0
        %2124 = vmatpush1.msra.mxu0 0.0
        %2125 = vmatprep.subr.mxu0 0.0
        %2126 = vmatpush1.msra.mxu0 0.0
        %2127 = vmatprep.subr.mxu0 0.0
        %2128 = vmatpush1.msra.mxu0 0.0
        %2129 = vmatprep.subr.mxu0 0.0
        %2130 = vmatpush1.msra.mxu0 0.0
        %2131 = vmatprep.subr.mxu0 0.0
        %2132 = vmatpush1.msra.mxu0 0.0
        %2133 = vmatprep.subr.mxu0 0.0
        %2134 = vmatpush1.msra.mxu0 0.0
        %2135 = vmatprep.subr.mxu0 0.0
        %2136 = vmatpush1.msra.mxu0 0.0
        %2137 = vmatprep.subr.mxu0 0.0
        %2138 = vmatpush1.msra.mxu0 0.0
        %2139 = vmatprep.subr.mxu0 0.0
        %2140 = vmatpush1.msra.mxu0 0.0
        %2141 = vmatprep.subr.mxu0 0.0
        %2142 = vmatpush1.msra.mxu0 0.0
        %2143 = vmatprep.subr.mxu0 0.0
        %2144 = vmatpush1.msra.mxu0 0.0
        %2145 = vmatprep.subr.mxu0 0.0
        %2146 = vmatpush1.msra.mxu0 0.0
        %2147 = vmatprep.mubr.f32.mxu0 0.0
        %2148 = vmatmul.mubr.f32.gmra.mrb[0].mxu0 %v2072
        %v2149 = vpop.f32.mrb[0].mxu0
        %v2150 = vadd.f32 0.0, %v2149
        %v2151 = vpop.f32.mrb[0].mxu0
        %2152 = vmatprep.mubr.f32.mxu0 0.0
        %2153 = vmatmul.mubr.f32.gmra.mrb[0].mxu0 %v2075
        %v2154 = vpop.f32.mrb[0].mxu0
        %v2155 = vadd.f32 0.0, %v2154
        %v2156 = vpop.f32.mrb[0].mxu0
        %2157 = vmatprep.mubr.f32.mxu0 0.0
        %2158 = vmatmul.mubr.f32.gmra.mrb[0].mxu0 %v2078
        %v2159 = vpop.f32.mrb[0].mxu0
        %v2160 = vadd.f32 0.0, %v2159
        %v2161 = vpop.f32.mrb[0].mxu0
        %2162 = vmatprep.mubr.f32.mxu0 0.0
        %2163 = vmatmul.mubr.f32.gmra.mrb[0].mxu0 %v2081
        %v2164 = vpop.f32.mrb[0].mxu0
        %v2165 = vadd.f32 0.0, %v2164
        %v2166 = vpop.f32.mrb[0].mxu0
        %2167 = vdwg.mxu0
        %v2169 = vsel %vm646, %v2062, 0
        %v2172 = vsel %vm646, %v2063, 0
        %v2175 = vsel %vm646, %v2064, 0
        %v2178 = vsel %vm646, %v2065, 0
        %2180 = vmatprep.subr.mxu0 0.0
        %2181 = vmatpush1.msra.mxu0 %v2060
        %2182 = vmatprep.subr.mxu0 0.0
        %2183 = vmatpush1.msra.mxu0 0.0
        %2184 = vmatprep.subr.mxu0 0.0
        %2185 = vmatpush1.msra.mxu0 0.0
        %2186 = vmatprep.subr.mxu0 0.0
        %2187 = vmatpush1.msra.mxu0 0.0
        %2188 = vmatprep.subr.mxu0 0.0
        %2189 = vmatpush1.msra.mxu0 0.0
        %2190 = vmatprep.subr.mxu0 0.0
        %2191 = vmatpush1.msra.mxu0 0.0
        %2192 = vmatprep.subr.mxu0 0.0
        %2193 = vmatpush1.msra.mxu0 0.0
        %2194 = vmatprep.subr.mxu0 0.0
        %2195 = vmatpush1.msra.mxu0 0.0
        %2196 = vmatprep.subr.mxu0 0.0
        %2197 = vmatpush1.msra.mxu0 0.0
        %2198 = vmatprep.subr.mxu0 0.0
        %2199 = vmatpush1.msra.mxu0 0.0
        %2200 = vmatprep.subr.mxu0 0.0
        %2201 = vmatpush1.msra.mxu0 0.0
        %2202 = vmatprep.subr.mxu0 0.0
        %2203 = vmatpush1.msra.mxu0 0.0
        %2204 = vmatprep.subr.mxu0 0.0
        %2205 = vmatpush1.msra.mxu0 0.0
        %2206 = vmatprep.subr.mxu0 0.0
        %2207 = vmatpush1.msra.mxu0 0.0
        %2208 = vmatprep.subr.mxu0 0.0
        %2209 = vmatpush1.msra.mxu0 0.0
        %2210 = vmatprep.subr.mxu0 0.0
        %2211 = vmatpush1.msra.mxu0 0.0
        %2212 = vmatprep.subr.mxu0 0.0
        %2213 = vmatpush1.msra.mxu0 0.0
        %2214 = vmatprep.subr.mxu0 0.0
        %2215 = vmatpush1.msra.mxu0 0.0
        %2216 = vmatprep.subr.mxu0 0.0
        %2217 = vmatpush1.msra.mxu0 0.0
        %2218 = vmatprep.subr.mxu0 0.0
        %2219 = vmatpush1.msra.mxu0 0.0
        %2220 = vmatprep.subr.mxu0 0.0
        %2221 = vmatpush1.msra.mxu0 0.0
        %2222 = vmatprep.subr.mxu0 0.0
        %2223 = vmatpush1.msra.mxu0 0.0
        %2224 = vmatprep.subr.mxu0 0.0
        %2225 = vmatpush1.msra.mxu0 0.0
        %2226 = vmatprep.subr.mxu0 0.0
        %2227 = vmatpush1.msra.mxu0 0.0
        %2228 = vmatprep.subr.mxu0 0.0
        %2229 = vmatpush1.msra.mxu0 0.0
        %2230 = vmatprep.subr.mxu0 0.0
        %2231 = vmatpush1.msra.mxu0 0.0
        %2232 = vmatprep.subr.mxu0 0.0
        %2233 = vmatpush1.msra.mxu0 0.0
        %2234 = vmatprep.subr.mxu0 0.0
        %2235 = vmatpush1.msra.mxu0 0.0
        %2236 = vmatprep.subr.mxu0 0.0
        %2237 = vmatpush1.msra.mxu0 0.0
        %2238 = vmatprep.subr.mxu0 0.0
        %2239 = vmatpush1.msra.mxu0 0.0
        %2240 = vmatprep.subr.mxu0 0.0
        %2241 = vmatpush1.msra.mxu0 0.0
        %2242 = vmatprep.subr.mxu0 0.0
        %2243 = vmatpush1.msra.mxu0 0.0
        %2244 = vmatprep.mubr.f32.mxu0 0.0
        %2245 = vmatmul.mubr.f32.gmra.mrb[0].mxu0 %v2169
        %v2246 = vpop.f32.mrb[0].mxu0
        %v2247 = vadd.f32 %v2150, %v2246
        %v2248 = vpop.f32.mrb[0].mxu0
        %2249 = vmatprep.mubr.f32.mxu0 0.0
        %2250 = vmatmul.mubr.f32.gmra.mrb[0].mxu0 %v2172
        %v2251 = vpop.f32.mrb[0].mxu0
        %v2252 = vadd.f32 %v2155, %v2251
        %v2253 = vpop.f32.mrb[0].mxu0
        %2254 = vmatprep.mubr.f32.mxu0 0.0
        %2255 = vmatmul.mubr.f32.gmra.mrb[0].mxu0 %v2175
        %v2256 = vpop.f32.mrb[0].mxu0
        %v2257 = vadd.f32 %v2160, %v2256
        %v2258 = vpop.f32.mrb[0].mxu0
        %2259 = vmatprep.mubr.f32.mxu0 0.0
        %2260 = vmatmul.mubr.f32.gmra.mrb[0].mxu0 %v2178
        %v2261 = vpop.f32.mrb[0].mxu0
        %v2262 = vadd.f32 %v2165, %v2261
        %v2263 = vpop.f32.mrb[0].mxu0
        %2264 = vdwg.mxu0
        %s2265 = scalar_lea.vmem %s7, 96
        %v2266 = vld [vmem:[%s2265] sm:$0xff]
        %v2267 = vld [vmem:[%s2265 + $0x8] sm:$0xff]
        %v2268 = vld [vmem:[%s2265 + $0x10] sm:$0xff]
        %v2269 = vld [vmem:[%s2265 + $0x18] sm:$0xff]
        %2271 = vset.pattern.permute.xlu0 0
        %2272 = vperm.xlu0 %2271, %v2266
        %v2273 = vpop.permute.xlu0 %2272
        %2276 = vset.pattern.permute.xlu0 0
        %2277 = vperm.xlu0 %2276, %v2267
        %v2278 = vpop.permute.xlu0 %2277
        %2281 = vset.pattern.permute.xlu0 0
        %2282 = vperm.xlu0 %2281, %v2268
        %v2283 = vpop.permute.xlu0 %2282
        %2286 = vset.pattern.permute.xlu0 0
        %2287 = vperm.xlu0 %2286, %v2269
        %v2288 = vpop.permute.xlu0 %2287
        %v2290 = vadd.f32 %v2247, %v2273
        %v2291 = vadd.f32 %v2252, %v2278
        %v2292 = vadd.f32 %v2257, %v2283
        %v2293 = vadd.f32 %v2262, %v2288
        %v2294 = vmax.f32 %v2290, 0.0
        %v2295 = vmax.f32 %v2291, 0.0
        %v2296 = vmax.f32 %v2292, 0.0
        %v2297 = vmax.f32 %v2293, 0.0
        %s2298 = scalar_lea.vmem %s8, 96
        %v2299 = vld [vmem:[%s2298] sm:$0xff]
        %v2300 = vld [vmem:[%s2298 + $0x8] sm:$0xff]
        %v2301 = vld [vmem:[%s2298 + $0x10] sm:$0xff]
        %v2302 = vld [vmem:[%s2298 + $0x18] sm:$0xff]
        %s2303 = scalar_lea.vmem %s9, 96
        %v2304 = vld [vmem:[%s2303] sm:$0xff]
        %v2305 = vld [vmem:[%s2303 + $0x8] sm:$0xff]
        %v2306 = vld [vmem:[%s2303 + $0x10] sm:$0xff]
        %v2307 = vld [vmem:[%s2303 + $0x18] sm:$0xff]
        %2309 = vset.pattern.permute.xlu0 0
        %2310 = vperm.xlu0 %2309, %v2304
        %v2311 = vpop.permute.xlu0 %2310
        %2314 = vset.pattern.permute.xlu0 0
        %2315 = vperm.xlu0 %2314, %v2305
        %v2316 = vpop.permute.xlu0 %2315
        %2319 = vset.pattern.permute.xlu0 0
        %2320 = vperm.xlu0 %2319, %v2306
        %v2321 = vpop.permute.xlu0 %2320
        %2324 = vset.pattern.permute.xlu0 0
        %2325 = vperm.xlu0 %2324, %v2307
        %v2326 = vpop.permute.xlu0 %2325
        %v2329 = vsel %vm804, %v2299, 0
        %v2332 = vsel %vm804, %v2300, 0
        %v2335 = vsel %vm804, %v2301, 0
        %v2338 = vsel %vm804, %v2302, 0
        %2340 = vmatprep.subr.mxu0 0.0
        %2341 = vmatpush1.msra.mxu0 %v2294
        %2342 = vmatprep.subr.mxu0 0.0
        %2343 = vmatpush1.msra.mxu0 %v2295
        %2344 = vmatprep.subr.mxu0 0.0
        %2345 = vmatpush1.msra.mxu0 %v2296
        %2346 = vmatprep.subr.mxu0 0.0
        %2347 = vmatpush1.msra.mxu0 %v2297
        %2348 = vmatprep.subr.mxu0 0.0
        %2349 = vmatpush1.msra.mxu0 0.0
        %2350 = vmatprep.subr.mxu0 0.0
        %2351 = vmatpush1.msra.mxu0 0.0
        %2352 = vmatprep.subr.mxu0 0.0
        %2353 = vmatpush1.msra.mxu0 0.0
        %2354 = vmatprep.subr.mxu0 0.0
        %2355 = vmatpush1.msra.mxu0 0.0
        %2356 = vmatprep.subr.mxu0 0.0
        %2357 = vmatpush1.msra.mxu0 0.0
        %2358 = vmatprep.subr.mxu0 0.0
        %2359 = vmatpush1.msra.mxu0 0.0
        %2360 = vmatprep.subr.mxu0 0.0
        %2361 = vmatpush1.msra.mxu0 0.0
        %2362 = vmatprep.subr.mxu0 0.0
        %2363 = vmatpush1.msra.mxu0 0.0
        %2364 = vmatprep.subr.mxu0 0.0
        %2365 = vmatpush1.msra.mxu0 0.0
        %2366 = vmatprep.subr.mxu0 0.0
        %2367 = vmatpush1.msra.mxu0 0.0
        %2368 = vmatprep.subr.mxu0 0.0
        %2369 = vmatpush1.msra.mxu0 0.0
        %2370 = vmatprep.subr.mxu0 0.0
        %2371 = vmatpush1.msra.mxu0 0.0
        %2372 = vmatprep.subr.mxu0 0.0
        %2373 = vmatpush1.msra.mxu0 0.0
        %2374 = vmatprep.subr.mxu0 0.0
        %2375 = vmatpush1.msra.mxu0 0.0
        %2376 = vmatprep.subr.mxu0 0.0
        %2377 = vmatpush1.msra.mxu0 0.0
        %2378 = vmatprep.subr.mxu0 0.0
        %2379 = vmatpush1.msra.mxu0 0.0
        %2380 = vmatprep.subr.mxu0 0.0
        %2381 = vmatpush1.msra.mxu0 0.0
        %2382 = vmatprep.subr.mxu0 0.0
        %2383 = vmatpush1.msra.mxu0 0.0
        %2384 = vmatprep.subr.mxu0 0.0
        %2385 = vmatpush1.msra.mxu0 0.0
        %2386 = vmatprep.subr.mxu0 0.0
        %2387 = vmatpush1.msra.mxu0 0.0
        %2388 = vmatprep.subr.mxu0 0.0
        %2389 = vmatpush1.msra.mxu0 0.0
        %2390 = vmatprep.subr.mxu0 0.0
        %2391 = vmatpush1.msra.mxu0 0.0
        %2392 = vmatprep.subr.mxu0 0.0
        %2393 = vmatpush1.msra.mxu0 0.0
        %2394 = vmatprep.subr.mxu0 0.0
        %2395 = vmatpush1.msra.mxu0 0.0
        %2396 = vmatprep.subr.mxu0 0.0
        %2397 = vmatpush1.msra.mxu0 0.0
        %2398 = vmatprep.subr.mxu0 0.0
        %2399 = vmatpush1.msra.mxu0 0.0
        %2400 = vmatprep.subr.mxu0 0.0
        %2401 = vmatpush1.msra.mxu0 0.0
        %2402 = vmatprep.subr.mxu0 0.0
        %2403 = vmatpush1.msra.mxu0 0.0
        %2404 = vmatprep.mubr.f32.mxu0 0.0
        %2405 = vmatmul.mubr.f32.gmra.mrb[0].mxu0 %v2329
        %v2406 = vpop.f32.mrb[0].mxu0
        %v2407 = vadd.f32 %v2311, %v2406
        %v2408 = vpop.f32.mrb[0].mxu0
        %2409 = vmatprep.mubr.f32.mxu0 0.0
        %2410 = vmatmul.mubr.f32.gmra.mrb[0].mxu0 %v2332
        %v2411 = vpop.f32.mrb[0].mxu0
        %v2412 = vadd.f32 %v2316, %v2411
        %v2413 = vpop.f32.mrb[0].mxu0
        %2414 = vmatprep.mubr.f32.mxu0 0.0
        %2415 = vmatmul.mubr.f32.gmra.mrb[0].mxu0 %v2335
        %v2416 = vpop.f32.mrb[0].mxu0
        %v2417 = vadd.f32 %v2321, %v2416
        %v2418 = vpop.f32.mrb[0].mxu0
        %2419 = vmatprep.mubr.f32.mxu0 0.0
        %2420 = vmatmul.mubr.f32.gmra.mrb[0].mxu0 %v2338
        %v2421 = vpop.f32.mrb[0].mxu0
        %v2422 = vadd.f32 %v2326, %v2421
        %v2423 = vpop.f32.mrb[0].mxu0
        %2424 = vdwg.mxu0
        %v2425 = vmax.f32 %v2407, 0.0
        %v2426 = vmax.f32 %v2412, 0.0
        %v2427 = vmax.f32 %v2417, 0.0
        %v2428 = vmax.f32 %v2422, 0.0
        %s2429 = scalar_lea.vmem %s10, 48
        %v2430 = vld [vmem:[%s2429] sm:$0xff]
        %v2431 = vld [vmem:[%s2429 + $0x8] sm:$0xff]
        %s2432 = scalar_lea.vmem %s11, 48
        %v2433 = vld [vmem:[%s2432] sm:$0xff]
        %v2434 = vld [vmem:[%s2432 + $0x8] sm:$0xff]
        %2436 = vset.pattern.permute.xlu0 0
        %2437 = vperm.xlu0 %2436, %v2433
        %v2438 = vpop.permute.xlu0 %2437
        %2441 = vset.pattern.permute.xlu0 0
        %2442 = vperm.xlu0 %2441, %v2434
        %v2443 = vpop.permute.xlu0 %2442
        %v2446 = vsel %vm804, %v2430, 0
        %v2449 = vsel %vm804, %v2431, 0
        %2451 = vmatprep.subr.mxu0 0.0
        %2452 = vmatpush1.msra.mxu0 %v2425
        %2453 = vmatprep.subr.mxu0 0.0
        %2454 = vmatpush1.msra.mxu0 %v2426
        %2455 = vmatprep.subr.mxu0 0.0
        %2456 = vmatpush1.msra.mxu0 %v2427
        %2457 = vmatprep.subr.mxu0 0.0
        %2458 = vmatpush1.msra.mxu0 %v2428
        %2459 = vmatprep.subr.mxu0 0.0
        %2460 = vmatpush1.msra.mxu0 0.0
        %2461 = vmatprep.subr.mxu0 0.0
        %2462 = vmatpush1.msra.mxu0 0.0
        %2463 = vmatprep.subr.mxu0 0.0
        %2464 = vmatpush1.msra.mxu0 0.0
        %2465 = vmatprep.subr.mxu0 0.0
        %2466 = vmatpush1.msra.mxu0 0.0
        %2467 = vmatprep.subr.mxu0 0.0
        %2468 = vmatpush1.msra.mxu0 0.0
        %2469 = vmatprep.subr.mxu0 0.0
        %2470 = vmatpush1.msra.mxu0 0.0
        %2471 = vmatprep.subr.mxu0 0.0
        %2472 = vmatpush1.msra.mxu0 0.0
        %2473 = vmatprep.subr.mxu0 0.0
        %2474 = vmatpush1.msra.mxu0 0.0
        %2475 = vmatprep.subr.mxu0 0.0
        %2476 = vmatpush1.msra.mxu0 0.0
        %2477 = vmatprep.subr.mxu0 0.0
        %2478 = vmatpush1.msra.mxu0 0.0
        %2479 = vmatprep.subr.mxu0 0.0
        %2480 = vmatpush1.msra.mxu0 0.0
        %2481 = vmatprep.subr.mxu0 0.0
        %2482 = vmatpush1.msra.mxu0 0.0
        %2483 = vmatprep.subr.mxu0 0.0
        %2484 = vmatpush1.msra.mxu0 0.0
        %2485 = vmatprep.subr.mxu0 0.0
        %2486 = vmatpush1.msra.mxu0 0.0
        %2487 = vmatprep.subr.mxu0 0.0
        %2488 = vmatpush1.msra.mxu0 0.0
        %2489 = vmatprep.subr.mxu0 0.0
        %2490 = vmatpush1.msra.mxu0 0.0
        %2491 = vmatprep.subr.mxu0 0.0
        %2492 = vmatpush1.msra.mxu0 0.0
        %2493 = vmatprep.subr.mxu0 0.0
        %2494 = vmatpush1.msra.mxu0 0.0
        %2495 = vmatprep.subr.mxu0 0.0
        %2496 = vmatpush1.msra.mxu0 0.0
        %2497 = vmatprep.subr.mxu0 0.0
        %2498 = vmatpush1.msra.mxu0 0.0
        %2499 = vmatprep.subr.mxu0 0.0
        %2500 = vmatpush1.msra.mxu0 0.0
        %2501 = vmatprep.subr.mxu0 0.0
        %2502 = vmatpush1.msra.mxu0 0.0
        %2503 = vmatprep.subr.mxu0 0.0
        %2504 = vmatpush1.msra.mxu0 0.0
        %2505 = vmatprep.subr.mxu0 0.0
        %2506 = vmatpush1.msra.mxu0 0.0
        %2507 = vmatprep.subr.mxu0 0.0
        %2508 = vmatpush1.msra.mxu0 0.0
        %2509 = vmatprep.subr.mxu0 0.0
        %2510 = vmatpush1.msra.mxu0 0.0
        %2511 = vmatprep.subr.mxu0 0.0
        %2512 = vmatpush1.msra.mxu0 0.0
        %2513 = vmatprep.subr.mxu0 0.0
        %2514 = vmatpush1.msra.mxu0 0.0
        %2515 = vmatprep.mubr.f32.mxu0 0.0
        %2516 = vmatmul.mubr.f32.gmra.mrb[0].mxu0 %v2446
        %v2517 = vpop.f32.mrb[0].mxu0
        %v2518 = vadd.f32 %v2438, %v2517
        %v2519 = vpop.f32.mrb[0].mxu0
        %2520 = vmatprep.mubr.f32.mxu0 0.0
        %2521 = vmatmul.mubr.f32.gmra.mrb[0].mxu0 %v2449
        %v2522 = vpop.f32.mrb[0].mxu0
        %v2523 = vadd.f32 %v2443, %v2522
        %v2524 = vpop.f32.mrb[0].mxu0
        %2525 = vdwg.mxu0
        %v2526 = vtanh.pop %v2523
        %s2527 = scalar_lea.vmem %s12, 24
        %v2528 = vld [vmem:[%s2527] sm:$0xff]
        %2530 = vset.pattern.permute.xlu0 0
        %2531 = vperm.xlu0 %2530, %v2528
        %v2532 = vpop.permute.xlu0 %2531
        %v2534 = vmul.f32 %v2526, %v2532
        %s2535 = scalar_lea.vmem %s13, 24
        %v2536 = vld [vmem:[%s2535] sm:$0xff]
        %2538 = vset.pattern.permute.xlu0 0
        %2539 = vperm.xlu0 %2538, %v2536
        %v2540 = vpop.permute.xlu0 %2539
        %v2542 = vadd.f32 %v2534, %v2540
        %v2543 = vmul.f32 %v2542, 1.442695
        %v2544 = vpow.pop %v2543
        %v2545 = vmul.f32 %v2060, %v2544
        %v2546 = vadd.f32 %v2545, %v2518
        %v2547 = vrot.slane %v2542, 4
        %v2548 = vadd.f32 %v2542, %v2547
        %v2549 = vrot.slane %v2548, 2
        %v2550 = vadd.f32 %v2548, %v2549
        %v2551 = vrot.slane %v2550, 1
        %v2552 = vadd.f32 %v2550, %v2551
        %v2553 = vadd.f32 %v2044, %v2552
        %2554 = vst [vmem:[%s503] sm:$0xff] %v2546
        %2555 = vst [vmem:[%s509] sm:$0x1] %v2553
        %s2556 = sand.u32 %s346, 1
        %s2557 = scalar_lea.sflag [#allocation4], %s2556
        %s2558 = sand.u32 %s346, 1
        %s2559 = smul.addr %s2558, 8
        %s2560 = scalar_lea.vmem [#allocation3], %s2559
        %s2561 = sand.u32 %s372, 1
        %s2562 = scalar_lea.sflag [#allocation6], %s2561
        %s2563 = sand.u32 %s372, 1
        %s2564 = scalar_lea.vmem [#allocation5], %s2563
        // Predicated region
        $region77: #{tpu_custom_call.1} parent=75 // pred_check
          %p2565 = pneg %p356
        $region78: #{tpu_custom_call.1} parent=75 // pred_check_branch
          %2567 = sbr.rel (%p2565) target = $region80
        $region79: #{tpu_custom_call.1} parent=75 // pred_region
          %s2569 = ssub.s32 128, 128
          %2570 = vsyncadd %s2557, %s2569
          %s2571 = smul.addr %s34, 128
          %s2572 = scalar_lea.hbm %s14, %s2571
          %s2574 = sshll.u32 %s2560, 4
          %s2575 = int_to_ptr.vmem [resolvable:$true] %s2574
          %2577 = dma.vmem_to_hbm [thread:$0]  %s2575, 128, %s2572, %s2557
        $region80: #{tpu_custom_call.1} parent=75 // pred_fallthru
          _
        // Predicated region
        $region81: #{tpu_custom_call.1} parent=75 // pred_check
          %p2578 = pneg %p382
        $region82: #{tpu_custom_call.1} parent=75 // pred_check_branch
          %2580 = sbr.rel (%p2578) target = $region84
        $region83: #{tpu_custom_call.1} parent=75 // pred_region
          %s2582 = ssub.s32 16, 16
          %2583 = vsyncadd %s2562, %s2582
          %s2584 = smul.addr %s34, 16
          %s2585 = scalar_lea.hbm %s15, %s2584
          %s2587 = sshll.u32 %s2564, 4
          %s2588 = int_to_ptr.vmem [resolvable:$true] %s2587
          %2590 = dma.vmem_to_hbm [thread:$0]  %s2588, 16, %s2585, %s2562
        $region84: #{tpu_custom_call.1} parent=75 // pred_fallthru
          _
      $region76: #{tpu_custom_call.1} parent=5 // pred_fallthru
        _
      %p2591 = scmp.le.s32.totalorder 2, %s29
      // Predicated region
      $region85: #{tpu_custom_call.1} parent=5 // pred_check
        %p2592 = pneg %p2591
      $region86: #{tpu_custom_call.1} parent=5 // pred_check_branch
        %2594 = sbr.rel (%p2592) target = $region88
      $region87: #{tpu_custom_call.1} parent=5 // pred_region
        %s2595 = ssub.s32 %s29, 2
        // Predicated region
        $region89: #{tpu_custom_call.1} parent=87 // pred_check
          %p2596 = pneg %p362
        $region90: #{tpu_custom_call.1} parent=87 // pred_check_branch
          %2598 = sbr.rel (%p2596) target = $region92
        $region91: #{tpu_custom_call.1} parent=87 // pred_region
          %s2599 = sand.u32 %s347, 1
          %s2600 = scalar_lea.sflag [#allocation4], %s2599
          %s2601 = sand.u32 %s347, 1
          %s2602 = smul.addr %s2601, 8
          %s2603 = scalar_lea.vmem [#allocation3], %s2602
          %2604 = dma.done %s2600, 128
        $region92: #{tpu_custom_call.1} parent=87 // pred_fallthru
          _
        // Predicated region
        $region93: #{tpu_custom_call.1} parent=87 // pred_check
          %p2605 = pneg %p388
        $region94: #{tpu_custom_call.1} parent=87 // pred_check_branch
          %2607 = sbr.rel (%p2605) target = $region96
        $region95: #{tpu_custom_call.1} parent=87 // pred_region
          %s2608 = sand.u32 %s373, 1
          %s2609 = scalar_lea.sflag [#allocation6], %s2608
          %s2610 = sand.u32 %s373, 1
          %s2611 = scalar_lea.vmem [#allocation5], %s2610
          %2612 = dma.done %s2609, 16
        $region96: #{tpu_custom_call.1} parent=87 // pred_fallthru
          _
      $region88: #{tpu_custom_call.1} parent=5 // pred_fallthru
        _
    $region6: #{tpu_custom_call.1} parent=1 // loop_footer
      %s33 = sadd.s32 1, %s29
    $region7: #{tpu_custom_call.1} parent=1 // loop_footer_branch
      %28 = sbr.rel target = $region3
    $region8: #{tpu_custom_call.1} parent=1 // loop_exit
      _
    %2613 = vsyncpa [#allocation4], 1
    %s2614 = scalar_lea.sflag [#allocation4], 1
    %2615 = vsyncpa %s2614, 1
    %2616 = vsyncpa [#allocation6], 1
    %s2617 = scalar_lea.sflag [#allocation6], 1
    %2618 = vsyncpa %s2617, 1

</llo_original>
